<compile_context>
chip_gen: v5e
topology: v5e:2x2
jax: 0.10.0
libtpu: 0.0.40
codegen_flags: <defaults>
</compile_context>

<pallas_src>
import jax
import jax.numpy as jnp
from jax.experimental import pallas as pl
from jax.experimental.pallas import tpu as pltpu

BN_EPS = 1e-5
OUT_PAD = 64          # fc4 output padded width inside the kernel (sliced to 59 outside)

_ROLL_NP_CONVENTION = None


def _roll_matches_np():
    """One-time probe: does pltpu.roll follow np.roll semantics (and lower) here?

    If not, the kernel uses an unambiguous slice+concat circular shift instead.
    """
    global _ROLL_NP_CONVENTION
    if _ROLL_NP_CONVENTION is not None:
        return _ROLL_NP_CONVENTION

    def probe(a_ref, b_ref, oa_ref, ob_ref):
        oa_ref[...] = pltpu.roll(a_ref[...], a_ref.shape[0] - 1, axis=0)
        ob_ref[...] = pltpu.roll(b_ref[...], b_ref.shape[0] - 4, axis=0)

    a = jnp.arange(128, dtype=jnp.float32).reshape(128, 1)
    b = jnp.arange(128 * 32, dtype=jnp.float32).reshape(128, 32)
    try:
        oa, ob = pl.pallas_call(
            probe,
            out_shape=(jax.ShapeDtypeStruct(a.shape, a.dtype),
                       jax.ShapeDtypeStruct(b.shape, b.dtype)),
        )(a, b)
        ok = (bool(jnp.array_equal(oa, jnp.roll(a, 127, axis=0)))
              and bool(jnp.array_equal(ob, jnp.roll(b, 124, axis=0))))
    except Exception:
        ok = False
    _ROLL_NP_CONVENTION = ok
    return ok


# ----------------------------------------------------------------------------
# Fused kernel factory (static geometry baked in via closure).
# ----------------------------------------------------------------------------
def _make_kernel(n, lp, dils, counts, n_pool, xlu_roll):
    n_rows = n * lp
    bf16, f32 = jnp.bfloat16, jnp.float32

    def shift_up(a, d):
        # a_next[r] = a[(r + d) % n_rows].  Wrapped / cross-sample rows are never read
        # by valid downstream positions (L=60 padded to 64 per sample, d in {1,2,4}).
        if xlu_roll:
            return pltpu.roll(a, n_rows - d, axis=0)          # XLU sublane rotate
        return jnp.concatenate([a[d:, :], a[:d, :]], axis=0)  # unambiguous fallback

    def stage(h, wf, b, g, be, mask, count, d):
        # Conv1d(kernel=2) on the dilated layout: both taps fused into ONE bf16 matmul.
        h_next = shift_up(h, d)
        lhs = jnp.concatenate([h, h_next], axis=1).astype(bf16)
        y = jnp.dot(lhs, wf, preferred_element_type=f32) + b
        # BatchNorm1d (training mode, biased batch stats) over the valid rows only,
        # single pass: var = E[y^2] - mean^2.
        inv = 1.0 / count
        ym = y * mask
        mean = jnp.sum(ym, axis=0, keepdims=True) * inv
        var = jnp.sum(ym * y, axis=0, keepdims=True) * inv - mean * mean
        y = (y - mean) * jax.lax.rsqrt(var + BN_EPS) * g + be
        y = jnp.maximum(y, 0.0)                               # ReLU
        # MaxPool1d(2): pairwise max with the next valid (dilated) position.
        return jnp.maximum(y, shift_up(y, d))

    def kernel(x_ref,
               c1_w, c1_b, c1_g, c1_be, c1_m,
               c2_w, c2_b, c2_g, c2_be, c2_m,
               c3_w, c3_b, c3_g, c3_be, c3_m,
               pick_ref, fc1_b, fc2_b, fc3_b, fc4_b,
               fc1_w_hbm, fc2_w_hbm, fc3_w_hbm, fc4_w_hbm,
               out_ref,
               fc1_w_v, fc2_w_v, fc3_w_v, fc4_w_v, sems):
        # Kick off the FC weight HBM->VMEM DMAs so they hide under the conv stack.
        cp1 = pltpu.make_async_copy(fc1_w_hbm, fc1_w_v, sems.at[0])
        cp2 = pltpu.make_async_copy(fc2_w_hbm, fc2_w_v, sems.at[1])
        cp3 = pltpu.make_async_copy(fc3_w_hbm, fc3_w_v, sems.at[2])
        cp4 = pltpu.make_async_copy(fc4_w_hbm, fc4_w_v, sems.at[3])
        cp1.start(); cp2.start(); cp3.start(); cp4.start()

        h = x_ref[...]                                        # (N*Lp, 1) f32
        h = stage(h, c1_w[...], c1_b[...], c1_g[...], c1_be[...], c1_m[...],
                  counts[0], dils[0])
        h = stage(h, c2_w[...], c2_b[...], c2_g[...], c2_be[...], c2_m[...],
                  counts[1], dils[1])
        h = stage(h, c3_w[...], c3_b[...], c3_g[...], c3_be[...], c3_m[...],
                  counts[2], dils[2])                         # (N*Lp, 32)

        # flatten(1) fused with fc1: pick the n_pool pooled rows of every sample with
        # independent one-hot dots, lane-concat to a dense (N, 32*n_pool) activation.
        hb = h.astype(bf16)
        parts = [jnp.dot(pick_ref[p], hb, preferred_element_type=f32)
                 for p in range(n_pool)]
        hcat = jnp.concatenate(parts, axis=1)                 # (N, 192), (p, c) order

        cp1.wait()
        h1 = jnp.maximum(
            jnp.dot(hcat.astype(bf16), fc1_w_v[...],
                    preferred_element_type=f32) + fc1_b[...], 0.0)
        cp2.wait()
        h2 = jnp.maximum(
            jnp.dot(h1.astype(bf16), fc2_w_v[...],
                    preferred_element_type=f32) + fc2_b[...], 0.0)
        cp3.wait()
        h3 = jnp.maximum(
            jnp.dot(h2.astype(bf16), fc3_w_v[...],
                    preferred_element_type=f32) + fc3_b[...], 0.0)
        cp4.wait()
        out_ref[...] = (jnp.dot(h3.astype(bf16), fc4_w_v[...],
                                preferred_element_type=f32) + fc4_b[...])

    return kernel


# ----------------------------------------------------------------------------
# Wrapper: builds the small constants (fused conv weights, masks, row pickers,
# reordered fc1 weight), casts weights to bf16 and launches one kernel.
# ----------------------------------------------------------------------------
def net59_forward(x, params):
    n, cin0, length = x.shape
    assert cin0 == 1
    f32, bf16 = jnp.float32, jnp.bfloat16

    # Conv/pool geometry of the fixed-width dilated layout.
    stage_geom = []                               # (dilation, conv len, pool len)
    lcur, dil = length, 1
    for _ in range(3):
        lconv = lcur - 1
        lpool = lconv // 2
        stage_geom.append((dil, lconv, lpool))
        lcur, dil = lpool, dil * 2
    n_pool = stage_geom[-1][2]                    # pooled positions per channel (6)
    feat_stride = dil                             # row spacing of those positions (8)
    lp = ((length + 7) // 8) * 8                  # per-sample rows, sublane aligned
    n_rows = n * lp

    w1, b1 = params["fc1"]
    fc1_dim, flat_dim = w1.shape
    assert flat_dim == 32 * n_pool, "input length incompatible with fc1"

    # Per-stage fused conv weights, BN params and validity masks.
    stage_args, dils, counts = [], [], []
    for (w, b, g, be), (d, lconv, _) in zip(params["conv"], stage_geom):
        wf = jnp.concatenate([w[:, :, 0].T, w[:, :, 1].T], axis=0).astype(bf16)
        rows = (jnp.arange(n)[:, None] * lp
                + d * jnp.arange(lconv)[None, :]).reshape(-1)
        mask = jnp.zeros((n_rows, 1), f32).at[rows, 0].set(1.0)
        stage_args += [wf, b[None, :].astype(f32), g[None, :].astype(f32),
                       be[None, :].astype(f32), mask]
        dils.append(d)
        counts.append(float(n * lconv))

    # One-hot row pickers for the pooled features (flatten): pick[p][i] selects the
    # row of sample i holding pooled position p.
    pick = jnp.zeros((n_pool, n, n_rows), f32)
    for p in range(n_pool):
        for i in range(n):
            pick = pick.at[p, i, i * lp + feat_stride * p].set(1.0)
    pick = pick.astype(bf16)

    # fc1 weight reordered for the (p, c) flatten order produced in-kernel (dense,
    # no structural zeros).
    wstack = jnp.transpose(w1.reshape(fc1_dim, 32, n_pool),
                           (2, 1, 0)).reshape(flat_dim, fc1_dim).astype(bf16)
    fc1_b = b1[None, :].astype(f32)

    (w2, b2), (w3, b3), (w4, b4) = params["fc2"], params["fc3"], params["fc4"]
    n_out = w4.shape[0]
    fc2_w, fc2_b = w2.T.astype(bf16), b2[None, :].astype(f32)
    fc3_w, fc3_b = w3.T.astype(bf16), b3[None, :].astype(f32)
    fc4_w = jnp.zeros((w4.shape[1], OUT_PAD), f32).at[:, :n_out].set(w4.T).astype(bf16)
    fc4_b = jnp.zeros((1, OUT_PAD), f32).at[:, :n_out].set(b4[None, :])

    # Input: (N,1,L) -> (N*Lp, 1); samples stacked on sublanes, length padded per sample.
    xs = jnp.pad(x[:, 0, :].astype(f32), ((0, 0), (0, lp - length)))
    x0 = xs.reshape(n_rows, 1)

    kernel = _make_kernel(n, lp, tuple(dils), tuple(counts), n_pool,
                          _roll_matches_np())

    vmem_spec = pl.BlockSpec(memory_space=pltpu.MemorySpace.VMEM)
    any_spec = pl.BlockSpec(memory_space=pl.ANY)
    n_vmem_in = 1 + len(stage_args) + 1 + 4        # x0, stage args, pick, 4 fc biases

    out = pl.pallas_call(
        kernel,
        out_shape=jax.ShapeDtypeStruct((n, OUT_PAD), jnp.float32),
        in_specs=[vmem_spec] * n_vmem_in + [any_spec] * 4,
        out_specs=vmem_spec,
        scratch_shapes=[
            pltpu.VMEM(wstack.shape, bf16),
            pltpu.VMEM(fc2_w.shape, bf16),
            pltpu.VMEM(fc3_w.shape, bf16),
            pltpu.VMEM(fc4_w.shape, bf16),
            pltpu.SemaphoreType.DMA((4,)),
        ],
        compiler_params=pltpu.CompilerParams(vmem_limit_bytes=32 * 1024 * 1024),
    )(x0, *stage_args, pick, fc1_b, fc2_b, fc3_b, fc4_b,
      wstack, fc2_w, fc3_w, fc4_w)
    return out[:, :n_out]


# ----------------------------------------------------------------------------
# Deterministic parameter init (PyTorch-like uniform(-1/sqrt(fan_in), ...)).
# ----------------------------------------------------------------------------
def init_params(key):
    ks = jax.random.split(key, 20)

    def unif(k, shape, fan_in):
        b = float(fan_in) ** -0.5
        return jax.random.uniform(k, shape, jnp.float32, -b, b)

    conv = []
    conv_cfg = [(4, 1), (16, 4), (32, 16)]          # (Cout, Cin), kernel=2
    for li, (co, ci) in enumerate(conv_cfg):
        base = 4 * li
        w = unif(ks[base + 0], (co, ci, 2), ci * 2)
        b = unif(ks[base + 1], (co,), ci * 2)
        g = 1.0 + 0.1 * jax.random.normal(ks[base + 2], (co,), jnp.float32)
        be = 0.1 * jax.random.normal(ks[base + 3], (co,), jnp.float32)
        conv.append((w, b, g, be))

    fc_cfg = [(256, 192), (512, 256), (1024, 512), (59, 1024)]
    fcs = []
    for li, (fo, fi) in enumerate(fc_cfg):
        base = 12 + 2 * li
        fcs.append((unif(ks[base], (fo, fi), fi), unif(ks[base + 1], (fo,), fi)))

    return {"conv": conv, "fc1": fcs[0], "fc2": fcs[1], "fc3": fcs[2], "fc4": fcs[3]}


# ----------------------------------------------------------------------------
# Pure-JAX reference (mirrors the PyTorch forward, training-mode BN).
# ----------------------------------------------------------------------------
def reference_forward(x, params):
    h = x
    for (w, b, g, be) in params["conv"]:
        y = jax.lax.conv_general_dilated(
            h, w, window_strides=(1,), padding="VALID",
            dimension_numbers=("NCH", "OIH", "NCH")) + b[None, :, None]
        mean = jnp.mean(y, axis=(0, 2), keepdims=True)
        var = jnp.mean((y - mean) ** 2, axis=(0, 2), keepdims=True)
        y = (y - mean) * jax.lax.rsqrt(var + BN_EPS)
        y = y * g[None, :, None] + be[None, :, None]
        y = jnp.maximum(y, 0.0)
        p = y.shape[2] // 2
        h = y[:, :, :2 * p].reshape(y.shape[0], y.shape[1], p, 2).max(axis=3)
    h = h.reshape(h.shape[0], -1)
    for i, (w, b) in enumerate([params["fc1"], params["fc2"],
                                params["fc3"], params["fc4"]]):
        h = jnp.dot(h, w.T, precision=jax.lax.Precision.HIGHEST) + b
        if i < 3:
            h = jnp.maximum(h, 0.0)
    return h


if __name__ == "__main__":
    key = jax.random.PRNGKey(0)
    pkey, xkey = jax.random.split(key)
    params = init_params(pkey)

    # L=60 -> conv/pool chain: 60->59->29->28->14->13->6, giving 32*6=192 features.
    N, L = 2, 60
    x = jax.random.normal(xkey, (N, 1, L), jnp.float32)

    out = net59_forward(x, params)
    out = jax.block_until_ready(out)

    ref = reference_forward(x, params)
    assert out.shape == (N, 59)
    err = float(jnp.max(jnp.abs(out - ref)))
    assert jnp.allclose(out, ref, rtol=5e-2, atol=5e-2), err
    print("KERNEL_OK")
</pallas_src>

<mosaic_0001>
module attributes {stable_mosaic.version = 11 : i64} {
  func.func @probe(%arg0: memref<128x1xf32, #tpu.memory_space<vmem>>, %arg1: memref<128x32xf32, #tpu.memory_space<vmem>>, %arg2: memref<128x1xf32, #tpu.memory_space<vmem>>, %arg3: memref<128x32xf32, #tpu.memory_space<vmem>>) attributes {dimension_semantics = [], scalar_prefetch = 0 : i64, scratch_operands = 0 : i64, tpu.core_type = #tpu.core_type<tc>} {
    %c0 = arith.constant 0 : index
    %c0_0 = arith.constant 0 : index
    %0 = vector.load %arg0[%c0, %c0_0] : memref<128x1xf32, #tpu.memory_space<vmem>>, vector<128x1xf32>
    %c127_i32 = arith.constant 127 : i32
    %1 = tpu.dynamic_rotate %0 by %c127_i32 dim 0 : vector<128x1xf32>, i32 -> vector<128x1xf32>
    %c0_1 = arith.constant 0 : index
    %c0_2 = arith.constant 0 : index
    %2 = vector.load %arg2[%c0_1, %c0_2] : memref<128x1xf32, #tpu.memory_space<vmem>>, vector<128x1xf32>
    tpu.vector_store %arg2[%c0_1, %c0_2], %1 {strides = array<i32>} : memref<128x1xf32, #tpu.memory_space<vmem>>, vector<128x1xf32>,
    %c0_3 = arith.constant 0 : index
    %c0_4 = arith.constant 0 : index
    %3 = vector.load %arg1[%c0_3, %c0_4] : memref<128x32xf32, #tpu.memory_space<vmem>>, vector<128x32xf32>
    %c124_i32 = arith.constant 124 : i32
    %4 = tpu.dynamic_rotate %3 by %c124_i32 dim 0 : vector<128x32xf32>, i32 -> vector<128x32xf32>
    %c0_5 = arith.constant 0 : index
    %c0_6 = arith.constant 0 : index
    %5 = vector.load %arg3[%c0_5, %c0_6] : memref<128x32xf32, #tpu.memory_space<vmem>>, vector<128x32xf32>
    tpu.vector_store %arg3[%c0_5, %c0_6], %4 {strides = array<i32>} : memref<128x32xf32, #tpu.memory_space<vmem>>, vector<128x32xf32>,
    return
  }
}

module attributes {stable_mosaic.version = 11 : i64} {
  func.func @kernel(%arg0: memref<128x1xf32, #tpu.memory_space<vmem>>, %arg1: memref<2x4xbf16, #tpu.memory_space<vmem>>, %arg2: memref<1x4xf32, #tpu.memory_space<vmem>>, %arg3: memref<1x4xf32, #tpu.memory_space<vmem>>, %arg4: memref<1x4xf32, #tpu.memory_space<vmem>>, %arg5: memref<128x1xf32, #tpu.memory_space<vmem>>, %arg6: memref<8x16xbf16, #tpu.memory_space<vmem>>, %arg7: memref<1x16xf32, #tpu.memory_space<vmem>>, %arg8: memref<1x16xf32, #tpu.memory_space<vmem>>, %arg9: memref<1x16xf32, #tpu.memory_space<vmem>>, %arg10: memref<128x1xf32, #tpu.memory_space<vmem>>, %arg11: memref<32x32xbf16, #tpu.memory_space<vmem>>, %arg12: memref<1x32xf32, #tpu.memory_space<vmem>>, %arg13: memref<1x32xf32, #tpu.memory_space<vmem>>, %arg14: memref<1x32xf32, #tpu.memory_space<vmem>>, %arg15: memref<128x1xf32, #tpu.memory_space<vmem>>, %arg16: memref<6x2x128xbf16, #tpu.memory_space<vmem>>, %arg17: memref<1x256xf32, #tpu.memory_space<vmem>>, %arg18: memref<1x512xf32, #tpu.memory_space<vmem>>, %arg19: memref<1x1024xf32, #tpu.memory_space<vmem>>, %arg20: memref<1x64xf32, #tpu.memory_space<vmem>>, %arg21: memref<192x256xbf16, #tpu.memory_space<any>>, %arg22: memref<256x512xbf16, #tpu.memory_space<any>>, %arg23: memref<512x1024xbf16, #tpu.memory_space<any>>, %arg24: memref<1024x64xbf16, #tpu.memory_space<any>>, %arg25: memref<2x64xf32, #tpu.memory_space<vmem>>, %arg26: memref<192x256xbf16, #tpu.memory_space<vmem>>, %arg27: memref<256x512xbf16, #tpu.memory_space<vmem>>, %arg28: memref<512x1024xbf16, #tpu.memory_space<vmem>>, %arg29: memref<1024x64xbf16, #tpu.memory_space<vmem>>, %arg30: memref<4x!tpu.dma_semaphore, #tpu.memory_space<semaphore_mem>>) attributes {dimension_semantics = [], scalar_prefetch = 0 : i64, scratch_operands = 5 : i64, tpu.core_type = #tpu.core_type<tc>} {
    %c0_i32 = arith.constant 0 : i32
    %0 = tpu.memref_slice %arg30[%c0_i32] : memref<4x!tpu.dma_semaphore, #tpu.memory_space<semaphore_mem>> -> memref<1x!tpu.dma_semaphore, #tpu.memory_space<semaphore_mem>>
    %1 = tpu.memref_squeeze %0 : memref<1x!tpu.dma_semaphore, #tpu.memory_space<semaphore_mem>> -> memref<!tpu.dma_semaphore, #tpu.memory_space<semaphore_mem>>
    tpu.enqueue_dma source(%arg21 : memref<192x256xbf16, #tpu.memory_space<any>>) target(%arg26 : memref<192x256xbf16, #tpu.memory_space<vmem>>) target_semaphore(%1 : memref<!tpu.dma_semaphore, #tpu.memory_space<semaphore_mem>>)
    %c1_i32 = arith.constant 1 : i32
    %2 = tpu.memref_slice %arg30[%c1_i32] : memref<4x!tpu.dma_semaphore, #tpu.memory_space<semaphore_mem>> -> memref<1x!tpu.dma_semaphore, #tpu.memory_space<semaphore_mem>>
    %3 = tpu.memref_squeeze %2 : memref<1x!tpu.dma_semaphore, #tpu.memory_space<semaphore_mem>> -> memref<!tpu.dma_semaphore, #tpu.memory_space<semaphore_mem>>
    tpu.enqueue_dma source(%arg22 : memref<256x512xbf16, #tpu.memory_space<any>>) target(%arg27 : memref<256x512xbf16, #tpu.memory_space<vmem>>) target_semaphore(%3 : memref<!tpu.dma_semaphore, #tpu.memory_space<semaphore_mem>>)
    %c2_i32 = arith.constant 2 : i32
    %4 = tpu.memref_slice %arg30[%c2_i32] : memref<4x!tpu.dma_semaphore, #tpu.memory_space<semaphore_mem>> -> memref<1x!tpu.dma_semaphore, #tpu.memory_space<semaphore_mem>>
    %5 = tpu.memref_squeeze %4 : memref<1x!tpu.dma_semaphore, #tpu.memory_space<semaphore_mem>> -> memref<!tpu.dma_semaphore, #tpu.memory_space<semaphore_mem>>
    tpu.enqueue_dma source(%arg23 : memref<512x1024xbf16, #tpu.memory_space<any>>) target(%arg28 : memref<512x1024xbf16, #tpu.memory_space<vmem>>) target_semaphore(%5 : memref<!tpu.dma_semaphore, #tpu.memory_space<semaphore_mem>>)
    %c3_i32 = arith.constant 3 : i32
    %6 = tpu.memref_slice %arg30[%c3_i32] : memref<4x!tpu.dma_semaphore, #tpu.memory_space<semaphore_mem>> -> memref<1x!tpu.dma_semaphore, #tpu.memory_space<semaphore_mem>>
    %7 = tpu.memref_squeeze %6 : memref<1x!tpu.dma_semaphore, #tpu.memory_space<semaphore_mem>> -> memref<!tpu.dma_semaphore, #tpu.memory_space<semaphore_mem>>
    tpu.enqueue_dma source(%arg24 : memref<1024x64xbf16, #tpu.memory_space<any>>) target(%arg29 : memref<1024x64xbf16, #tpu.memory_space<vmem>>) target_semaphore(%7 : memref<!tpu.dma_semaphore, #tpu.memory_space<semaphore_mem>>)
    %c0 = arith.constant 0 : index
    %c0_0 = arith.constant 0 : index
    %8 = vector.load %arg0[%c0, %c0_0] : memref<128x1xf32, #tpu.memory_space<vmem>>, vector<128x1xf32>
    %c0_1 = arith.constant 0 : index
    %c0_2 = arith.constant 0 : index
    %9 = vector.load %arg1[%c0_1, %c0_2] : memref<2x4xbf16, #tpu.memory_space<vmem>>, vector<2x4xbf16>
    %c0_3 = arith.constant 0 : index
    %c0_4 = arith.constant 0 : index
    %10 = vector.load %arg2[%c0_3, %c0_4] : memref<1x4xf32, #tpu.memory_space<vmem>>, vector<1x4xf32>
    %c0_5 = arith.constant 0 : index
    %c0_6 = arith.constant 0 : index
    %11 = vector.load %arg3[%c0_5, %c0_6] : memref<1x4xf32, #tpu.memory_space<vmem>>, vector<1x4xf32>
    %c0_7 = arith.constant 0 : index
    %c0_8 = arith.constant 0 : index
    %12 = vector.load %arg4[%c0_7, %c0_8] : memref<1x4xf32, #tpu.memory_space<vmem>>, vector<1x4xf32>
    %c0_9 = arith.constant 0 : index
    %c0_10 = arith.constant 0 : index
    %13 = vector.load %arg5[%c0_9, %c0_10] : memref<128x1xf32, #tpu.memory_space<vmem>>, vector<128x1xf32>
    %14 = vector.extract_strided_slice %8 {offsets = [1, 0], sizes = [127, 1], strides = [1, 1]} : vector<128x1xf32> to vector<127x1xf32>
    %15 = vector.extract_strided_slice %8 {offsets = [0, 0], sizes = [1, 1], strides = [1, 1]} : vector<128x1xf32> to vector<1x1xf32>
    %16 = tpu.concatenate %14, %15 in 0 : vector<127x1xf32>, vector<1x1xf32> -> vector<128x1xf32>
    %17 = tpu.concatenate %8, %16 in 1 : vector<128x1xf32>, vector<128x1xf32> -> vector<128x2xf32>
    %18 = arith.truncf %17 : vector<128x2xf32> to vector<128x2xbf16>
    %cst = arith.constant dense<0.000000e+00> : vector<128x4xf32>
    %19 = tpu.matmul %18, %9, %cst {dimension_numbers = #tpu.dot_dimension_numbers<[1], [0], [0], [1], [0, 0, 1, 1], [], []>} : vector<128x2xbf16>, vector<2x4xbf16>, vector<128x4xf32> -> vector<128x4xf32>
    %20 = vector.broadcast %10 : vector<1x4xf32> to vector<128x4xf32>
    %21 = arith.addf %19, %20 : vector<128x4xf32>
    %22 = vector.broadcast %13 : vector<128x1xf32> to vector<128x4xf32>
    %23 = arith.mulf %21, %22 : vector<128x4xf32>
    %cst_11 = arith.constant dense<0.000000e+00> : vector<4xf32>
    %24 = vector.multi_reduction <add>, %23, %cst_11 [0] : vector<128x4xf32> to vector<4xf32>
    %25 = vector.shape_cast %24 : vector<4xf32> to vector<1x4xf32>
    %cst_12 = arith.constant 0.00847457629 : f32
    %26 = vector.broadcast %cst_12 : f32 to vector<1x4xf32>
    %27 = arith.mulf %25, %26 : vector<1x4xf32>
    %28 = arith.mulf %23, %21 : vector<128x4xf32>
    %cst_13 = arith.constant dense<0.000000e+00> : vector<4xf32>
    %29 = vector.multi_reduction <add>, %28, %cst_13 [0] : vector<128x4xf32> to vector<4xf32>
    %30 = vector.shape_cast %29 : vector<4xf32> to vector<1x4xf32>
    %cst_14 = arith.constant 0.00847457629 : f32
    %31 = vector.broadcast %cst_14 : f32 to vector<1x4xf32>
    %32 = arith.mulf %30, %31 : vector<1x4xf32>
    %33 = arith.mulf %27, %27 : vector<1x4xf32>
    %34 = arith.subf %32, %33 : vector<1x4xf32>
    %35 = vector.broadcast %27 : vector<1x4xf32> to vector<128x4xf32>
    %36 = arith.subf %21, %35 : vector<128x4xf32>
    %cst_15 = arith.constant 9.99999974E-6 : f32
    %37 = vector.broadcast %cst_15 : f32 to vector<1x4xf32>
    %38 = arith.addf %34, %37 : vector<1x4xf32>
    %39 = math.rsqrt %38 : vector<1x4xf32>
    %40 = vector.broadcast %39 : vector<1x4xf32> to vector<128x4xf32>
    %41 = arith.mulf %36, %40 : vector<128x4xf32>
    %42 = vector.broadcast %11 : vector<1x4xf32> to vector<128x4xf32>
    %43 = arith.mulf %41, %42 : vector<128x4xf32>
    %44 = vector.broadcast %12 : vector<1x4xf32> to vector<128x4xf32>
    %45 = arith.addf %43, %44 : vector<128x4xf32>
    %cst_16 = arith.constant 0.000000e+00 : f32
    %46 = vector.broadcast %cst_16 : f32 to vector<128x4xf32>
    %47 = arith.maximumf %45, %46 : vector<128x4xf32>
    %48 = vector.extract_strided_slice %47 {offsets = [1, 0], sizes = [127, 4], strides = [1, 1]} : vector<128x4xf32> to vector<127x4xf32>
    %49 = vector.extract_strided_slice %47 {offsets = [0, 0], sizes = [1, 4], strides = [1, 1]} : vector<128x4xf32> to vector<1x4xf32>
    %50 = tpu.concatenate %48, %49 in 0 : vector<127x4xf32>, vector<1x4xf32> -> vector<128x4xf32>
    %51 = arith.maximumf %47, %50 : vector<128x4xf32>
    %c0_17 = arith.constant 0 : index
    %c0_18 = arith.constant 0 : index
    %52 = vector.load %arg6[%c0_17, %c0_18] : memref<8x16xbf16, #tpu.memory_space<vmem>>, vector<8x16xbf16>
    %c0_19 = arith.constant 0 : index
    %c0_20 = arith.constant 0 : index
    %53 = vector.load %arg7[%c0_19, %c0_20] : memref<1x16xf32, #tpu.memory_space<vmem>>, vector<1x16xf32>
    %c0_21 = arith.constant 0 : index
    %c0_22 = arith.constant 0 : index
    %54 = vector.load %arg8[%c0_21, %c0_22] : memref<1x16xf32, #tpu.memory_space<vmem>>, vector<1x16xf32>
    %c0_23 = arith.constant 0 : index
    %c0_24 = arith.constant 0 : index
    %55 = vector.load %arg9[%c0_23, %c0_24] : memref<1x16xf32, #tpu.memory_space<vmem>>, vector<1x16xf32>
    %c0_25 = arith.constant 0 : index
    %c0_26 = arith.constant 0 : index
    %56 = vector.load %arg10[%c0_25, %c0_26] : memref<128x1xf32, #tpu.memory_space<vmem>>, vector<128x1xf32>
    %57 = vector.extract_strided_slice %51 {offsets = [2, 0], sizes = [126, 4], strides = [1, 1]} : vector<128x4xf32> to vector<126x4xf32>
    %58 = vector.extract_strided_slice %51 {offsets = [0, 0], sizes = [2, 4], strides = [1, 1]} : vector<128x4xf32> to vector<2x4xf32>
    %59 = tpu.concatenate %57, %58 in 0 : vector<126x4xf32>, vector<2x4xf32> -> vector<128x4xf32>
    %60 = tpu.concatenate %51, %59 in 1 : vector<128x4xf32>, vector<128x4xf32> -> vector<128x8xf32>
    %61 = arith.truncf %60 : vector<128x8xf32> to vector<128x8xbf16>
    %cst_27 = arith.constant dense<0.000000e+00> : vector<128x16xf32>
    %62 = tpu.matmul %61, %52, %cst_27 {dimension_numbers = #tpu.dot_dimension_numbers<[1], [0], [0], [1], [0, 0, 1, 1], [], []>} : vector<128x8xbf16>, vector<8x16xbf16>, vector<128x16xf32> -> vector<128x16xf32>
    %63 = vector.broadcast %53 : vector<1x16xf32> to vector<128x16xf32>
    %64 = arith.addf %62, %63 : vector<128x16xf32>
    %65 = vector.broadcast %56 : vector<128x1xf32> to vector<128x16xf32>
    %66 = arith.mulf %64, %65 : vector<128x16xf32>
    %cst_28 = arith.constant dense<0.000000e+00> : vector<16xf32>
    %67 = vector.multi_reduction <add>, %66, %cst_28 [0] : vector<128x16xf32> to vector<16xf32>
    %68 = vector.shape_cast %67 : vector<16xf32> to vector<1x16xf32>
    %cst_29 = arith.constant 0.0178571437 : f32
    %69 = vector.broadcast %cst_29 : f32 to vector<1x16xf32>
    %70 = arith.mulf %68, %69 : vector<1x16xf32>
    %71 = arith.mulf %66, %64 : vector<128x16xf32>
    %cst_30 = arith.constant dense<0.000000e+00> : vector<16xf32>
    %72 = vector.multi_reduction <add>, %71, %cst_30 [0] : vector<128x16xf32> to vector<16xf32>
    %73 = vector.shape_cast %72 : vector<16xf32> to vector<1x16xf32>
    %cst_31 = arith.constant 0.0178571437 : f32
    %74 = vector.broadcast %cst_31 : f32 to vector<1x16xf32>
    %75 = arith.mulf %73, %74 : vector<1x16xf32>
    %76 = arith.mulf %70, %70 : vector<1x16xf32>
    %77 = arith.subf %75, %76 : vector<1x16xf32>
    %78 = vector.broadcast %70 : vector<1x16xf32> to vector<128x16xf32>
    %79 = arith.subf %64, %78 : vector<128x16xf32>
    %cst_32 = arith.constant 9.99999974E-6 : f32
    %80 = vector.broadcast %cst_32 : f32 to vector<1x16xf32>
    %81 = arith.addf %77, %80 : vector<1x16xf32>
    %82 = math.rsqrt %81 : vector<1x16xf32>
    %83 = vector.broadcast %82 : vector<1x16xf32> to vector<128x16xf32>
    %84 = arith.mulf %79, %83 : vector<128x16xf32>
    %85 = vector.broadcast %54 : vector<1x16xf32> to vector<128x16xf32>
    %86 = arith.mulf %84, %85 : vector<128x16xf32>
    %87 = vector.broadcast %55 : vector<1x16xf32> to vector<128x16xf32>
    %88 = arith.addf %86, %87 : vector<128x16xf32>
    %cst_33 = arith.constant 0.000000e+00 : f32
    %89 = vector.broadcast %cst_33 : f32 to vector<128x16xf32>
    %90 = arith.maximumf %88, %89 : vector<128x16xf32>
    %91 = vector.extract_strided_slice %90 {offsets = [2, 0], sizes = [126, 16], strides = [1, 1]} : vector<128x16xf32> to vector<126x16xf32>
    %92 = vector.extract_strided_slice %90 {offsets = [0, 0], sizes = [2, 16], strides = [1, 1]} : vector<128x16xf32> to vector<2x16xf32>
    %93 = tpu.concatenate %91, %92 in 0 : vector<126x16xf32>, vector<2x16xf32> -> vector<128x16xf32>
    %94 = arith.maximumf %90, %93 : vector<128x16xf32>
    %c0_34 = arith.constant 0 : index
    %c0_35 = arith.constant 0 : index
    %95 = vector.load %arg11[%c0_34, %c0_35] : memref<32x32xbf16, #tpu.memory_space<vmem>>, vector<32x32xbf16>
    %c0_36 = arith.constant 0 : index
    %c0_37 = arith.constant 0 : index
    %96 = vector.load %arg12[%c0_36, %c0_37] : memref<1x32xf32, #tpu.memory_space<vmem>>, vector<1x32xf32>
    %c0_38 = arith.constant 0 : index
    %c0_39 = arith.constant 0 : index
    %97 = vector.load %arg13[%c0_38, %c0_39] : memref<1x32xf32, #tpu.memory_space<vmem>>, vector<1x32xf32>
    %c0_40 = arith.constant 0 : index
    %c0_41 = arith.constant 0 : index
    %98 = vector.load %arg14[%c0_40, %c0_41] : memref<1x32xf32, #tpu.memory_space<vmem>>, vector<1x32xf32>
    %c0_42 = arith.constant 0 : index
    %c0_43 = arith.constant 0 : index
    %99 = vector.load %arg15[%c0_42, %c0_43] : memref<128x1xf32, #tpu.memory_space<vmem>>, vector<128x1xf32>
    %100 = vector.extract_strided_slice %94 {offsets = [4, 0], sizes = [124, 16], strides = [1, 1]} : vector<128x16xf32> to vector<124x16xf32>
    %101 = vector.extract_strided_slice %94 {offsets = [0, 0], sizes = [4, 16], strides = [1, 1]} : vector<128x16xf32> to vector<4x16xf32>
    %102 = tpu.concatenate %100, %101 in 0 : vector<124x16xf32>, vector<4x16xf32> -> vector<128x16xf32>
    %103 = tpu.concatenate %94, %102 in 1 : vector<128x16xf32>, vector<128x16xf32> -> vector<128x32xf32>
    %104 = arith.truncf %103 : vector<128x32xf32> to vector<128x32xbf16>
    %cst_44 = arith.constant dense<0.000000e+00> : vector<128x32xf32>
    %105 = tpu.matmul %104, %95, %cst_44 {dimension_numbers = #tpu.dot_dimension_numbers<[1], [0], [0], [1], [0, 0, 1, 1], [], []>} : vector<128x32xbf16>, vector<32x32xbf16>, vector<128x32xf32> -> vector<128x32xf32>
    %106 = vector.broadcast %96 : vector<1x32xf32> to vector<128x32xf32>
    %107 = arith.addf %105, %106 : vector<128x32xf32>
    %108 = vector.broadcast %99 : vector<128x1xf32> to vector<128x32xf32>
    %109 = arith.mulf %107, %108 : vector<128x32xf32>
    %cst_45 = arith.constant dense<0.000000e+00> : vector<32xf32>
    %110 = vector.multi_reduction <add>, %109, %cst_45 [0] : vector<128x32xf32> to vector<32xf32>
    %111 = vector.shape_cast %110 : vector<32xf32> to vector<1x32xf32>
    %cst_46 = arith.constant 0.0384615399 : f32
    %112 = vector.broadcast %cst_46 : f32 to vector<1x32xf32>
    %113 = arith.mulf %111, %112 : vector<1x32xf32>
    %114 = arith.mulf %109, %107 : vector<128x32xf32>
    %cst_47 = arith.constant dense<0.000000e+00> : vector<32xf32>
    %115 = vector.multi_reduction <add>, %114, %cst_47 [0] : vector<128x32xf32> to vector<32xf32>
    %116 = vector.shape_cast %115 : vector<32xf32> to vector<1x32xf32>
    %cst_48 = arith.constant 0.0384615399 : f32
    %117 = vector.broadcast %cst_48 : f32 to vector<1x32xf32>
    %118 = arith.mulf %116, %117 : vector<1x32xf32>
    %119 = arith.mulf %113, %113 : vector<1x32xf32>
    %120 = arith.subf %118, %119 : vector<1x32xf32>
    %121 = vector.broadcast %113 : vector<1x32xf32> to vector<128x32xf32>
    %122 = arith.subf %107, %121 : vector<128x32xf32>
    %cst_49 = arith.constant 9.99999974E-6 : f32
    %123 = vector.broadcast %cst_49 : f32 to vector<1x32xf32>
    %124 = arith.addf %120, %123 : vector<1x32xf32>
    %125 = math.rsqrt %124 : vector<1x32xf32>
    %126 = vector.broadcast %125 : vector<1x32xf32> to vector<128x32xf32>
    %127 = arith.mulf %122, %126 : vector<128x32xf32>
    %128 = vector.broadcast %97 : vector<1x32xf32> to vector<128x32xf32>
    %129 = arith.mulf %127, %128 : vector<128x32xf32>
    %130 = vector.broadcast %98 : vector<1x32xf32> to vector<128x32xf32>
    %131 = arith.addf %129, %130 : vector<128x32xf32>
    %cst_50 = arith.constant 0.000000e+00 : f32
    %132 = vector.broadcast %cst_50 : f32 to vector<128x32xf32>
    %133 = arith.maximumf %131, %132 : vector<128x32xf32>
    %134 = vector.extract_strided_slice %133 {offsets = [4, 0], sizes = [124, 32], strides = [1, 1]} : vector<128x32xf32> to vector<124x32xf32>
    %135 = vector.extract_strided_slice %133 {offsets = [0, 0], sizes = [4, 32], strides = [1, 1]} : vector<128x32xf32> to vector<4x32xf32>
    %136 = tpu.concatenate %134, %135 in 0 : vector<124x32xf32>, vector<4x32xf32> -> vector<128x32xf32>
    %137 = arith.maximumf %133, %136 : vector<128x32xf32>
    %138 = arith.truncf %137 : vector<128x32xf32> to vector<128x32xbf16>
    %c0_51 = arith.constant 0 : index
    %c0_52 = arith.constant 0 : index
    %c0_53 = arith.constant 0 : index
    %139 = vector.load %arg16[%c0_51, %c0_52, %c0_53] : memref<6x2x128xbf16, #tpu.memory_space<vmem>>, vector<1x2x128xbf16>
    %140 = vector.shape_cast %139 : vector<1x2x128xbf16> to vector<2x128xbf16>
    %cst_54 = arith.constant dense<0.000000e+00> : vector<2x32xf32>
    %141 = tpu.matmul %140, %138, %cst_54 {dimension_numbers = #tpu.dot_dimension_numbers<[1], [0], [0], [1], [0, 0, 1, 1], [], []>} : vector<2x128xbf16>, vector<128x32xbf16>, vector<2x32xf32> -> vector<2x32xf32>
    %c1 = arith.constant 1 : index
    %c0_55 = arith.constant 0 : index
    %c0_56 = arith.constant 0 : index
    %142 = vector.load %arg16[%c1, %c0_55, %c0_56] : memref<6x2x128xbf16, #tpu.memory_space<vmem>>, vector<1x2x128xbf16>
    %143 = vector.shape_cast %142 : vector<1x2x128xbf16> to vector<2x128xbf16>
    %cst_57 = arith.constant dense<0.000000e+00> : vector<2x32xf32>
    %144 = tpu.matmul %143, %138, %cst_57 {dimension_numbers = #tpu.dot_dimension_numbers<[1], [0], [0], [1], [0, 0, 1, 1], [], []>} : vector<2x128xbf16>, vector<128x32xbf16>, vector<2x32xf32> -> vector<2x32xf32>
    %c2 = arith.constant 2 : index
    %c0_58 = arith.constant 0 : index
    %c0_59 = arith.constant 0 : index
    %145 = vector.load %arg16[%c2, %c0_58, %c0_59] : memref<6x2x128xbf16, #tpu.memory_space<vmem>>, vector<1x2x128xbf16>
    %146 = vector.shape_cast %145 : vector<1x2x128xbf16> to vector<2x128xbf16>
    %cst_60 = arith.constant dense<0.000000e+00> : vector<2x32xf32>
    %147 = tpu.matmul %146, %138, %cst_60 {dimension_numbers = #tpu.dot_dimension_numbers<[1], [0], [0], [1], [0, 0, 1, 1], [], []>} : vector<2x128xbf16>, vector<128x32xbf16>, vector<2x32xf32> -> vector<2x32xf32>
    %c3 = arith.constant 3 : index
    %c0_61 = arith.constant 0 : index
    %c0_62 = arith.constant 0 : index
    %148 = vector.load %arg16[%c3, %c0_61, %c0_62] : memref<6x2x128xbf16, #tpu.memory_space<vmem>>, vector<1x2x128xbf16>
    %149 = vector.shape_cast %148 : vector<1x2x128xbf16> to vector<2x128xbf16>
    %cst_63 = arith.constant dense<0.000000e+00> : vector<2x32xf32>
    %150 = tpu.matmul %149, %138, %cst_63 {dimension_numbers = #tpu.dot_dimension_numbers<[1], [0], [0], [1], [0, 0, 1, 1], [], []>} : vector<2x128xbf16>, vector<128x32xbf16>, vector<2x32xf32> -> vector<2x32xf32>
    %c4 = arith.constant 4 : index
    %c0_64 = arith.constant 0 : index
    %c0_65 = arith.constant 0 : index
    %151 = vector.load %arg16[%c4, %c0_64, %c0_65] : memref<6x2x128xbf16, #tpu.memory_space<vmem>>, vector<1x2x128xbf16>
    %152 = vector.shape_cast %151 : vector<1x2x128xbf16> to vector<2x128xbf16>
    %cst_66 = arith.constant dense<0.000000e+00> : vector<2x32xf32>
    %153 = tpu.matmul %152, %138, %cst_66 {dimension_numbers = #tpu.dot_dimension_numbers<[1], [0], [0], [1], [0, 0, 1, 1], [], []>} : vector<2x128xbf16>, vector<128x32xbf16>, vector<2x32xf32> -> vector<2x32xf32>
    %c5 = arith.constant 5 : index
    %c0_67 = arith.constant 0 : index
    %c0_68 = arith.constant 0 : index
    %154 = vector.load %arg16[%c5, %c0_67, %c0_68] : memref<6x2x128xbf16, #tpu.memory_space<vmem>>, vector<1x2x128xbf16>
    %155 = vector.shape_cast %154 : vector<1x2x128xbf16> to vector<2x128xbf16>
    %cst_69 = arith.constant dense<0.000000e+00> : vector<2x32xf32>
    %156 = tpu.matmul %155, %138, %cst_69 {dimension_numbers = #tpu.dot_dimension_numbers<[1], [0], [0], [1], [0, 0, 1, 1], [], []>} : vector<2x128xbf16>, vector<128x32xbf16>, vector<2x32xf32> -> vector<2x32xf32>
    %157 = tpu.concatenate %141, %144, %147, %150, %153, %156 in 1 : vector<2x32xf32>, vector<2x32xf32>, vector<2x32xf32>, vector<2x32xf32>, vector<2x32xf32>, vector<2x32xf32> -> vector<2x192xf32>
    %c0_i32_70 = arith.constant 0 : i32
    %158 = tpu.memref_slice %arg30[%c0_i32_70] : memref<4x!tpu.dma_semaphore, #tpu.memory_space<semaphore_mem>> -> memref<1x!tpu.dma_semaphore, #tpu.memory_space<semaphore_mem>>
    %159 = tpu.memref_squeeze %158 : memref<1x!tpu.dma_semaphore, #tpu.memory_space<semaphore_mem>> -> memref<!tpu.dma_semaphore, #tpu.memory_space<semaphore_mem>>
    tpu.wait_dma2 semaphore(%159 : memref<!tpu.dma_semaphore, #tpu.memory_space<semaphore_mem>>) src(%arg21 : memref<192x256xbf16, #tpu.memory_space<any>>) dst(%arg26 : memref<192x256xbf16, #tpu.memory_space<vmem>>)
    %160 = arith.truncf %157 : vector<2x192xf32> to vector<2x192xbf16>
    %c0_71 = arith.constant 0 : index
    %c0_72 = arith.constant 0 : index
    %161 = vector.load %arg26[%c0_71, %c0_72] : memref<192x256xbf16, #tpu.memory_space<vmem>>, vector<192x256xbf16>
    %cst_73 = arith.constant dense<0.000000e+00> : vector<2x256xf32>
    %162 = tpu.matmul %160, %161, %cst_73 {dimension_numbers = #tpu.dot_dimension_numbers<[1], [0], [0], [1], [0, 0, 1, 1], [], []>} : vector<2x192xbf16>, vector<192x256xbf16>, vector<2x256xf32> -> vector<2x256xf32>
    %c0_74 = arith.constant 0 : index
    %c0_75 = arith.constant 0 : index
    %163 = vector.load %arg17[%c0_74, %c0_75] : memref<1x256xf32, #tpu.memory_space<vmem>>, vector<1x256xf32>
    %164 = vector.broadcast %163 : vector<1x256xf32> to vector<2x256xf32>
    %165 = arith.addf %162, %164 : vector<2x256xf32>
    %cst_76 = arith.constant 0.000000e+00 : f32
    %166 = vector.broadcast %cst_76 : f32 to vector<2x256xf32>
    %167 = arith.maximumf %165, %166 : vector<2x256xf32>
    %c1_i32_77 = arith.constant 1 : i32
    %168 = tpu.memref_slice %arg30[%c1_i32_77] : memref<4x!tpu.dma_semaphore, #tpu.memory_space<semaphore_mem>> -> memref<1x!tpu.dma_semaphore, #tpu.memory_space<semaphore_mem>>
    %169 = tpu.memref_squeeze %168 : memref<1x!tpu.dma_semaphore, #tpu.memory_space<semaphore_mem>> -> memref<!tpu.dma_semaphore, #tpu.memory_space<semaphore_mem>>
    tpu.wait_dma2 semaphore(%169 : memref<!tpu.dma_semaphore, #tpu.memory_space<semaphore_mem>>) src(%arg22 : memref<256x512xbf16, #tpu.memory_space<any>>) dst(%arg27 : memref<256x512xbf16, #tpu.memory_space<vmem>>)
    %170 = arith.truncf %167 : vector<2x256xf32> to vector<2x256xbf16>
    %c0_78 = arith.constant 0 : index
    %c0_79 = arith.constant 0 : index
    %171 = vector.load %arg27[%c0_78, %c0_79] : memref<256x512xbf16, #tpu.memory_space<vmem>>, vector<256x512xbf16>
    %cst_80 = arith.constant dense<0.000000e+00> : vector<2x512xf32>
    %172 = tpu.matmul %170, %171, %cst_80 {dimension_numbers = #tpu.dot_dimension_numbers<[1], [0], [0], [1], [0, 0, 1, 1], [], []>} : vector<2x256xbf16>, vector<256x512xbf16>, vector<2x512xf32> -> vector<2x512xf32>
    %c0_81 = arith.constant 0 : index
    %c0_82 = arith.constant 0 : index
    %173 = vector.load %arg18[%c0_81, %c0_82] : memref<1x512xf32, #tpu.memory_space<vmem>>, vector<1x512xf32>
    %174 = vector.broadcast %173 : vector<1x512xf32> to vector<2x512xf32>
    %175 = arith.addf %172, %174 : vector<2x512xf32>
    %cst_83 = arith.constant 0.000000e+00 : f32
    %176 = vector.broadcast %cst_83 : f32 to vector<2x512xf32>
    %177 = arith.maximumf %175, %176 : vector<2x512xf32>
    %c2_i32_84 = arith.constant 2 : i32
    %178 = tpu.memref_slice %arg30[%c2_i32_84] : memref<4x!tpu.dma_semaphore, #tpu.memory_space<semaphore_mem>> -> memref<1x!tpu.dma_semaphore, #tpu.memory_space<semaphore_mem>>
    %179 = tpu.memref_squeeze %178 : memref<1x!tpu.dma_semaphore, #tpu.memory_space<semaphore_mem>> -> memref<!tpu.dma_semaphore, #tpu.memory_space<semaphore_mem>>
    tpu.wait_dma2 semaphore(%179 : memref<!tpu.dma_semaphore, #tpu.memory_space<semaphore_mem>>) src(%arg23 : memref<512x1024xbf16, #tpu.memory_space<any>>) dst(%arg28 : memref<512x1024xbf16, #tpu.memory_space<vmem>>)
    %180 = arith.truncf %177 : vector<2x512xf32> to vector<2x512xbf16>
    %c0_85 = arith.constant 0 : index
    %c0_86 = arith.constant 0 : index
    %181 = vector.load %arg28[%c0_85, %c0_86] : memref<512x1024xbf16, #tpu.memory_space<vmem>>, vector<512x1024xbf16>
    %cst_87 = arith.constant dense<0.000000e+00> : vector<2x1024xf32>
    %182 = tpu.matmul %180, %181, %cst_87 {dimension_numbers = #tpu.dot_dimension_numbers<[1], [0], [0], [1], [0, 0, 1, 1], [], []>} : vector<2x512xbf16>, vector<512x1024xbf16>, vector<2x1024xf32> -> vector<2x1024xf32>
    %c0_88 = arith.constant 0 : index
    %c0_89 = arith.constant 0 : index
    %183 = vector.load %arg19[%c0_88, %c0_89] : memref<1x1024xf32, #tpu.memory_space<vmem>>, vector<1x1024xf32>
    %184 = vector.broadcast %183 : vector<1x1024xf32> to vector<2x1024xf32>
    %185 = arith.addf %182, %184 : vector<2x1024xf32>
    %cst_90 = arith.constant 0.000000e+00 : f32
    %186 = vector.broadcast %cst_90 : f32 to vector<2x1024xf32>
    %187 = arith.maximumf %185, %186 : vector<2x1024xf32>
    %c3_i32_91 = arith.constant 3 : i32
    %188 = tpu.memref_slice %arg30[%c3_i32_91] : memref<4x!tpu.dma_semaphore, #tpu.memory_space<semaphore_mem>> -> memref<1x!tpu.dma_semaphore, #tpu.memory_space<semaphore_mem>>
    %189 = tpu.memref_squeeze %188 : memref<1x!tpu.dma_semaphore, #tpu.memory_space<semaphore_mem>> -> memref<!tpu.dma_semaphore, #tpu.memory_space<semaphore_mem>>
    tpu.wait_dma2 semaphore(%189 : memref<!tpu.dma_semaphore, #tpu.memory_space<semaphore_mem>>) src(%arg24 : memref<1024x64xbf16, #tpu.memory_space<any>>) dst(%arg29 : memref<1024x64xbf16, #tpu.memory_space<vmem>>)
    %190 = arith.truncf %187 : vector<2x1024xf32> to vector<2x1024xbf16>
    %c0_92 = arith.constant 0 : index
    %c0_93 = arith.constant 0 : index
    %191 = vector.load %arg29[%c0_92, %c0_93] : memref<1024x64xbf16, #tpu.memory_space<vmem>>, vector<1024x64xbf16>
    %cst_94 = arith.constant dense<0.000000e+00> : vector<2x64xf32>
    %192 = tpu.matmul %190, %191, %cst_94 {dimension_numbers = #tpu.dot_dimension_numbers<[1], [0], [0], [1], [0, 0, 1, 1], [], []>} : vector<2x1024xbf16>, vector<1024x64xbf16>, vector<2x64xf32> -> vector<2x64xf32>
    %c0_95 = arith.constant 0 : index
    %c0_96 = arith.constant 0 : index
    %193 = vector.load %arg20[%c0_95, %c0_96] : memref<1x64xf32, #tpu.memory_space<vmem>>, vector<1x64xf32>
    %194 = vector.broadcast %193 : vector<1x64xf32> to vector<2x64xf32>
    %195 = arith.addf %192, %194 : vector<2x64xf32>
    %c0_97 = arith.constant 0 : index
    %c0_98 = arith.constant 0 : index
    %196 = vector.load %arg25[%c0_97, %c0_98] : memref<2x64xf32, #tpu.memory_space<vmem>>, vector<2x64xf32>
    tpu.vector_store %arg25[%c0_97, %c0_98], %195 {strides = array<i32>} : memref<2x64xf32, #tpu.memory_space<vmem>>, vector<2x64xf32>,
    return
  }
}

</mosaic_0001>

<llo_original>
// kernel: tpu_custom_call.1
$region0: #{tpu_custom_call.1}
  #allocation0 [shape = 'u32[]', space=smem, size = 0x4, offset = 0x4, fixed_abs, tag = 'smem constant byte address 0x4 - core index']
  #allocation1 [shape = 'u32[72,128]{1,0:T(1,128)}', space=vmem, size = 0x9000, scoped, tag = 'internal scratch']
  %s0 = inlined_call_operand.vmem [shape: f32[128,1], index: 0, kind: input, shape index: {}]
  %s1 = inlined_call_operand.vmem [shape: f32[128,32], index: 1, kind: input, shape index: {}]
  %s2 = inlined_call_operand.vmem [shape: f32[128,1], index: 2, kind: output, shape index: {0}]
  %s3 = inlined_call_operand.vmem [shape: f32[128,32], index: 3, kind: output, shape index: {1}]
  %4 = xla_tuple %s2, %s3
  %s5 = sld [smem:[#allocation0]]
  $region26: #{tpu_custom_call.1} parent=0
    _
  %s7 = ssub.s32 1, %s5
  %s8 = scalar_select 0, %s7, %s5
  // Predicated region
  $region2: #{tpu_custom_call.1} parent=0 // pred_check
    _
  $region3: #{tpu_custom_call.1} parent=0 // pred_check_branch
    %10 = sbr.rel (0) target = $region5
  $region4: #{tpu_custom_call.1} parent=0 // pred_region
    _
  $region5: #{tpu_custom_call.1} parent=0 // pred_fallthru
    _
  // Predicated region
  $region6: #{tpu_custom_call.1} parent=0 // pred_check
    _
  $region7: #{tpu_custom_call.1} parent=0 // pred_check_branch
    %12 = sbr.rel (0) target = $region9
  $region8: #{tpu_custom_call.1} parent=0 // pred_region
    _
  $region9: #{tpu_custom_call.1} parent=0 // pred_fallthru
    _
  %v13 = vld [vmem:[%s0] sm:$0xff]
  %v14 = vld [vmem:[%s0 + $0x8] sm:$0xff]
  %v15 = vld [vmem:[%s0 + $0x10] sm:$0xff]
  %v16 = vld [vmem:[%s0 + $0x18] sm:$0xff]
  %v17 = vld [vmem:[%s0 + $0x20] sm:$0xff]
  %v18 = vld [vmem:[%s0 + $0x28] sm:$0xff]
  %v19 = vld [vmem:[%s0 + $0x30] sm:$0xff]
  %v20 = vld [vmem:[%s0 + $0x38] sm:$0xff]
  %v21 = vld [vmem:[%s0 + $0x40] sm:$0xff]
  %v22 = vld [vmem:[%s0 + $0x48] sm:$0xff]
  %v23 = vld [vmem:[%s0 + $0x50] sm:$0xff]
  %v24 = vld [vmem:[%s0 + $0x58] sm:$0xff]
  %v25 = vld [vmem:[%s0 + $0x60] sm:$0xff]
  %v26 = vld [vmem:[%s0 + $0x68] sm:$0xff]
  %v27 = vld [vmem:[%s0 + $0x70] sm:$0xff]
  %v28 = vld [vmem:[%s0 + $0x78] sm:$0xff]
  %v29 = vrot.slane %v13, 1
  %v30 = vrot.slane %v14, 1
  %v31 = vrot.slane %v15, 1
  %v32 = vrot.slane %v16, 1
  %v33 = vrot.slane %v17, 1
  %v34 = vrot.slane %v18, 1
  %v35 = vrot.slane %v19, 1
  %v36 = vrot.slane %v20, 1
  %v37 = vrot.slane %v21, 1
  %v38 = vrot.slane %v22, 1
  %v39 = vrot.slane %v23, 1
  %v40 = vrot.slane %v24, 1
  %v41 = vrot.slane %v25, 1
  %v42 = vrot.slane %v26, 1
  %v43 = vrot.slane %v27, 1
  %v44 = vrot.slane %v28, 1
  %v45 = vlaneseq
  %v46 = vshrl.u32 %v45, 7
  %vm47 = vcmp.lt.s32.totalorder %v46, 7
  %v48 = vsel %vm47, %v43, %v44
  %v49 = vsel %vm47, %v42, %v43
  %v50 = vsel %vm47, %v41, %v42
  %v51 = vsel %vm47, %v40, %v41
  %v52 = vsel %vm47, %v39, %v40
  %v53 = vsel %vm47, %v38, %v39
  %v54 = vsel %vm47, %v37, %v38
  %v55 = vsel %vm47, %v36, %v37
  %v56 = vsel %vm47, %v35, %v36
  %v57 = vsel %vm47, %v34, %v35
  %v58 = vsel %vm47, %v33, %v34
  %v59 = vsel %vm47, %v32, %v33
  %v60 = vsel %vm47, %v31, %v32
  %v61 = vsel %vm47, %v30, %v31
  %v62 = vsel %vm47, %v29, %v30
  %v63 = vsel %vm47, %v44, %v29
  %vm64 = vcmask 7168
  %65 = vst.msk [vmem:[%s2] sm:$0xff] %vm64, %v62
  %66 = vst.msk [vmem:[%s2 + $0x8] sm:$0xff] %vm64, %v61
  %67 = vst.msk [vmem:[%s2 + $0x10] sm:$0xff] %vm64, %v60
  %68 = vst.msk [vmem:[%s2 + $0x18] sm:$0xff] %vm64, %v59
  %69 = vst.msk [vmem:[%s2 + $0x20] sm:$0xff] %vm64, %v58
  %70 = vst.msk [vmem:[%s2 + $0x28] sm:$0xff] %vm64, %v57
  %71 = vst.msk [vmem:[%s2 + $0x30] sm:$0xff] %vm64, %v56
  %72 = vst.msk [vmem:[%s2 + $0x38] sm:$0xff] %vm64, %v55
  %73 = vst.msk [vmem:[%s2 + $0x40] sm:$0xff] %vm64, %v54
  %74 = vst.msk [vmem:[%s2 + $0x48] sm:$0xff] %vm64, %v53
  %75 = vst.msk [vmem:[%s2 + $0x50] sm:$0xff] %vm64, %v52
  %76 = vst.msk [vmem:[%s2 + $0x58] sm:$0xff] %vm64, %v51
  %77 = vst.msk [vmem:[%s2 + $0x60] sm:$0xff] %vm64, %v50
  %78 = vst.msk [vmem:[%s2 + $0x68] sm:$0xff] %vm64, %v49
  %79 = vst.msk [vmem:[%s2 + $0x70] sm:$0xff] %vm64, %v48
  %80 = vst.msk [vmem:[%s2 + $0x78] sm:$0xff] %vm64, %v63
  %v81 = vld [vmem:[%s1] sm:$0xff]
  %v82 = vld [vmem:[%s1 + $0x8] sm:$0xff]
  %v83 = vld [vmem:[%s1 + $0x10] sm:$0xff]
  %v84 = vld [vmem:[%s1 + $0x18] sm:$0xff]
  %v85 = vld [vmem:[%s1 + $0x20] sm:$0xff]
  %v86 = vld [vmem:[%s1 + $0x28] sm:$0xff]
  %v87 = vld [vmem:[%s1 + $0x30] sm:$0xff]
  %v88 = vld [vmem:[%s1 + $0x38] sm:$0xff]
  %v89 = vld [vmem:[%s1 + $0x40] sm:$0xff]
  %v90 = vld [vmem:[%s1 + $0x48] sm:$0xff]
  %v91 = vld [vmem:[%s1 + $0x50] sm:$0xff]
  %v92 = vld [vmem:[%s1 + $0x58] sm:$0xff]
  %v93 = vld [vmem:[%s1 + $0x60] sm:$0xff]
  %v94 = vld [vmem:[%s1 + $0x68] sm:$0xff]
  %v95 = vld [vmem:[%s1 + $0x70] sm:$0xff]
  %v96 = vld [vmem:[%s1 + $0x78] sm:$0xff]
  %v97 = vrot.slane %v81, 4
  %v98 = vrot.slane %v82, 4
  %v99 = vrot.slane %v83, 4
  %v100 = vrot.slane %v84, 4
  %v101 = vrot.slane %v85, 4
  %v102 = vrot.slane %v86, 4
  %v103 = vrot.slane %v87, 4
  %v104 = vrot.slane %v88, 4
  %v105 = vrot.slane %v89, 4
  %v106 = vrot.slane %v90, 4
  %v107 = vrot.slane %v91, 4
  %v108 = vrot.slane %v92, 4
  %v109 = vrot.slane %v93, 4
  %v110 = vrot.slane %v94, 4
  %v111 = vrot.slane %v95, 4
  %v112 = vrot.slane %v96, 4
  %vm113 = vcmp.lt.s32.totalorder %v46, 4
  %v114 = vsel %vm113, %v111, %v112
  %v115 = vsel %vm113, %v110, %v111
  %v116 = vsel %vm113, %v109, %v110
  %v117 = vsel %vm113, %v108, %v109
  %v118 = vsel %vm113, %v107, %v108
  %v119 = vsel %vm113, %v106, %v107
  %v120 = vsel %vm113, %v105, %v106
  %v121 = vsel %vm113, %v104, %v105
  %v122 = vsel %vm113, %v103, %v104
  %v123 = vsel %vm113, %v102, %v103
  %v124 = vsel %vm113, %v101, %v102
  %v125 = vsel %vm113, %v100, %v101
  %v126 = vsel %vm113, %v99, %v100
  %v127 = vsel %vm113, %v98, %v99
  %v128 = vsel %vm113, %v97, %v98
  %v129 = vsel %vm113, %v112, %v97
  %vm130 = vcmask 261120
  %131 = vst.msk [vmem:[%s3] sm:$0xff] %vm130, %v128
  %132 = vst.msk [vmem:[%s3 + $0x8] sm:$0xff] %vm130, %v127
  %133 = vst.msk [vmem:[%s3 + $0x10] sm:$0xff] %vm130, %v126
  %134 = vst.msk [vmem:[%s3 + $0x18] sm:$0xff] %vm130, %v125
  %135 = vst.msk [vmem:[%s3 + $0x20] sm:$0xff] %vm130, %v124
  %136 = vst.msk [vmem:[%s3 + $0x28] sm:$0xff] %vm130, %v123
  %137 = vst.msk [vmem:[%s3 + $0x30] sm:$0xff] %vm130, %v122
  %138 = vst.msk [vmem:[%s3 + $0x38] sm:$0xff] %vm130, %v121
  %139 = vst.msk [vmem:[%s3 + $0x40] sm:$0xff] %vm130, %v120
  %140 = vst.msk [vmem:[%s3 + $0x48] sm:$0xff] %vm130, %v119
  %141 = vst.msk [vmem:[%s3 + $0x50] sm:$0xff] %vm130, %v118
  %142 = vst.msk [vmem:[%s3 + $0x58] sm:$0xff] %vm130, %v117
  %143 = vst.msk [vmem:[%s3 + $0x60] sm:$0xff] %vm130, %v116
  %144 = vst.msk [vmem:[%s3 + $0x68] sm:$0xff] %vm130, %v115
  %145 = vst.msk [vmem:[%s3 + $0x70] sm:$0xff] %vm130, %v114
  %146 = vst.msk [vmem:[%s3 + $0x78] sm:$0xff] %vm130, %v129
  // Predicated region
  $region10: #{tpu_custom_call.1} parent=0 // pred_check
    _
  $region11: #{tpu_custom_call.1} parent=0 // pred_check_branch
    %148 = sbr.rel (0) target = $region13
  $region12: #{tpu_custom_call.1} parent=0 // pred_region
    _
  $region13: #{tpu_custom_call.1} parent=0 // pred_fallthru
    _
  // Predicated region
  $region14: #{tpu_custom_call.1} parent=0 // pred_check
    _
  $region15: #{tpu_custom_call.1} parent=0 // pred_check_branch
    %150 = sbr.rel (0) target = $region17
  $region16: #{tpu_custom_call.1} parent=0 // pred_region
    _
  $region17: #{tpu_custom_call.1} parent=0 // pred_fallthru
    _
  // Predicated region
  $region18: #{tpu_custom_call.1} parent=0 // pred_check
    _
  $region19: #{tpu_custom_call.1} parent=0 // pred_check_branch
    %152 = sbr.rel (0) target = $region21
  $region20: #{tpu_custom_call.1} parent=0 // pred_region
    _
  $region21: #{tpu_custom_call.1} parent=0 // pred_fallthru
    _
  // Predicated region
  $region22: #{tpu_custom_call.1} parent=0 // pred_check
    _
  $region23: #{tpu_custom_call.1} parent=0 // pred_check_branch
    %154 = sbr.rel (0) target = $region25
  $region24: #{tpu_custom_call.1} parent=0 // pred_region
    _
  $region25: #{tpu_custom_call.1} parent=0 // pred_fallthru
    _

// kernel: tpu_custom_call.1
$region0: #{tpu_custom_call.1}
  #allocation0 [shape = 'u32[]', space=smem, size = 0x4, offset = 0x4, fixed_abs, tag = 'smem constant byte address 0x4 - core index']
  #allocation1 [shape = 'u32[72,128]{1,0:T(1,128)}', space=vmem, size = 0x9000, scoped, tag = 'internal scratch']
  #allocation2 [shape = 'bf16[192,256]{1,0:T(8,128)(2,1)}', space=vmem, size = 0x18000, scoped, tag = 'scratch operand']
  #allocation3 [shape = 'bf16[256,512]{1,0:T(8,128)(2,1)}', space=vmem, size = 0x40000, scoped, tag = 'scratch operand']
  #allocation4 [shape = 'bf16[512,1024]{1,0:T(8,128)(2,1)}', space=vmem, size = 0x100000, scoped, tag = 'scratch operand']
  #allocation5 [shape = 'bf16[1024,64]{1,0:T(8,128)(2,1)}', space=vmem, size = 0x40000, scoped, tag = 'scratch operand']
  #allocation6 [shape = 's32[4]{0}', space=sflag, size = 0x10, scoped, tag = 'scratch operand']
  #allocation9 [shape = 's32[]', space=sflag, size = 0x4, offset = 0, fixed_abs, tag = 'sflag constant byte address 0x0 - dummy sync flag']
  #allocation10 [shape = 's32[]', space=sflag, size = 0x4, offset = 0, fixed_abs, tag = 'sflag constant byte address 0x0 - dummy sync flag']
  #allocation11 [shape = 's32[]', space=sflag, size = 0x4, offset = 0, fixed_abs, tag = 'sflag constant byte address 0x0 - dummy sync flag']
  #allocation12 [shape = 's32[]', space=sflag, size = 0x4, offset = 0, fixed_abs, tag = 'sflag constant byte address 0x0 - dummy sync flag']
  #allocation13 [shape = 'u32[]', space=smem, size = 0x4, offset = 0x44, fixed_abs, tag = 'smem constant byte address 0x44 - assertion arg 0']
  #allocation14 [shape = 'u32[]', space=smem, size = 0x4, offset = 0x48, fixed_abs, tag = 'smem constant byte address 0x48 - assertion arg 1']
  #allocation15 [shape = 's32[]', space=sflag, size = 0x4, offset = 0, fixed_abs, tag = 'sflag constant byte address 0x0 - dummy sync flag']
  %s0 = inlined_call_operand.vmem [shape: f32[128,1], index: 0, kind: input, shape index: {}]
  %s1 = inlined_call_operand.vmem [shape: bf16[2,4], index: 1, kind: input, shape index: {}]
  %s2 = inlined_call_operand.vmem [shape: f32[1,4], index: 2, kind: input, shape index: {}]
  %s3 = inlined_call_operand.vmem [shape: f32[1,4], index: 3, kind: input, shape index: {}]
  %s4 = inlined_call_operand.vmem [shape: f32[1,4], index: 4, kind: input, shape index: {}]
  %s5 = inlined_call_operand.vmem [shape: f32[128,1], index: 5, kind: input, shape index: {}]
  %s6 = inlined_call_operand.vmem [shape: bf16[8,16], index: 6, kind: input, shape index: {}]
  %s7 = inlined_call_operand.vmem [shape: f32[1,16], index: 7, kind: input, shape index: {}]
  %s8 = inlined_call_operand.vmem [shape: f32[1,16], index: 8, kind: input, shape index: {}]
  %s9 = inlined_call_operand.vmem [shape: f32[1,16], index: 9, kind: input, shape index: {}]
  %s10 = inlined_call_operand.vmem [shape: f32[128,1], index: 10, kind: input, shape index: {}]
  %s11 = inlined_call_operand.vmem [shape: bf16[32,32], index: 11, kind: input, shape index: {}]
  %s12 = inlined_call_operand.vmem [shape: f32[1,32], index: 12, kind: input, shape index: {}]
  %s13 = inlined_call_operand.vmem [shape: f32[1,32], index: 13, kind: input, shape index: {}]
  %s14 = inlined_call_operand.vmem [shape: f32[1,32], index: 14, kind: input, shape index: {}]
  %s15 = inlined_call_operand.vmem [shape: f32[128,1], index: 15, kind: input, shape index: {}]
  %s16 = inlined_call_operand.vmem [shape: bf16[6,2,128], index: 16, kind: input, shape index: {}]
  %s17 = inlined_call_operand.vmem [shape: f32[1,256], index: 17, kind: input, shape index: {}]
  %s18 = inlined_call_operand.vmem [shape: f32[1,512], index: 18, kind: input, shape index: {}]
  %s19 = inlined_call_operand.vmem [shape: f32[1,1024], index: 19, kind: input, shape index: {}]
  %s20 = inlined_call_operand.vmem [shape: f32[1,64], index: 20, kind: input, shape index: {}]
  %s21 = inlined_call_operand.vmem [shape: bf16[192,256], index: 21, kind: input, shape index: {}]
  %s22 = inlined_call_operand.vmem [shape: bf16[256,512], index: 22, kind: input, shape index: {}]
  %s23 = inlined_call_operand.hbm [shape: bf16[512,1024], index: 23, kind: input, shape index: {}]
  %s24 = inlined_call_operand.vmem [shape: bf16[1024,64], index: 24, kind: input, shape index: {}]
  %s25 = inlined_call_operand.hbm [shape: f32[2,64], index: 25, kind: output, shape index: {}]
  %s26 = sld [smem:[#allocation0]]
  $region155: #{tpu_custom_call.1} parent=0
    _
  %s28 = ssub.s32 1, %s26
  %s29 = scalar_select 0, %s28, %s26
  $region1: #{tpu_custom_call.1} parent=0
    #allocation7 [shape = 'u8[1024]{0}', space=vmem, size = 0x400, scoped, tag = 'output window, operand 0, single buffered']
    #allocation8 [shape = 's32[1]{0}', space=sflag, size = 0x4, scoped, tag = 'scoped memory for tpu_custom_call.1']
    %30 = vsyncpa [#allocation8], 0
    // Predicated region
    $region2: #{tpu_custom_call.1} parent=1 // pred_check
      _
    $region3: #{tpu_custom_call.1} parent=1 // pred_check_branch
      %32 = sbr.rel (0) target = $region5
    $region4: #{tpu_custom_call.1} parent=1 // pred_region
      _
    $region5: #{tpu_custom_call.1} parent=1 // pred_fallthru
      _
    // Predicated region
    $region6: #{tpu_custom_call.1} parent=1 // pred_check
      _
    $region7: #{tpu_custom_call.1} parent=1 // pred_check_branch
      %34 = sbr.rel (0) target = $region9
    $region8: #{tpu_custom_call.1} parent=1 // pred_region
      _
    $region9: #{tpu_custom_call.1} parent=1 // pred_fallthru
      _
    // Predicated region
    $region10: #{tpu_custom_call.1} parent=1 // pred_check
      _
    $region11: #{tpu_custom_call.1} parent=1 // pred_check_branch
      %36 = sbr.rel (0) target = $region13
    $region12: #{tpu_custom_call.1} parent=1 // pred_region
      _
    $region13: #{tpu_custom_call.1} parent=1 // pred_fallthru
      _
    // Predicated region
    $region14: #{tpu_custom_call.1} parent=1 // pred_check
      _
    $region15: #{tpu_custom_call.1} parent=1 // pred_check_branch
      %38 = sbr.rel (0) target = $region17
    $region16: #{tpu_custom_call.1} parent=1 // pred_region
      _
    $region17: #{tpu_custom_call.1} parent=1 // pred_fallthru
      _
    // Predicated region
    $region18: #{tpu_custom_call.1} parent=1 // pred_check
      _
    $region19: #{tpu_custom_call.1} parent=1 // pred_check_branch
      %40 = sbr.rel (0) target = $region21
    $region20: #{tpu_custom_call.1} parent=1 // pred_region
      _
    $region21: #{tpu_custom_call.1} parent=1 // pred_fallthru
      _
    // Predicated region
    $region22: #{tpu_custom_call.1} parent=1 // pred_check
      _
    $region23: #{tpu_custom_call.1} parent=1 // pred_check_branch
      %42 = sbr.rel (0) target = $region25
    $region24: #{tpu_custom_call.1} parent=1 // pred_region
      _
    $region25: #{tpu_custom_call.1} parent=1 // pred_fallthru
      _
    // Predicated region
    $region26: #{tpu_custom_call.1} parent=1 // pred_check
      _
    $region27: #{tpu_custom_call.1} parent=1 // pred_check_branch
      %44 = sbr.rel (0) target = $region29
    $region28: #{tpu_custom_call.1} parent=1 // pred_region
      _
    $region29: #{tpu_custom_call.1} parent=1 // pred_fallthru
      _
    // Predicated region
    $region30: #{tpu_custom_call.1} parent=1 // pred_check
      _
    $region31: #{tpu_custom_call.1} parent=1 // pred_check_branch
      %46 = sbr.rel (0) target = $region33
    $region32: #{tpu_custom_call.1} parent=1 // pred_region
      _
    $region33: #{tpu_custom_call.1} parent=1 // pred_fallthru
      _
    // Predicated region
    $region34: #{tpu_custom_call.1} parent=1 // pred_check
      _
    $region35: #{tpu_custom_call.1} parent=1 // pred_check_branch
      %48 = sbr.rel (0) target = $region37
    $region36: #{tpu_custom_call.1} parent=1 // pred_region
      _
    $region37: #{tpu_custom_call.1} parent=1 // pred_fallthru
      _
    // Predicated region
    $region38: #{tpu_custom_call.1} parent=1 // pred_check
      _
    $region39: #{tpu_custom_call.1} parent=1 // pred_check_branch
      %50 = sbr.rel (0) target = $region41
    $region40: #{tpu_custom_call.1} parent=1 // pred_region
      _
    $region41: #{tpu_custom_call.1} parent=1 // pred_fallthru
      _
    // Predicated region
    $region42: #{tpu_custom_call.1} parent=1 // pred_check
      _
    $region43: #{tpu_custom_call.1} parent=1 // pred_check_branch
      %52 = sbr.rel (0) target = $region45
    $region44: #{tpu_custom_call.1} parent=1 // pred_region
      _
    $region45: #{tpu_custom_call.1} parent=1 // pred_fallthru
      _
    // Predicated region
    $region46: #{tpu_custom_call.1} parent=1 // pred_check
      _
    $region47: #{tpu_custom_call.1} parent=1 // pred_check_branch
      %54 = sbr.rel (0) target = $region49
    $region48: #{tpu_custom_call.1} parent=1 // pred_region
      _
    $region49: #{tpu_custom_call.1} parent=1 // pred_fallthru
      _
    // Predicated region
    $region50: #{tpu_custom_call.1} parent=1 // pred_check
      _
    $region51: #{tpu_custom_call.1} parent=1 // pred_check_branch
      %56 = sbr.rel (0) target = $region53
    $region52: #{tpu_custom_call.1} parent=1 // pred_region
      _
    $region53: #{tpu_custom_call.1} parent=1 // pred_fallthru
      _
    // Predicated region
    $region54: #{tpu_custom_call.1} parent=1 // pred_check
      _
    $region55: #{tpu_custom_call.1} parent=1 // pred_check_branch
      %58 = sbr.rel (0) target = $region57
    $region56: #{tpu_custom_call.1} parent=1 // pred_region
      _
    $region57: #{tpu_custom_call.1} parent=1 // pred_fallthru
      _
    // Predicated region
    $region58: #{tpu_custom_call.1} parent=1 // pred_check
      _
    $region59: #{tpu_custom_call.1} parent=1 // pred_check_branch
      %60 = sbr.rel (0) target = $region61
    $region60: #{tpu_custom_call.1} parent=1 // pred_region
      _
    $region61: #{tpu_custom_call.1} parent=1 // pred_fallthru
      _
    // Predicated region
    $region62: #{tpu_custom_call.1} parent=1 // pred_check
      _
    $region63: #{tpu_custom_call.1} parent=1 // pred_check_branch
      %62 = sbr.rel (0) target = $region65
    $region64: #{tpu_custom_call.1} parent=1 // pred_region
      _
    $region65: #{tpu_custom_call.1} parent=1 // pred_fallthru
      _
    // Predicated region
    $region66: #{tpu_custom_call.1} parent=1 // pred_check
      _
    $region67: #{tpu_custom_call.1} parent=1 // pred_check_branch
      %64 = sbr.rel (0) target = $region69
    $region68: #{tpu_custom_call.1} parent=1 // pred_region
      _
    $region69: #{tpu_custom_call.1} parent=1 // pred_fallthru
      _
    // Predicated region
    $region70: #{tpu_custom_call.1} parent=1 // pred_check
      _
    $region71: #{tpu_custom_call.1} parent=1 // pred_check_branch
      %66 = sbr.rel (0) target = $region73
    $region72: #{tpu_custom_call.1} parent=1 // pred_region
      _
    $region73: #{tpu_custom_call.1} parent=1 // pred_fallthru
      _
    // Predicated region
    $region74: #{tpu_custom_call.1} parent=1 // pred_check
      _
    $region75: #{tpu_custom_call.1} parent=1 // pred_check_branch
      %68 = sbr.rel (0) target = $region77
    $region76: #{tpu_custom_call.1} parent=1 // pred_region
      _
    $region77: #{tpu_custom_call.1} parent=1 // pred_fallthru
      _
    // Predicated region
    $region78: #{tpu_custom_call.1} parent=1 // pred_check
      _
    $region79: #{tpu_custom_call.1} parent=1 // pred_check_branch
      %70 = sbr.rel (0) target = $region81
    $region80: #{tpu_custom_call.1} parent=1 // pred_region
      _
    $region81: #{tpu_custom_call.1} parent=1 // pred_fallthru
      _
    // Predicated region
    $region82: #{tpu_custom_call.1} parent=1 // pred_check
      _
    $region83: #{tpu_custom_call.1} parent=1 // pred_check_branch
      %72 = sbr.rel (0) target = $region85
    $region84: #{tpu_custom_call.1} parent=1 // pred_region
      _
    $region85: #{tpu_custom_call.1} parent=1 // pred_fallthru
      _
    // Predicated region
    $region86: #{tpu_custom_call.1} parent=1 // pred_check
      _
    $region87: #{tpu_custom_call.1} parent=1 // pred_check_branch
      %75 = sbr.rel (0) target = $region89
    $region88: #{tpu_custom_call.1} parent=1 // pred_region
      loop: start=0, step=1, limit=1
      $region90: #{tpu_custom_call.1} parent=88 // loop_pre_header
        _
      $region91: #{tpu_custom_call.1} parent=88 // loop_header
        %s77 = sphi 0, %s81
        %p78 = scmp.ge.s32.totalorder %s77, 1
        %s82 = sphi %s21, %s21
        %s83 = sphi [#allocation2], [#allocation2]
      $region92: #{tpu_custom_call.1} parent=88 // loop_header_branch
        %80 = sbr.rel (%p78) target = $region96
      $region93: #{tpu_custom_call.1} parent=88 // loop_body
        %v84 = vld [vmem:[%s82] sm:$0xff]
        %85 = vst [vmem:[%s83] sm:$0xff] %v84
        %v86 = vld [vmem:[%s82 + $0x8] sm:$0xff]
        %87 = vst [vmem:[%s83 + $0x8] sm:$0xff] %v86
        %v88 = vld [vmem:[%s82 + $0x10] sm:$0xff]
        %89 = vst [vmem:[%s83 + $0x10] sm:$0xff] %v88
        %v90 = vld [vmem:[%s82 + $0x18] sm:$0xff]
        %91 = vst [vmem:[%s83 + $0x18] sm:$0xff] %v90
        %v92 = vld [vmem:[%s82 + $0x20] sm:$0xff]
        %93 = vst [vmem:[%s83 + $0x20] sm:$0xff] %v92
        %v94 = vld [vmem:[%s82 + $0x28] sm:$0xff]
        %95 = vst [vmem:[%s83 + $0x28] sm:$0xff] %v94
        %v96 = vld [vmem:[%s82 + $0x30] sm:$0xff]
        %97 = vst [vmem:[%s83 + $0x30] sm:$0xff] %v96
        %v98 = vld [vmem:[%s82 + $0x38] sm:$0xff]
        %99 = vst [vmem:[%s83 + $0x38] sm:$0xff] %v98
        %v100 = vld [vmem:[%s82 + $0x40] sm:$0xff]
        %101 = vst [vmem:[%s83 + $0x40] sm:$0xff] %v100
        %v102 = vld [vmem:[%s82 + $0x48] sm:$0xff]
        %103 = vst [vmem:[%s83 + $0x48] sm:$0xff] %v102
        %v104 = vld [vmem:[%s82 + $0x50] sm:$0xff]
        %105 = vst [vmem:[%s83 + $0x50] sm:$0xff] %v104
        %v106 = vld [vmem:[%s82 + $0x58] sm:$0xff]
        %107 = vst [vmem:[%s83 + $0x58] sm:$0xff] %v106
        %v108 = vld [vmem:[%s82 + $0x60] sm:$0xff]
        %109 = vst [vmem:[%s83 + $0x60] sm:$0xff] %v108
        %v110 = vld [vmem:[%s82 + $0x68] sm:$0xff]
        %111 = vst [vmem:[%s83 + $0x68] sm:$0xff] %v110
        %v112 = vld [vmem:[%s82 + $0x70] sm:$0xff]
        %113 = vst [vmem:[%s83 + $0x70] sm:$0xff] %v112
        %v114 = vld [vmem:[%s82 + $0x78] sm:$0xff]
        %115 = vst [vmem:[%s83 + $0x78] sm:$0xff] %v114
        %v116 = vld [vmem:[%s82 + $0x80] sm:$0xff]
        %117 = vst [vmem:[%s83 + $0x80] sm:$0xff] %v116
        %v118 = vld [vmem:[%s82 + $0x88] sm:$0xff]
        %119 = vst [vmem:[%s83 + $0x88] sm:$0xff] %v118
        %v120 = vld [vmem:[%s82 + $0x90] sm:$0xff]
        %121 = vst [vmem:[%s83 + $0x90] sm:$0xff] %v120
        %v122 = vld [vmem:[%s82 + $0x98] sm:$0xff]
        %123 = vst [vmem:[%s83 + $0x98] sm:$0xff] %v122
        %v124 = vld [vmem:[%s82 + $0xa0] sm:$0xff]
        %125 = vst [vmem:[%s83 + $0xa0] sm:$0xff] %v124
        %v126 = vld [vmem:[%s82 + $0xa8] sm:$0xff]
        %127 = vst [vmem:[%s83 + $0xa8] sm:$0xff] %v126
        %v128 = vld [vmem:[%s82 + $0xb0] sm:$0xff]
        %129 = vst [vmem:[%s83 + $0xb0] sm:$0xff] %v128
        %v130 = vld [vmem:[%s82 + $0xb8] sm:$0xff]
        %131 = vst [vmem:[%s83 + $0xb8] sm:$0xff] %v130
      $region94: #{tpu_custom_call.1} parent=88 // loop_footer
        %s81 = sadd.s32 1, %s77
      $region95: #{tpu_custom_call.1} parent=88 // loop_footer_branch
        %76 = sbr.rel target = $region91
      $region96: #{tpu_custom_call.1} parent=88 // loop_exit
        _
    $region89: #{tpu_custom_call.1} parent=1 // pred_fallthru
      _
    // Predicated region
    $region97: #{tpu_custom_call.1} parent=1 // pred_check
      _
    $region98: #{tpu_custom_call.1} parent=1 // pred_check_branch
      %133 = sbr.rel target = $region100
    $region99: #{tpu_custom_call.1} parent=1 // pred_region
      _
    $region100: #{tpu_custom_call.1} parent=1 // pred_fallthru
      _
    // Predicated region
    $region101: #{tpu_custom_call.1} parent=1 // pred_check
      _
    $region102: #{tpu_custom_call.1} parent=1 // pred_check_branch
      %136 = sbr.rel (0) target = $region104
    $region103: #{tpu_custom_call.1} parent=1 // pred_region
      %137 = vsyncadd [#allocation6], 3072
    $region104: #{tpu_custom_call.1} parent=1 // pred_fallthru
      _
    %s138 = scalar_lea.sflag [#allocation6], 1
    // Predicated region
    $region105: #{tpu_custom_call.1} parent=1 // pred_check
      _
    $region106: #{tpu_custom_call.1} parent=1 // pred_check_branch
      %140 = sbr.rel (0) target = $region108
    $region107: #{tpu_custom_call.1} parent=1 // pred_region
      loop: start=0, step=1, limit=1
      $region109: #{tpu_custom_call.1} parent=107 // loop_pre_header
        _
      $region110: #{tpu_custom_call.1} parent=107 // loop_header
        %s142 = sphi 0, %s146
        %p143 = scmp.ge.s32.totalorder %s142, 1
        %s147 = sphi %s22, %s22
        %s148 = sphi [#allocation3], [#allocation3]
      $region111: #{tpu_custom_call.1} parent=107 // loop_header_branch
        %145 = sbr.rel (%p143) target = $region115
      $region112: #{tpu_custom_call.1} parent=107 // loop_body
        %v149 = vld [vmem:[%s147] sm:$0xff]
        %150 = vst [vmem:[%s148] sm:$0xff] %v149
        %v151 = vld [vmem:[%s147 + $0x8] sm:$0xff]
        %152 = vst [vmem:[%s148 + $0x8] sm:$0xff] %v151
        %v153 = vld [vmem:[%s147 + $0x10] sm:$0xff]
        %154 = vst [vmem:[%s148 + $0x10] sm:$0xff] %v153
        %v155 = vld [vmem:[%s147 + $0x18] sm:$0xff]
        %156 = vst [vmem:[%s148 + $0x18] sm:$0xff] %v155
        %v157 = vld [vmem:[%s147 + $0x20] sm:$0xff]
        %158 = vst [vmem:[%s148 + $0x20] sm:$0xff] %v157
        %v159 = vld [vmem:[%s147 + $0x28] sm:$0xff]
        %160 = vst [vmem:[%s148 + $0x28] sm:$0xff] %v159
        %v161 = vld [vmem:[%s147 + $0x30] sm:$0xff]
        %162 = vst [vmem:[%s148 + $0x30] sm:$0xff] %v161
        %v163 = vld [vmem:[%s147 + $0x38] sm:$0xff]
        %164 = vst [vmem:[%s148 + $0x38] sm:$0xff] %v163
        %v165 = vld [vmem:[%s147 + $0x40] sm:$0xff]
        %166 = vst [vmem:[%s148 + $0x40] sm:$0xff] %v165
        %v167 = vld [vmem:[%s147 + $0x48] sm:$0xff]
        %168 = vst [vmem:[%s148 + $0x48] sm:$0xff] %v167
        %v169 = vld [vmem:[%s147 + $0x50] sm:$0xff]
        %170 = vst [vmem:[%s148 + $0x50] sm:$0xff] %v169
        %v171 = vld [vmem:[%s147 + $0x58] sm:$0xff]
        %172 = vst [vmem:[%s148 + $0x58] sm:$0xff] %v171
        %v173 = vld [vmem:[%s147 + $0x60] sm:$0xff]
        %174 = vst [vmem:[%s148 + $0x60] sm:$0xff] %v173
        %v175 = vld [vmem:[%s147 + $0x68] sm:$0xff]
        %176 = vst [vmem:[%s148 + $0x68] sm:$0xff] %v175
        %v177 = vld [vmem:[%s147 + $0x70] sm:$0xff]
        %178 = vst [vmem:[%s148 + $0x70] sm:$0xff] %v177
        %v179 = vld [vmem:[%s147 + $0x78] sm:$0xff]
        %180 = vst [vmem:[%s148 + $0x78] sm:$0xff] %v179
        %v181 = vld [vmem:[%s147 + $0x80] sm:$0xff]
        %182 = vst [vmem:[%s148 + $0x80] sm:$0xff] %v181
        %v183 = vld [vmem:[%s147 + $0x88] sm:$0xff]
        %184 = vst [vmem:[%s148 + $0x88] sm:$0xff] %v183
        %v185 = vld [vmem:[%s147 + $0x90] sm:$0xff]
        %186 = vst [vmem:[%s148 + $0x90] sm:$0xff] %v185
        %v187 = vld [vmem:[%s147 + $0x98] sm:$0xff]
        %188 = vst [vmem:[%s148 + $0x98] sm:$0xff] %v187
        %v189 = vld [vmem:[%s147 + $0xa0] sm:$0xff]
        %190 = vst [vmem:[%s148 + $0xa0] sm:$0xff] %v189
        %v191 = vld [vmem:[%s147 + $0xa8] sm:$0xff]
        %192 = vst [vmem:[%s148 + $0xa8] sm:$0xff] %v191
        %v193 = vld [vmem:[%s147 + $0xb0] sm:$0xff]
        %194 = vst [vmem:[%s148 + $0xb0] sm:$0xff] %v193
        %v195 = vld [vmem:[%s147 + $0xb8] sm:$0xff]
        %196 = vst [vmem:[%s148 + $0xb8] sm:$0xff] %v195
        %v197 = vld [vmem:[%s147 + $0xc0] sm:$0xff]
        %198 = vst [vmem:[%s148 + $0xc0] sm:$0xff] %v197
        %v199 = vld [vmem:[%s147 + $0xc8] sm:$0xff]
        %200 = vst [vmem:[%s148 + $0xc8] sm:$0xff] %v199
        %v201 = vld [vmem:[%s147 + $0xd0] sm:$0xff]
        %202 = vst [vmem:[%s148 + $0xd0] sm:$0xff] %v201
        %v203 = vld [vmem:[%s147 + $0xd8] sm:$0xff]
        %204 = vst [vmem:[%s148 + $0xd8] sm:$0xff] %v203
        %v205 = vld [vmem:[%s147 + $0xe0] sm:$0xff]
        %206 = vst [vmem:[%s148 + $0xe0] sm:$0xff] %v205
        %v207 = vld [vmem:[%s147 + $0xe8] sm:$0xff]
        %208 = vst [vmem:[%s148 + $0xe8] sm:$0xff] %v207
        %v209 = vld [vmem:[%s147 + $0xf0] sm:$0xff]
        %210 = vst [vmem:[%s148 + $0xf0] sm:$0xff] %v209
        %v211 = vld [vmem:[%s147 + $0xf8] sm:$0xff]
        %212 = vst [vmem:[%s148 + $0xf8] sm:$0xff] %v211
        %v213 = vld [vmem:[%s147 + $0x100] sm:$0xff]
        %214 = vst [vmem:[%s148 + $0x100] sm:$0xff] %v213
        %v215 = vld [vmem:[%s147 + $0x108] sm:$0xff]
        %216 = vst [vmem:[%s148 + $0x108] sm:$0xff] %v215
        %v217 = vld [vmem:[%s147 + $0x110] sm:$0xff]
        %218 = vst [vmem:[%s148 + $0x110] sm:$0xff] %v217
        %v219 = vld [vmem:[%s147 + $0x118] sm:$0xff]
        %220 = vst [vmem:[%s148 + $0x118] sm:$0xff] %v219
        %v221 = vld [vmem:[%s147 + $0x120] sm:$0xff]
        %222 = vst [vmem:[%s148 + $0x120] sm:$0xff] %v221
        %v223 = vld [vmem:[%s147 + $0x128] sm:$0xff]
        %224 = vst [vmem:[%s148 + $0x128] sm:$0xff] %v223
        %v225 = vld [vmem:[%s147 + $0x130] sm:$0xff]
        %226 = vst [vmem:[%s148 + $0x130] sm:$0xff] %v225
        %v227 = vld [vmem:[%s147 + $0x138] sm:$0xff]
        %228 = vst [vmem:[%s148 + $0x138] sm:$0xff] %v227
        %v229 = vld [vmem:[%s147 + $0x140] sm:$0xff]
        %230 = vst [vmem:[%s148 + $0x140] sm:$0xff] %v229
        %v231 = vld [vmem:[%s147 + $0x148] sm:$0xff]
        %232 = vst [vmem:[%s148 + $0x148] sm:$0xff] %v231
        %v233 = vld [vmem:[%s147 + $0x150] sm:$0xff]
        %234 = vst [vmem:[%s148 + $0x150] sm:$0xff] %v233
        %v235 = vld [vmem:[%s147 + $0x158] sm:$0xff]
        %236 = vst [vmem:[%s148 + $0x158] sm:$0xff] %v235
        %v237 = vld [vmem:[%s147 + $0x160] sm:$0xff]
        %238 = vst [vmem:[%s148 + $0x160] sm:$0xff] %v237
        %v239 = vld [vmem:[%s147 + $0x168] sm:$0xff]
        %240 = vst [vmem:[%s148 + $0x168] sm:$0xff] %v239
        %v241 = vld [vmem:[%s147 + $0x170] sm:$0xff]
        %242 = vst [vmem:[%s148 + $0x170] sm:$0xff] %v241
        %v243 = vld [vmem:[%s147 + $0x178] sm:$0xff]
        %244 = vst [vmem:[%s148 + $0x178] sm:$0xff] %v243
        %v245 = vld [vmem:[%s147 + $0x180] sm:$0xff]
        %246 = vst [vmem:[%s148 + $0x180] sm:$0xff] %v245
        %v247 = vld [vmem:[%s147 + $0x188] sm:$0xff]
        %248 = vst [vmem:[%s148 + $0x188] sm:$0xff] %v247
        %v249 = vld [vmem:[%s147 + $0x190] sm:$0xff]
        %250 = vst [vmem:[%s148 + $0x190] sm:$0xff] %v249
        %v251 = vld [vmem:[%s147 + $0x198] sm:$0xff]
        %252 = vst [vmem:[%s148 + $0x198] sm:$0xff] %v251
        %v253 = vld [vmem:[%s147 + $0x1a0] sm:$0xff]
        %254 = vst [vmem:[%s148 + $0x1a0] sm:$0xff] %v253
        %v255 = vld [vmem:[%s147 + $0x1a8] sm:$0xff]
        %256 = vst [vmem:[%s148 + $0x1a8] sm:$0xff] %v255
        %v257 = vld [vmem:[%s147 + $0x1b0] sm:$0xff]
        %258 = vst [vmem:[%s148 + $0x1b0] sm:$0xff] %v257
        %v259 = vld [vmem:[%s147 + $0x1b8] sm:$0xff]
        %260 = vst [vmem:[%s148 + $0x1b8] sm:$0xff] %v259
        %v261 = vld [vmem:[%s147 + $0x1c0] sm:$0xff]
        %262 = vst [vmem:[%s148 + $0x1c0] sm:$0xff] %v261
        %v263 = vld [vmem:[%s147 + $0x1c8] sm:$0xff]
        %264 = vst [vmem:[%s148 + $0x1c8] sm:$0xff] %v263
        %v265 = vld [vmem:[%s147 + $0x1d0] sm:$0xff]
        %266 = vst [vmem:[%s148 + $0x1d0] sm:$0xff] %v265
        %v267 = vld [vmem:[%s147 + $0x1d8] sm:$0xff]
        %268 = vst [vmem:[%s148 + $0x1d8] sm:$0xff] %v267
        %v269 = vld [vmem:[%s147 + $0x1e0] sm:$0xff]
        %270 = vst [vmem:[%s148 + $0x1e0] sm:$0xff] %v269
        %v271 = vld [vmem:[%s147 + $0x1e8] sm:$0xff]
        %272 = vst [vmem:[%s148 + $0x1e8] sm:$0xff] %v271
        %v273 = vld [vmem:[%s147 + $0x1f0] sm:$0xff]
        %274 = vst [vmem:[%s148 + $0x1f0] sm:$0xff] %v273
        %v275 = vld [vmem:[%s147 + $0x1f8] sm:$0xff]
        %276 = vst [vmem:[%s148 + $0x1f8] sm:$0xff] %v275
      $region113: #{tpu_custom_call.1} parent=107 // loop_footer
        %s146 = sadd.s32 1, %s142
      $region114: #{tpu_custom_call.1} parent=107 // loop_footer_branch
        %141 = sbr.rel target = $region110
      $region115: #{tpu_custom_call.1} parent=107 // loop_exit
        _
    $region108: #{tpu_custom_call.1} parent=1 // pred_fallthru
      _
    // Predicated region
    $region116: #{tpu_custom_call.1} parent=1 // pred_check
      _
    $region117: #{tpu_custom_call.1} parent=1 // pred_check_branch
      %278 = sbr.rel target = $region119
    $region118: #{tpu_custom_call.1} parent=1 // pred_region
      _
    $region119: #{tpu_custom_call.1} parent=1 // pred_fallthru
      _
    // Predicated region
    $region120: #{tpu_custom_call.1} parent=1 // pred_check
      _
    $region121: #{tpu_custom_call.1} parent=1 // pred_check_branch
      %281 = sbr.rel (0) target = $region123
    $region122: #{tpu_custom_call.1} parent=1 // pred_region
      %282 = vsyncadd %s138, 8192
    $region123: #{tpu_custom_call.1} parent=1 // pred_fallthru
      _
    %s283 = scalar_lea.sflag [#allocation6], 2
    // Predicated region
    $region124: #{tpu_custom_call.1} parent=1 // pred_check
      _
    $region125: #{tpu_custom_call.1} parent=1 // pred_check_branch
      %285 = sbr.rel target = $region127
    $region126: #{tpu_custom_call.1} parent=1 // pred_region
      %286 = sst [smem:[#allocation13]] [#allocation12]
      %287 = sst [smem:[#allocation14]] [#allocation11]
    $region127: #{tpu_custom_call.1} parent=1 // pred_fallthru
      _
    %289 = shalt.err (0)
    %s291 = sshll.u32 %s23, 4
    %s292 = int_to_ptr.hbm [resolvable:$true] %s291
    %s293 = sshll.u32 [#allocation4], 4
    %s294 = int_to_ptr.vmem [resolvable:$true] %s293
    %296 = dma.hbm_to_vmem [thread:$0]  %s292, 32768, %s294, %s283
    %s297 = scalar_lea.sflag [#allocation6], 3
    // Predicated region
    $region128: #{tpu_custom_call.1} parent=1 // pred_check
      _
    $region129: #{tpu_custom_call.1} parent=1 // pred_check_branch
      %299 = sbr.rel (0) target = $region131
    $region130: #{tpu_custom_call.1} parent=1 // pred_region
      loop: start=0, step=1, limit=1
      $region132: #{tpu_custom_call.1} parent=130 // loop_pre_header
        _
      $region133: #{tpu_custom_call.1} parent=130 // loop_header
        %s301 = sphi 0, %s305
        %p302 = scmp.ge.s32.totalorder %s301, 1
        %s306 = sphi %s24, %s24
        %s307 = sphi [#allocation5], [#allocation5]
      $region134: #{tpu_custom_call.1} parent=130 // loop_header_branch
        %304 = sbr.rel (%p302) target = $region138
      $region135: #{tpu_custom_call.1} parent=130 // loop_body
        %v308 = vld [vmem:[%s306] sm:$0xff]
        %309 = vst [vmem:[%s307] sm:$0xff] %v308
        %v310 = vld [vmem:[%s306 + $0x8] sm:$0xff]
        %311 = vst [vmem:[%s307 + $0x8] sm:$0xff] %v310
        %v312 = vld [vmem:[%s306 + $0x10] sm:$0xff]
        %313 = vst [vmem:[%s307 + $0x10] sm:$0xff] %v312
        %v314 = vld [vmem:[%s306 + $0x18] sm:$0xff]
        %315 = vst [vmem:[%s307 + $0x18] sm:$0xff] %v314
        %v316 = vld [vmem:[%s306 + $0x20] sm:$0xff]
        %317 = vst [vmem:[%s307 + $0x20] sm:$0xff] %v316
        %v318 = vld [vmem:[%s306 + $0x28] sm:$0xff]
        %319 = vst [vmem:[%s307 + $0x28] sm:$0xff] %v318
        %v320 = vld [vmem:[%s306 + $0x30] sm:$0xff]
        %321 = vst [vmem:[%s307 + $0x30] sm:$0xff] %v320
        %v322 = vld [vmem:[%s306 + $0x38] sm:$0xff]
        %323 = vst [vmem:[%s307 + $0x38] sm:$0xff] %v322
        %v324 = vld [vmem:[%s306 + $0x40] sm:$0xff]
        %325 = vst [vmem:[%s307 + $0x40] sm:$0xff] %v324
        %v326 = vld [vmem:[%s306 + $0x48] sm:$0xff]
        %327 = vst [vmem:[%s307 + $0x48] sm:$0xff] %v326
        %v328 = vld [vmem:[%s306 + $0x50] sm:$0xff]
        %329 = vst [vmem:[%s307 + $0x50] sm:$0xff] %v328
        %v330 = vld [vmem:[%s306 + $0x58] sm:$0xff]
        %331 = vst [vmem:[%s307 + $0x58] sm:$0xff] %v330
        %v332 = vld [vmem:[%s306 + $0x60] sm:$0xff]
        %333 = vst [vmem:[%s307 + $0x60] sm:$0xff] %v332
        %v334 = vld [vmem:[%s306 + $0x68] sm:$0xff]
        %335 = vst [vmem:[%s307 + $0x68] sm:$0xff] %v334
        %v336 = vld [vmem:[%s306 + $0x70] sm:$0xff]
        %337 = vst [vmem:[%s307 + $0x70] sm:$0xff] %v336
        %v338 = vld [vmem:[%s306 + $0x78] sm:$0xff]
        %339 = vst [vmem:[%s307 + $0x78] sm:$0xff] %v338
        %v340 = vld [vmem:[%s306 + $0x80] sm:$0xff]
        %341 = vst [vmem:[%s307 + $0x80] sm:$0xff] %v340
        %v342 = vld [vmem:[%s306 + $0x88] sm:$0xff]
        %343 = vst [vmem:[%s307 + $0x88] sm:$0xff] %v342
        %v344 = vld [vmem:[%s306 + $0x90] sm:$0xff]
        %345 = vst [vmem:[%s307 + $0x90] sm:$0xff] %v344
        %v346 = vld [vmem:[%s306 + $0x98] sm:$0xff]
        %347 = vst [vmem:[%s307 + $0x98] sm:$0xff] %v346
        %v348 = vld [vmem:[%s306 + $0xa0] sm:$0xff]
        %349 = vst [vmem:[%s307 + $0xa0] sm:$0xff] %v348
        %v350 = vld [vmem:[%s306 + $0xa8] sm:$0xff]
        %351 = vst [vmem:[%s307 + $0xa8] sm:$0xff] %v350
        %v352 = vld [vmem:[%s306 + $0xb0] sm:$0xff]
        %353 = vst [vmem:[%s307 + $0xb0] sm:$0xff] %v352
        %v354 = vld [vmem:[%s306 + $0xb8] sm:$0xff]
        %355 = vst [vmem:[%s307 + $0xb8] sm:$0xff] %v354
        %v356 = vld [vmem:[%s306 + $0xc0] sm:$0xff]
        %357 = vst [vmem:[%s307 + $0xc0] sm:$0xff] %v356
        %v358 = vld [vmem:[%s306 + $0xc8] sm:$0xff]
        %359 = vst [vmem:[%s307 + $0xc8] sm:$0xff] %v358
        %v360 = vld [vmem:[%s306 + $0xd0] sm:$0xff]
        %361 = vst [vmem:[%s307 + $0xd0] sm:$0xff] %v360
        %v362 = vld [vmem:[%s306 + $0xd8] sm:$0xff]
        %363 = vst [vmem:[%s307 + $0xd8] sm:$0xff] %v362
        %v364 = vld [vmem:[%s306 + $0xe0] sm:$0xff]
        %365 = vst [vmem:[%s307 + $0xe0] sm:$0xff] %v364
        %v366 = vld [vmem:[%s306 + $0xe8] sm:$0xff]
        %367 = vst [vmem:[%s307 + $0xe8] sm:$0xff] %v366
        %v368 = vld [vmem:[%s306 + $0xf0] sm:$0xff]
        %369 = vst [vmem:[%s307 + $0xf0] sm:$0xff] %v368
        %v370 = vld [vmem:[%s306 + $0xf8] sm:$0xff]
        %371 = vst [vmem:[%s307 + $0xf8] sm:$0xff] %v370
        %v372 = vld [vmem:[%s306 + $0x100] sm:$0xff]
        %373 = vst [vmem:[%s307 + $0x100] sm:$0xff] %v372
        %v374 = vld [vmem:[%s306 + $0x108] sm:$0xff]
        %375 = vst [vmem:[%s307 + $0x108] sm:$0xff] %v374
        %v376 = vld [vmem:[%s306 + $0x110] sm:$0xff]
        %377 = vst [vmem:[%s307 + $0x110] sm:$0xff] %v376
        %v378 = vld [vmem:[%s306 + $0x118] sm:$0xff]
        %379 = vst [vmem:[%s307 + $0x118] sm:$0xff] %v378
        %v380 = vld [vmem:[%s306 + $0x120] sm:$0xff]
        %381 = vst [vmem:[%s307 + $0x120] sm:$0xff] %v380
        %v382 = vld [vmem:[%s306 + $0x128] sm:$0xff]
        %383 = vst [vmem:[%s307 + $0x128] sm:$0xff] %v382
        %v384 = vld [vmem:[%s306 + $0x130] sm:$0xff]
        %385 = vst [vmem:[%s307 + $0x130] sm:$0xff] %v384
        %v386 = vld [vmem:[%s306 + $0x138] sm:$0xff]
        %387 = vst [vmem:[%s307 + $0x138] sm:$0xff] %v386
        %v388 = vld [vmem:[%s306 + $0x140] sm:$0xff]
        %389 = vst [vmem:[%s307 + $0x140] sm:$0xff] %v388
        %v390 = vld [vmem:[%s306 + $0x148] sm:$0xff]
        %391 = vst [vmem:[%s307 + $0x148] sm:$0xff] %v390
        %v392 = vld [vmem:[%s306 + $0x150] sm:$0xff]
        %393 = vst [vmem:[%s307 + $0x150] sm:$0xff] %v392
        %v394 = vld [vmem:[%s306 + $0x158] sm:$0xff]
        %395 = vst [vmem:[%s307 + $0x158] sm:$0xff] %v394
        %v396 = vld [vmem:[%s306 + $0x160] sm:$0xff]
        %397 = vst [vmem:[%s307 + $0x160] sm:$0xff] %v396
        %v398 = vld [vmem:[%s306 + $0x168] sm:$0xff]
        %399 = vst [vmem:[%s307 + $0x168] sm:$0xff] %v398
        %v400 = vld [vmem:[%s306 + $0x170] sm:$0xff]
        %401 = vst [vmem:[%s307 + $0x170] sm:$0xff] %v400
        %v402 = vld [vmem:[%s306 + $0x178] sm:$0xff]
        %403 = vst [vmem:[%s307 + $0x178] sm:$0xff] %v402
        %v404 = vld [vmem:[%s306 + $0x180] sm:$0xff]
        %405 = vst [vmem:[%s307 + $0x180] sm:$0xff] %v404
        %v406 = vld [vmem:[%s306 + $0x188] sm:$0xff]
        %407 = vst [vmem:[%s307 + $0x188] sm:$0xff] %v406
        %v408 = vld [vmem:[%s306 + $0x190] sm:$0xff]
        %409 = vst [vmem:[%s307 + $0x190] sm:$0xff] %v408
        %v410 = vld [vmem:[%s306 + $0x198] sm:$0xff]
        %411 = vst [vmem:[%s307 + $0x198] sm:$0xff] %v410
        %v412 = vld [vmem:[%s306 + $0x1a0] sm:$0xff]
        %413 = vst [vmem:[%s307 + $0x1a0] sm:$0xff] %v412
        %v414 = vld [vmem:[%s306 + $0x1a8] sm:$0xff]
        %415 = vst [vmem:[%s307 + $0x1a8] sm:$0xff] %v414
        %v416 = vld [vmem:[%s306 + $0x1b0] sm:$0xff]
        %417 = vst [vmem:[%s307 + $0x1b0] sm:$0xff] %v416
        %v418 = vld [vmem:[%s306 + $0x1b8] sm:$0xff]
        %419 = vst [vmem:[%s307 + $0x1b8] sm:$0xff] %v418
        %v420 = vld [vmem:[%s306 + $0x1c0] sm:$0xff]
        %421 = vst [vmem:[%s307 + $0x1c0] sm:$0xff] %v420
        %v422 = vld [vmem:[%s306 + $0x1c8] sm:$0xff]
        %423 = vst [vmem:[%s307 + $0x1c8] sm:$0xff] %v422
        %v424 = vld [vmem:[%s306 + $0x1d0] sm:$0xff]
        %425 = vst [vmem:[%s307 + $0x1d0] sm:$0xff] %v424
        %v426 = vld [vmem:[%s306 + $0x1d8] sm:$0xff]
        %427 = vst [vmem:[%s307 + $0x1d8] sm:$0xff] %v426
        %v428 = vld [vmem:[%s306 + $0x1e0] sm:$0xff]
        %429 = vst [vmem:[%s307 + $0x1e0] sm:$0xff] %v428
        %v430 = vld [vmem:[%s306 + $0x1e8] sm:$0xff]
        %431 = vst [vmem:[%s307 + $0x1e8] sm:$0xff] %v430
        %v432 = vld [vmem:[%s306 + $0x1f0] sm:$0xff]
        %433 = vst [vmem:[%s307 + $0x1f0] sm:$0xff] %v432
        %v434 = vld [vmem:[%s306 + $0x1f8] sm:$0xff]
        %435 = vst [vmem:[%s307 + $0x1f8] sm:$0xff] %v434
      $region136: #{tpu_custom_call.1} parent=130 // loop_footer
        %s305 = sadd.s32 1, %s301
      $region137: #{tpu_custom_call.1} parent=130 // loop_footer_branch
        %300 = sbr.rel target = $region133
      $region138: #{tpu_custom_call.1} parent=130 // loop_exit
        _
    $region131: #{tpu_custom_call.1} parent=1 // pred_fallthru
      _
    // Predicated region
    $region139: #{tpu_custom_call.1} parent=1 // pred_check
      _
    $region140: #{tpu_custom_call.1} parent=1 // pred_check_branch
      %437 = sbr.rel target = $region142
    $region141: #{tpu_custom_call.1} parent=1 // pred_region
      _
    $region142: #{tpu_custom_call.1} parent=1 // pred_fallthru
      _
    // Predicated region
    $region143: #{tpu_custom_call.1} parent=1 // pred_check
      _
    $region144: #{tpu_custom_call.1} parent=1 // pred_check_branch
      %440 = sbr.rel (0) target = $region146
    $region145: #{tpu_custom_call.1} parent=1 // pred_region
      %441 = vsyncadd %s297, 8192
    $region146: #{tpu_custom_call.1} parent=1 // pred_fallthru
      _
    %v442 = vld [vmem:[%s0] sm:$0xff]
    %v443 = vld [vmem:[%s0 + $0x8] sm:$0xff]
    %v444 = vld [vmem:[%s0 + $0x10] sm:$0xff]
    %v445 = vld [vmem:[%s0 + $0x18] sm:$0xff]
    %v446 = vld [vmem:[%s0 + $0x20] sm:$0xff]
    %v447 = vld [vmem:[%s0 + $0x28] sm:$0xff]
    %v448 = vld [vmem:[%s0 + $0x30] sm:$0xff]
    %v449 = vld [vmem:[%s0 + $0x38] sm:$0xff]
    %v450 = vld [vmem:[%s0 + $0x40] sm:$0xff]
    %v451 = vld [vmem:[%s0 + $0x48] sm:$0xff]
    %v452 = vld [vmem:[%s0 + $0x50] sm:$0xff]
    %v453 = vld [vmem:[%s0 + $0x58] sm:$0xff]
    %v454 = vld [vmem:[%s0 + $0x60] sm:$0xff]
    %v455 = vld [vmem:[%s0 + $0x68] sm:$0xff]
    %v456 = vld [vmem:[%s0 + $0x70] sm:$0xff]
    %v457 = vld [vmem:[%s0 + $0x78] sm:$0xff]
    %v458 = vld [vmem:[%s1] sm:$0x1]
    %v459 = vld [vmem:[%s2] sm:$0x1]
    %v460 = vld [vmem:[%s3] sm:$0x1]
    %v461 = vld [vmem:[%s4] sm:$0x1]
    %v462 = vld [vmem:[%s5] sm:$0xff]
    %v463 = vld [vmem:[%s5 + $0x8] sm:$0xff]
    %v464 = vld [vmem:[%s5 + $0x10] sm:$0xff]
    %v465 = vld [vmem:[%s5 + $0x18] sm:$0xff]
    %v466 = vld [vmem:[%s5 + $0x20] sm:$0xff]
    %v467 = vld [vmem:[%s5 + $0x28] sm:$0xff]
    %v468 = vld [vmem:[%s5 + $0x30] sm:$0xff]
    %v469 = vld [vmem:[%s5 + $0x38] sm:$0xff]
    %v470 = vld [vmem:[%s5 + $0x40] sm:$0xff]
    %v471 = vld [vmem:[%s5 + $0x48] sm:$0xff]
    %v472 = vld [vmem:[%s5 + $0x50] sm:$0xff]
    %v473 = vld [vmem:[%s5 + $0x58] sm:$0xff]
    %v474 = vld [vmem:[%s5 + $0x60] sm:$0xff]
    %v475 = vld [vmem:[%s5 + $0x68] sm:$0xff]
    %v476 = vld [vmem:[%s5 + $0x70] sm:$0xff]
    %v477 = vld [vmem:[%s5 + $0x78] sm:$0xff]
    %vm494 = vcmask 1046528
    %v495 = vrot.slane %v442, 1
    %v496 = vrot.slane %v443, 1
    %v497 = vsel %vm494, %v495, %v496
    %v498 = vrot.slane %v444, 1
    %v499 = vsel %vm494, %v496, %v498
    %v500 = vrot.slane %v445, 1
    %v501 = vsel %vm494, %v498, %v500
    %v502 = vrot.slane %v446, 1
    %v503 = vsel %vm494, %v500, %v502
    %v504 = vrot.slane %v447, 1
    %v505 = vsel %vm494, %v502, %v504
    %v506 = vrot.slane %v448, 1
    %v507 = vsel %vm494, %v504, %v506
    %v508 = vrot.slane %v449, 1
    %v509 = vsel %vm494, %v506, %v508
    %v510 = vrot.slane %v450, 1
    %v511 = vsel %vm494, %v508, %v510
    %v512 = vrot.slane %v451, 1
    %v513 = vsel %vm494, %v510, %v512
    %v514 = vrot.slane %v452, 1
    %v515 = vsel %vm494, %v512, %v514
    %v516 = vrot.slane %v453, 1
    %v517 = vsel %vm494, %v514, %v516
    %v518 = vrot.slane %v454, 1
    %v519 = vsel %vm494, %v516, %v518
    %v520 = vrot.slane %v455, 1
    %v521 = vsel %vm494, %v518, %v520
    %v522 = vrot.slane %v456, 1
    %v523 = vsel %vm494, %v520, %v522
    %v524 = vrot.slane %v457, 1
    %v525 = vsel %vm494, %v522, %v524
    %v528 = vsel %vm494, %v524, %v495
    %530 = vrot.lane.b32.xlu0 %v497, 1
    %v531 = vpop.permute.xlu0 %530
    %532 = vrot.lane.b32.xlu0 %v499, 1
    %v533 = vpop.permute.xlu0 %532
    %534 = vrot.lane.b32.xlu0 %v501, 1
    %v535 = vpop.permute.xlu0 %534
    %536 = vrot.lane.b32.xlu0 %v503, 1
    %v537 = vpop.permute.xlu0 %536
    %538 = vrot.lane.b32.xlu0 %v505, 1
    %v539 = vpop.permute.xlu0 %538
    %540 = vrot.lane.b32.xlu0 %v507, 1
    %v541 = vpop.permute.xlu0 %540
    %542 = vrot.lane.b32.xlu0 %v509, 1
    %v543 = vpop.permute.xlu0 %542
    %544 = vrot.lane.b32.xlu0 %v511, 1
    %v545 = vpop.permute.xlu0 %544
    %546 = vrot.lane.b32.xlu0 %v513, 1
    %v547 = vpop.permute.xlu0 %546
    %548 = vrot.lane.b32.xlu0 %v515, 1
    %v549 = vpop.permute.xlu0 %548
    %550 = vrot.lane.b32.xlu0 %v517, 1
    %v551 = vpop.permute.xlu0 %550
    %552 = vrot.lane.b32.xlu0 %v519, 1
    %v553 = vpop.permute.xlu0 %552
    %554 = vrot.lane.b32.xlu0 %v521, 1
    %v555 = vpop.permute.xlu0 %554
    %556 = vrot.lane.b32.xlu0 %v523, 1
    %v557 = vpop.permute.xlu0 %556
    %558 = vrot.lane.b32.xlu0 %v525, 1
    %v559 = vpop.permute.xlu0 %558
    %560 = vrot.lane.b32.xlu0 %v528, 1
    %v561 = vpop.permute.xlu0 %560
    %vm578 = vcmask 7168
    %v579 = vsel %vm578, %v442, %v531
    %v580 = vsel %vm578, %v443, %v533
    %v581 = vsel %vm578, %v444, %v535
    %v582 = vsel %vm578, %v445, %v537
    %v583 = vsel %vm578, %v446, %v539
    %v584 = vsel %vm578, %v447, %v541
    %v585 = vsel %vm578, %v448, %v543
    %v586 = vsel %vm578, %v449, %v545
    %v587 = vsel %vm578, %v450, %v547
    %v588 = vsel %vm578, %v451, %v549
    %v589 = vsel %vm578, %v452, %v551
    %v590 = vsel %vm578, %v453, %v553
    %v591 = vsel %vm578, %v454, %v555
    %v592 = vsel %vm578, %v455, %v557
    %v593 = vsel %vm578, %v456, %v559
    %v594 = vsel %vm578, %v457, %v561
    %v595 = vpack.c.bf16 %v580, %v579
    %v596 = vpack.c.bf16 %v582, %v581
    %v597 = vpack.c.bf16 %v584, %v583
    %v598 = vpack.c.bf16 %v586, %v585
    %v599 = vpack.c.bf16 %v588, %v587
    %v600 = vpack.c.bf16 %v590, %v589
    %v601 = vpack.c.bf16 %v592, %v591
    %v602 = vpack.c.bf16 %v594, %v593
    %v604 = vperm.slane %v459, 0
    %vm606 = vcmask 15360
    %v608 = vsel %vm606, %v595, 0
    %v611 = vsel %vm606, %v596, 0
    %v614 = vsel %vm606, %v597, 0
    %v617 = vsel %vm606, %v598, 0
    %v620 = vsel %vm606, %v599, 0
    %v623 = vsel %vm606, %v600, 0
    %v626 = vsel %vm606, %v601, 0
    %v629 = vsel %vm606, %v602, 0
    %vm631 = vcmask 1040384
    %v633 = vsel %vm631, %v458, 0
    %635 = vmatpush.bf16.msra.mxu0 0
    %636 = vmatpush.bf16.msra.mxu0 0
    %637 = vmatpush.bf16.msra.mxu0 0
    %638 = vmatpush.bf16.msra.mxu0 0
    %639 = vmatpush.bf16.msra.mxu0 0
    %640 = vmatpush.bf16.msra.mxu0 0
    %641 = vmatpush.bf16.msra.mxu0 0
    %642 = vmatpush.bf16.msra.mxu0 %v633
    %643 = vmatmul.bf16.gmra.mxu0 %v608
    %v644 = vpop.f32.mrf.mxu0
    %v645 = vadd.f32 %v604, %v644
    %v646 = vpop.f32.mrf.mxu0
    %v647 = vadd.f32 %v604, %v646
    %648 = vmatmul.bf16.gmra.mxu0 %v611
    %v649 = vpop.f32.mrf.mxu0
    %v650 = vadd.f32 %v604, %v649
    %v651 = vpop.f32.mrf.mxu0
    %v652 = vadd.f32 %v604, %v651
    %653 = vmatmul.bf16.gmra.mxu0 %v614
    %v654 = vpop.f32.mrf.mxu0
    %v655 = vadd.f32 %v604, %v654
    %v656 = vpop.f32.mrf.mxu0
    %v657 = vadd.f32 %v604, %v656
    %658 = vmatmul.bf16.gmra.mxu0 %v617
    %v659 = vpop.f32.mrf.mxu0
    %v660 = vadd.f32 %v604, %v659
    %v661 = vpop.f32.mrf.mxu0
    %v662 = vadd.f32 %v604, %v661
    %663 = vmatmul.bf16.gmra.mxu0 %v620
    %v664 = vpop.f32.mrf.mxu0
    %v665 = vadd.f32 %v604, %v664
    %v666 = vpop.f32.mrf.mxu0
    %v667 = vadd.f32 %v604, %v666
    %668 = vmatmul.bf16.gmra.mxu0 %v623
    %v669 = vpop.f32.mrf.mxu0
    %v670 = vadd.f32 %v604, %v669
    %v671 = vpop.f32.mrf.mxu0
    %v672 = vadd.f32 %v604, %v671
    %673 = vmatmul.bf16.gmra.mxu0 %v626
    %v674 = vpop.f32.mrf.mxu0
    %v675 = vadd.f32 %v604, %v674
    %v676 = vpop.f32.mrf.mxu0
    %v677 = vadd.f32 %v604, %v676
    %678 = vmatmul.bf16.gmra.mxu0 %v629
    %v679 = vpop.f32.mrf.mxu0
    %v680 = vadd.f32 %v604, %v679
    %v681 = vpop.f32.mrf.mxu0
    %v682 = vadd.f32 %v604, %v681
    %683 = vdwg.mxu0
    %685 = vset.pattern.permute.xlu0 0
    %686 = vperm.xlu0 %685, %v462
    %v687 = vpop.permute.xlu0 %686
    %690 = vset.pattern.permute.xlu0 0
    %691 = vperm.xlu0 %690, %v463
    %v692 = vpop.permute.xlu0 %691
    %695 = vset.pattern.permute.xlu0 0
    %696 = vperm.xlu0 %695, %v464
    %v697 = vpop.permute.xlu0 %696
    %700 = vset.pattern.permute.xlu0 0
    %701 = vperm.xlu0 %700, %v465
    %v702 = vpop.permute.xlu0 %701
    %705 = vset.pattern.permute.xlu0 0
    %706 = vperm.xlu0 %705, %v466
    %v707 = vpop.permute.xlu0 %706
    %710 = vset.pattern.permute.xlu0 0
    %711 = vperm.xlu0 %710, %v467
    %v712 = vpop.permute.xlu0 %711
    %715 = vset.pattern.permute.xlu0 0
    %716 = vperm.xlu0 %715, %v468
    %v717 = vpop.permute.xlu0 %716
    %720 = vset.pattern.permute.xlu0 0
    %721 = vperm.xlu0 %720, %v469
    %v722 = vpop.permute.xlu0 %721
    %725 = vset.pattern.permute.xlu0 0
    %726 = vperm.xlu0 %725, %v470
    %v727 = vpop.permute.xlu0 %726
    %730 = vset.pattern.permute.xlu0 0
    %731 = vperm.xlu0 %730, %v471
    %v732 = vpop.permute.xlu0 %731
    %735 = vset.pattern.permute.xlu0 0
    %736 = vperm.xlu0 %735, %v472
    %v737 = vpop.permute.xlu0 %736
    %740 = vset.pattern.permute.xlu0 0
    %741 = vperm.xlu0 %740, %v473
    %v742 = vpop.permute.xlu0 %741
    %745 = vset.pattern.permute.xlu0 0
    %746 = vperm.xlu0 %745, %v474
    %v747 = vpop.permute.xlu0 %746
    %750 = vset.pattern.permute.xlu0 0
    %751 = vperm.xlu0 %750, %v475
    %v752 = vpop.permute.xlu0 %751
    %755 = vset.pattern.permute.xlu0 0
    %756 = vperm.xlu0 %755, %v476
    %v757 = vpop.permute.xlu0 %756
    %760 = vset.pattern.permute.xlu0 0
    %761 = vperm.xlu0 %760, %v477
    %v762 = vpop.permute.xlu0 %761
    %v764 = vmul.f32 %v645, %v687
    %v765 = vmul.f32 %v647, %v692
    %v766 = vmul.f32 %v650, %v697
    %v767 = vmul.f32 %v652, %v702
    %v768 = vmul.f32 %v655, %v707
    %v769 = vmul.f32 %v657, %v712
    %v770 = vmul.f32 %v660, %v717
    %v771 = vmul.f32 %v662, %v722
    %v772 = vmul.f32 %v665, %v727
    %v773 = vmul.f32 %v667, %v732
    %v774 = vmul.f32 %v670, %v737
    %v775 = vmul.f32 %v672, %v742
    %v776 = vmul.f32 %v675, %v747
    %v777 = vmul.f32 %v677, %v752
    %v778 = vmul.f32 %v680, %v757
    %v779 = vmul.f32 %v682, %v762
    %vm780 = vcmask 31744
    %v781 = vsel %vm780, %v764, 0.0
    %v782 = vsel %vm780, %v765, 0.0
    %v783 = vadd.f32 %v781, %v782
    %v784 = vsel %vm780, %v766, 0.0
    %v785 = vadd.f32 %v783, %v784
    %v786 = vsel %vm780, %v767, 0.0
    %v787 = vadd.f32 %v785, %v786
    %v788 = vsel %vm780, %v768, 0.0
    %v789 = vadd.f32 %v787, %v788
    %v790 = vsel %vm780, %v769, 0.0
    %v791 = vadd.f32 %v789, %v790
    %v792 = vsel %vm780, %v770, 0.0
    %v793 = vadd.f32 %v791, %v792
    %v794 = vsel %vm780, %v771, 0.0
    %v795 = vadd.f32 %v793, %v794
    %v796 = vsel %vm780, %v772, 0.0
    %v797 = vadd.f32 %v795, %v796
    %v798 = vsel %vm780, %v773, 0.0
    %v799 = vadd.f32 %v797, %v798
    %v800 = vsel %vm780, %v774, 0.0
    %v801 = vadd.f32 %v799, %v800
    %v802 = vsel %vm780, %v775, 0.0
    %v803 = vadd.f32 %v801, %v802
    %v804 = vsel %vm780, %v776, 0.0
    %v805 = vadd.f32 %v803, %v804
    %v806 = vsel %vm780, %v777, 0.0
    %v807 = vadd.f32 %v805, %v806
    %v808 = vsel %vm780, %v778, 0.0
    %v809 = vadd.f32 %v807, %v808
    %v810 = vsel %vm780, %v779, 0.0
    %v811 = vadd.f32 %v809, %v810
    %v812 = vrot.slane %v811, 4
    %v813 = vadd.f32 %v811, %v812
    %v814 = vrot.slane %v813, 2
    %v815 = vadd.f32 %v813, %v814
    %v816 = vrot.slane %v815, 1
    %v817 = vadd.f32 %v815, %v816
    %v818 = vmul.f32 %v817, 0.008474576
    %v819 = vmul.f32 %v764, %v645
    %v820 = vmul.f32 %v765, %v647
    %v821 = vmul.f32 %v766, %v650
    %v822 = vmul.f32 %v767, %v652
    %v823 = vmul.f32 %v768, %v655
    %v824 = vmul.f32 %v769, %v657
    %v825 = vmul.f32 %v770, %v660
    %v826 = vmul.f32 %v771, %v662
    %v827 = vmul.f32 %v772, %v665
    %v828 = vmul.f32 %v773, %v667
    %v829 = vmul.f32 %v774, %v670
    %v830 = vmul.f32 %v775, %v672
    %v831 = vmul.f32 %v776, %v675
    %v832 = vmul.f32 %v777, %v677
    %v833 = vmul.f32 %v778, %v680
    %v834 = vmul.f32 %v779, %v682
    %v835 = vsel %vm780, %v819, 0.0
    %v836 = vsel %vm780, %v820, 0.0
    %v837 = vadd.f32 %v835, %v836
    %v838 = vsel %vm780, %v821, 0.0
    %v839 = vadd.f32 %v837, %v838
    %v840 = vsel %vm780, %v822, 0.0
    %v841 = vadd.f32 %v839, %v840
    %v842 = vsel %vm780, %v823, 0.0
    %v843 = vadd.f32 %v841, %v842
    %v844 = vsel %vm780, %v824, 0.0
    %v845 = vadd.f32 %v843, %v844
    %v846 = vsel %vm780, %v825, 0.0
    %v847 = vadd.f32 %v845, %v846
    %v848 = vsel %vm780, %v826, 0.0
    %v849 = vadd.f32 %v847, %v848
    %v850 = vsel %vm780, %v827, 0.0
    %v851 = vadd.f32 %v849, %v850
    %v852 = vsel %vm780, %v828, 0.0
    %v853 = vadd.f32 %v851, %v852
    %v854 = vsel %vm780, %v829, 0.0
    %v855 = vadd.f32 %v853, %v854
    %v856 = vsel %vm780, %v830, 0.0
    %v857 = vadd.f32 %v855, %v856
    %v858 = vsel %vm780, %v831, 0.0
    %v859 = vadd.f32 %v857, %v858
    %v860 = vsel %vm780, %v832, 0.0
    %v861 = vadd.f32 %v859, %v860
    %v862 = vsel %vm780, %v833, 0.0
    %v863 = vadd.f32 %v861, %v862
    %v864 = vsel %vm780, %v834, 0.0
    %v865 = vadd.f32 %v863, %v864
    %v866 = vrot.slane %v865, 4
    %v867 = vadd.f32 %v865, %v866
    %v868 = vrot.slane %v867, 2
    %v869 = vadd.f32 %v867, %v868
    %v870 = vrot.slane %v869, 1
    %v871 = vadd.f32 %v869, %v870
    %v872 = vmul.f32 %v871, 0.008474576
    %v873 = vmul.f32 %v818, %v818
    %v874 = vsub.f32 %v872, %v873
    %v875 = vsub.f32 %v645, %v818
    %v876 = vsub.f32 %v647, %v818
    %v877 = vsub.f32 %v650, %v818
    %v878 = vsub.f32 %v652, %v818
    %v879 = vsub.f32 %v655, %v818
    %v880 = vsub.f32 %v657, %v818
    %v881 = vsub.f32 %v660, %v818
    %v882 = vsub.f32 %v662, %v818
    %v883 = vsub.f32 %v665, %v818
    %v884 = vsub.f32 %v667, %v818
    %v885 = vsub.f32 %v670, %v818
    %v886 = vsub.f32 %v672, %v818
    %v887 = vsub.f32 %v675, %v818
    %v888 = vsub.f32 %v677, %v818
    %v889 = vsub.f32 %v680, %v818
    %v890 = vsub.f32 %v682, %v818
    %v891 = vadd.f32 %v874, 1e-05
    %v892 = vrsqrt.pop %v891
    %v893 = vmul.f32 %v892, %v891
    %v894 = vmul.f32 %v893, %v892
    %v895 = vmul.f32 0.5, %v894
    %v896 = vsub.f32 1.5, %v895
    %v897 = vmul.f32 %v892, %v896
    %vm898 = vweird.f32 %v891
    %vm899 = vweird.f32 %v892
    %vm900 = vmor %vm898, %vm899
    %v901 = vsel %vm900, %v892, %v897
    %v902 = vmul.f32 %v875, %v901
    %v903 = vmul.f32 %v876, %v901
    %v904 = vmul.f32 %v877, %v901
    %v905 = vmul.f32 %v878, %v901
    %v906 = vmul.f32 %v879, %v901
    %v907 = vmul.f32 %v880, %v901
    %v908 = vmul.f32 %v881, %v901
    %v909 = vmul.f32 %v882, %v901
    %v910 = vmul.f32 %v883, %v901
    %v911 = vmul.f32 %v884, %v901
    %v912 = vmul.f32 %v885, %v901
    %v913 = vmul.f32 %v886, %v901
    %v914 = vmul.f32 %v887, %v901
    %v915 = vmul.f32 %v888, %v901
    %v916 = vmul.f32 %v889, %v901
    %v917 = vmul.f32 %v890, %v901
    %v919 = vperm.slane %v460, 0
    %v921 = vmul.f32 %v902, %v919
    %v922 = vmul.f32 %v903, %v919
    %v923 = vmul.f32 %v904, %v919
    %v924 = vmul.f32 %v905, %v919
    %v925 = vmul.f32 %v906, %v919
    %v926 = vmul.f32 %v907, %v919
    %v927 = vmul.f32 %v908, %v919
    %v928 = vmul.f32 %v909, %v919
    %v929 = vmul.f32 %v910, %v919
    %v930 = vmul.f32 %v911, %v919
    %v931 = vmul.f32 %v912, %v919
    %v932 = vmul.f32 %v913, %v919
    %v933 = vmul.f32 %v914, %v919
    %v934 = vmul.f32 %v915, %v919
    %v935 = vmul.f32 %v916, %v919
    %v936 = vmul.f32 %v917, %v919
    %v938 = vperm.slane %v461, 0
    %v940 = vadd.f32 %v921, %v938
    %v941 = vadd.f32 %v922, %v938
    %v942 = vadd.f32 %v923, %v938
    %v943 = vadd.f32 %v924, %v938
    %v944 = vadd.f32 %v925, %v938
    %v945 = vadd.f32 %v926, %v938
    %v946 = vadd.f32 %v927, %v938
    %v947 = vadd.f32 %v928, %v938
    %v948 = vadd.f32 %v929, %v938
    %v949 = vadd.f32 %v930, %v938
    %v950 = vadd.f32 %v931, %v938
    %v951 = vadd.f32 %v932, %v938
    %v952 = vadd.f32 %v933, %v938
    %v953 = vadd.f32 %v934, %v938
    %v954 = vadd.f32 %v935, %v938
    %v955 = vadd.f32 %v936, %v938
    %v956 = vmax.f32 %v940, 0.0
    %v957 = vmax.f32 %v941, 0.0
    %v958 = vmax.f32 %v942, 0.0
    %v959 = vmax.f32 %v943, 0.0
    %v960 = vmax.f32 %v944, 0.0
    %v961 = vmax.f32 %v945, 0.0
    %v962 = vmax.f32 %v946, 0.0
    %v963 = vmax.f32 %v947, 0.0
    %v964 = vmax.f32 %v948, 0.0
    %v965 = vmax.f32 %v949, 0.0
    %v966 = vmax.f32 %v950, 0.0
    %v967 = vmax.f32 %v951, 0.0
    %v968 = vmax.f32 %v952, 0.0
    %v969 = vmax.f32 %v953, 0.0
    %v970 = vmax.f32 %v954, 0.0
    %v971 = vmax.f32 %v955, 0.0
    %v988 = vrot.slane %v956, 1
    %v989 = vrot.slane %v957, 1
    %v990 = vsel %vm494, %v988, %v989
    %v991 = vrot.slane %v958, 1
    %v992 = vsel %vm494, %v989, %v991
    %v993 = vrot.slane %v959, 1
    %v994 = vsel %vm494, %v991, %v993
    %v995 = vrot.slane %v960, 1
    %v996 = vsel %vm494, %v993, %v995
    %v997 = vrot.slane %v961, 1
    %v998 = vsel %vm494, %v995, %v997
    %v999 = vrot.slane %v962, 1
    %v1000 = vsel %vm494, %v997, %v999
    %v1001 = vrot.slane %v963, 1
    %v1002 = vsel %vm494, %v999, %v1001
    %v1003 = vrot.slane %v964, 1
    %v1004 = vsel %vm494, %v1001, %v1003
    %v1005 = vrot.slane %v965, 1
    %v1006 = vsel %vm494, %v1003, %v1005
    %v1007 = vrot.slane %v966, 1
    %v1008 = vsel %vm494, %v1005, %v1007
    %v1009 = vrot.slane %v967, 1
    %v1010 = vsel %vm494, %v1007, %v1009
    %v1011 = vrot.slane %v968, 1
    %v1012 = vsel %vm494, %v1009, %v1011
    %v1013 = vrot.slane %v969, 1
    %v1014 = vsel %vm494, %v1011, %v1013
    %v1015 = vrot.slane %v970, 1
    %v1016 = vsel %vm494, %v1013, %v1015
    %v1017 = vrot.slane %v971, 1
    %v1018 = vsel %vm494, %v1015, %v1017
    %v1036 = vsel %vm494, %v1017, %v988
    %v1037 = vmax.f32 %v956, %v990
    %v1038 = vmax.f32 %v957, %v992
    %v1039 = vmax.f32 %v958, %v994
    %v1040 = vmax.f32 %v959, %v996
    %v1041 = vmax.f32 %v960, %v998
    %v1042 = vmax.f32 %v961, %v1000
    %v1043 = vmax.f32 %v962, %v1002
    %v1044 = vmax.f32 %v963, %v1004
    %v1045 = vmax.f32 %v964, %v1006
    %v1046 = vmax.f32 %v965, %v1008
    %v1047 = vmax.f32 %v966, %v1010
    %v1048 = vmax.f32 %v967, %v1012
    %v1049 = vmax.f32 %v968, %v1014
    %v1050 = vmax.f32 %v969, %v1016
    %v1051 = vmax.f32 %v970, %v1018
    %v1052 = vmax.f32 %v971, %v1036
    %v1053 = vld [vmem:[%s6] sm:$0xf]
    %v1054 = vld [vmem:[%s7] sm:$0x1]
    %v1055 = vld [vmem:[%s8] sm:$0x1]
    %v1056 = vld [vmem:[%s9] sm:$0x1]
    %v1057 = vld [vmem:[%s10] sm:$0xff]
    %v1058 = vld [vmem:[%s10 + $0x8] sm:$0xff]
    %v1059 = vld [vmem:[%s10 + $0x10] sm:$0xff]
    %v1060 = vld [vmem:[%s10 + $0x18] sm:$0xff]
    %v1061 = vld [vmem:[%s10 + $0x20] sm:$0xff]
    %v1062 = vld [vmem:[%s10 + $0x28] sm:$0xff]
    %v1063 = vld [vmem:[%s10 + $0x30] sm:$0xff]
    %v1064 = vld [vmem:[%s10 + $0x38] sm:$0xff]
    %v1065 = vld [vmem:[%s10 + $0x40] sm:$0xff]
    %v1066 = vld [vmem:[%s10 + $0x48] sm:$0xff]
    %v1067 = vld [vmem:[%s10 + $0x50] sm:$0xff]
    %v1068 = vld [vmem:[%s10 + $0x58] sm:$0xff]
    %v1069 = vld [vmem:[%s10 + $0x60] sm:$0xff]
    %v1070 = vld [vmem:[%s10 + $0x68] sm:$0xff]
    %v1071 = vld [vmem:[%s10 + $0x70] sm:$0xff]
    %v1072 = vld [vmem:[%s10 + $0x78] sm:$0xff]
    %vm1089 = vcmask 1045504
    %v1090 = vrot.slane %v1037, 2
    %v1091 = vrot.slane %v1038, 2
    %v1092 = vsel %vm1089, %v1090, %v1091
    %v1093 = vrot.slane %v1039, 2
    %v1094 = vsel %vm1089, %v1091, %v1093
    %v1095 = vrot.slane %v1040, 2
    %v1096 = vsel %vm1089, %v1093, %v1095
    %v1097 = vrot.slane %v1041, 2
    %v1098 = vsel %vm1089, %v1095, %v1097
    %v1099 = vrot.slane %v1042, 2
    %v1100 = vsel %vm1089, %v1097, %v1099
    %v1101 = vrot.slane %v1043, 2
    %v1102 = vsel %vm1089, %v1099, %v1101
    %v1103 = vrot.slane %v1044, 2
    %v1104 = vsel %vm1089, %v1101, %v1103
    %v1105 = vrot.slane %v1045, 2
    %v1106 = vsel %vm1089, %v1103, %v1105
    %v1107 = vrot.slane %v1046, 2
    %v1108 = vsel %vm1089, %v1105, %v1107
    %v1109 = vrot.slane %v1047, 2
    %v1110 = vsel %vm1089, %v1107, %v1109
    %v1111 = vrot.slane %v1048, 2
    %v1112 = vsel %vm1089, %v1109, %v1111
    %v1113 = vrot.slane %v1049, 2
    %v1114 = vsel %vm1089, %v1111, %v1113
    %v1115 = vrot.slane %v1050, 2
    %v1116 = vsel %vm1089, %v1113, %v1115
    %v1117 = vrot.slane %v1051, 2
    %v1118 = vsel %vm1089, %v1115, %v1117
    %v1119 = vrot.slane %v1052, 2
    %v1120 = vsel %vm1089, %v1117, %v1119
    %v1123 = vsel %vm1089, %v1119, %v1090
    %1125 = vrot.lane.b32.xlu0 %v1092, 4
    %v1126 = vpop.permute.xlu0 %1125
    %1127 = vrot.lane.b32.xlu0 %v1094, 4
    %v1128 = vpop.permute.xlu0 %1127
    %1129 = vrot.lane.b32.xlu0 %v1096, 4
    %v1130 = vpop.permute.xlu0 %1129
    %1131 = vrot.lane.b32.xlu0 %v1098, 4
    %v1132 = vpop.permute.xlu0 %1131
    %1133 = vrot.lane.b32.xlu0 %v1100, 4
    %v1134 = vpop.permute.xlu0 %1133
    %1135 = vrot.lane.b32.xlu0 %v1102, 4
    %v1136 = vpop.permute.xlu0 %1135
    %1137 = vrot.lane.b32.xlu0 %v1104, 4
    %v1138 = vpop.permute.xlu0 %1137
    %1139 = vrot.lane.b32.xlu0 %v1106, 4
    %v1140 = vpop.permute.xlu0 %1139
    %1141 = vrot.lane.b32.xlu0 %v1108, 4
    %v1142 = vpop.permute.xlu0 %1141
    %1143 = vrot.lane.b32.xlu0 %v1110, 4
    %v1144 = vpop.permute.xlu0 %1143
    %1145 = vrot.lane.b32.xlu0 %v1112, 4
    %v1146 = vpop.permute.xlu0 %1145
    %1147 = vrot.lane.b32.xlu0 %v1114, 4
    %v1148 = vpop.permute.xlu0 %1147
    %1149 = vrot.lane.b32.xlu0 %v1116, 4
    %v1150 = vpop.permute.xlu0 %1149
    %1151 = vrot.lane.b32.xlu0 %v1118, 4
    %v1152 = vpop.permute.xlu0 %1151
    %1153 = vrot.lane.b32.xlu0 %v1120, 4
    %v1154 = vpop.permute.xlu0 %1153
    %1155 = vrot.lane.b32.xlu0 %v1123, 4
    %v1156 = vpop.permute.xlu0 %1155
    %v1173 = vsel %vm780, %v1037, %v1126
    %v1174 = vsel %vm780, %v1038, %v1128
    %v1175 = vsel %vm780, %v1039, %v1130
    %v1176 = vsel %vm780, %v1040, %v1132
    %v1177 = vsel %vm780, %v1041, %v1134
    %v1178 = vsel %vm780, %v1042, %v1136
    %v1179 = vsel %vm780, %v1043, %v1138
    %v1180 = vsel %vm780, %v1044, %v1140
    %v1181 = vsel %vm780, %v1045, %v1142
    %v1182 = vsel %vm780, %v1046, %v1144
    %v1183 = vsel %vm780, %v1047, %v1146
    %v1184 = vsel %vm780, %v1048, %v1148
    %v1185 = vsel %vm780, %v1049, %v1150
    %v1186 = vsel %vm780, %v1050, %v1152
    %v1187 = vsel %vm780, %v1051, %v1154
    %v1188 = vsel %vm780, %v1052, %v1156
    %v1189 = vpack.c.bf16 %v1174, %v1173
    %v1190 = vpack.c.bf16 %v1176, %v1175
    %v1191 = vpack.c.bf16 %v1178, %v1177
    %v1192 = vpack.c.bf16 %v1180, %v1179
    %v1193 = vpack.c.bf16 %v1182, %v1181
    %v1194 = vpack.c.bf16 %v1184, %v1183
    %v1195 = vpack.c.bf16 %v1186, %v1185
    %v1196 = vpack.c.bf16 %v1188, %v1187
    %v1198 = vperm.slane %v1054, 0
    %vm1200 = vcmask 64512
    %v1202 = vsel %vm1200, %v1189, 0
    %v1205 = vsel %vm1200, %v1190, 0
    %v1208 = vsel %vm1200, %v1191, 0
    %v1211 = vsel %vm1200, %v1192, 0
    %v1214 = vsel %vm1200, %v1193, 0
    %v1217 = vsel %vm1200, %v1194, 0
    %v1220 = vsel %vm1200, %v1195, 0
    %v1223 = vsel %vm1200, %v1196, 0
    %vm1225 = vcmask 1043456
    %v1227 = vsel %vm1225, %v1053, 0
    %1229 = vmatpush.bf16.msra.mxu0 0
    %1230 = vmatpush.bf16.msra.mxu0 0
    %1231 = vmatpush.bf16.msra.mxu0 0
    %1232 = vmatpush.bf16.msra.mxu0 0
    %1233 = vmatpush.bf16.msra.mxu0 0
    %1234 = vmatpush.bf16.msra.mxu0 0
    %1235 = vmatpush.bf16.msra.mxu0 0
    %1236 = vmatpush.bf16.msra.mxu0 %v1227
    %1237 = vmatmul.bf16.gmra.mxu0 %v1202
    %v1238 = vpop.f32.mrf.mxu0
    %v1239 = vadd.f32 %v1198, %v1238
    %v1240 = vpop.f32.mrf.mxu0
    %v1241 = vadd.f32 %v1198, %v1240
    %1242 = vmatmul.bf16.gmra.mxu0 %v1205
    %v1243 = vpop.f32.mrf.mxu0
    %v1244 = vadd.f32 %v1198, %v1243
    %v1245 = vpop.f32.mrf.mxu0
    %v1246 = vadd.f32 %v1198, %v1245
    %1247 = vmatmul.bf16.gmra.mxu0 %v1208
    %v1248 = vpop.f32.mrf.mxu0
    %v1249 = vadd.f32 %v1198, %v1248
    %v1250 = vpop.f32.mrf.mxu0
    %v1251 = vadd.f32 %v1198, %v1250
    %1252 = vmatmul.bf16.gmra.mxu0 %v1211
    %v1253 = vpop.f32.mrf.mxu0
    %v1254 = vadd.f32 %v1198, %v1253
    %v1255 = vpop.f32.mrf.mxu0
    %v1256 = vadd.f32 %v1198, %v1255
    %1257 = vmatmul.bf16.gmra.mxu0 %v1214
    %v1258 = vpop.f32.mrf.mxu0
    %v1259 = vadd.f32 %v1198, %v1258
    %v1260 = vpop.f32.mrf.mxu0
    %v1261 = vadd.f32 %v1198, %v1260
    %1262 = vmatmul.bf16.gmra.mxu0 %v1217
    %v1263 = vpop.f32.mrf.mxu0
    %v1264 = vadd.f32 %v1198, %v1263
    %v1265 = vpop.f32.mrf.mxu0
    %v1266 = vadd.f32 %v1198, %v1265
    %1267 = vmatmul.bf16.gmra.mxu0 %v1220
    %v1268 = vpop.f32.mrf.mxu0
    %v1269 = vadd.f32 %v1198, %v1268
    %v1270 = vpop.f32.mrf.mxu0
    %v1271 = vadd.f32 %v1198, %v1270
    %1272 = vmatmul.bf16.gmra.mxu0 %v1223
    %v1273 = vpop.f32.mrf.mxu0
    %v1274 = vadd.f32 %v1198, %v1273
    %v1275 = vpop.f32.mrf.mxu0
    %v1276 = vadd.f32 %v1198, %v1275
    %1277 = vdwg.mxu0
    %1279 = vset.pattern.permute.xlu0 0
    %1280 = vperm.xlu0 %1279, %v1057
    %v1281 = vpop.permute.xlu0 %1280
    %1284 = vset.pattern.permute.xlu0 0
    %1285 = vperm.xlu0 %1284, %v1058
    %v1286 = vpop.permute.xlu0 %1285
    %1289 = vset.pattern.permute.xlu0 0
    %1290 = vperm.xlu0 %1289, %v1059
    %v1291 = vpop.permute.xlu0 %1290
    %1294 = vset.pattern.permute.xlu0 0
    %1295 = vperm.xlu0 %1294, %v1060
    %v1296 = vpop.permute.xlu0 %1295
    %1299 = vset.pattern.permute.xlu0 0
    %1300 = vperm.xlu0 %1299, %v1061
    %v1301 = vpop.permute.xlu0 %1300
    %1304 = vset.pattern.permute.xlu0 0
    %1305 = vperm.xlu0 %1304, %v1062
    %v1306 = vpop.permute.xlu0 %1305
    %1309 = vset.pattern.permute.xlu0 0
    %1310 = vperm.xlu0 %1309, %v1063
    %v1311 = vpop.permute.xlu0 %1310
    %1314 = vset.pattern.permute.xlu0 0
    %1315 = vperm.xlu0 %1314, %v1064
    %v1316 = vpop.permute.xlu0 %1315
    %1319 = vset.pattern.permute.xlu0 0
    %1320 = vperm.xlu0 %1319, %v1065
    %v1321 = vpop.permute.xlu0 %1320
    %1324 = vset.pattern.permute.xlu0 0
    %1325 = vperm.xlu0 %1324, %v1066
    %v1326 = vpop.permute.xlu0 %1325
    %1329 = vset.pattern.permute.xlu0 0
    %1330 = vperm.xlu0 %1329, %v1067
    %v1331 = vpop.permute.xlu0 %1330
    %1334 = vset.pattern.permute.xlu0 0
    %1335 = vperm.xlu0 %1334, %v1068
    %v1336 = vpop.permute.xlu0 %1335
    %1339 = vset.pattern.permute.xlu0 0
    %1340 = vperm.xlu0 %1339, %v1069
    %v1341 = vpop.permute.xlu0 %1340
    %1344 = vset.pattern.permute.xlu0 0
    %1345 = vperm.xlu0 %1344, %v1070
    %v1346 = vpop.permute.xlu0 %1345
    %1349 = vset.pattern.permute.xlu0 0
    %1350 = vperm.xlu0 %1349, %v1071
    %v1351 = vpop.permute.xlu0 %1350
    %1354 = vset.pattern.permute.xlu0 0
    %1355 = vperm.xlu0 %1354, %v1072
    %v1356 = vpop.permute.xlu0 %1355
    %v1358 = vmul.f32 %v1239, %v1281
    %v1359 = vmul.f32 %v1241, %v1286
    %v1360 = vmul.f32 %v1244, %v1291
    %v1361 = vmul.f32 %v1246, %v1296
    %v1362 = vmul.f32 %v1249, %v1301
    %v1363 = vmul.f32 %v1251, %v1306
    %v1364 = vmul.f32 %v1254, %v1311
    %v1365 = vmul.f32 %v1256, %v1316
    %v1366 = vmul.f32 %v1259, %v1321
    %v1367 = vmul.f32 %v1261, %v1326
    %v1368 = vmul.f32 %v1264, %v1331
    %v1369 = vmul.f32 %v1266, %v1336
    %v1370 = vmul.f32 %v1269, %v1341
    %v1371 = vmul.f32 %v1271, %v1346
    %v1372 = vmul.f32 %v1274, %v1351
    %v1373 = vmul.f32 %v1276, %v1356
    %vm1374 = vcmask 130048
    %v1375 = vsel %vm1374, %v1358, 0.0
    %v1376 = vsel %vm1374, %v1359, 0.0
    %v1377 = vadd.f32 %v1375, %v1376
    %v1378 = vsel %vm1374, %v1360, 0.0
    %v1379 = vadd.f32 %v1377, %v1378
    %v1380 = vsel %vm1374, %v1361, 0.0
    %v1381 = vadd.f32 %v1379, %v1380
    %v1382 = vsel %vm1374, %v1362, 0.0
    %v1383 = vadd.f32 %v1381, %v1382
    %v1384 = vsel %vm1374, %v1363, 0.0
    %v1385 = vadd.f32 %v1383, %v1384
    %v1386 = vsel %vm1374, %v1364, 0.0
    %v1387 = vadd.f32 %v1385, %v1386
    %v1388 = vsel %vm1374, %v1365, 0.0
    %v1389 = vadd.f32 %v1387, %v1388
    %v1390 = vsel %vm1374, %v1366, 0.0
    %v1391 = vadd.f32 %v1389, %v1390
    %v1392 = vsel %vm1374, %v1367, 0.0
    %v1393 = vadd.f32 %v1391, %v1392
    %v1394 = vsel %vm1374, %v1368, 0.0
    %v1395 = vadd.f32 %v1393, %v1394
    %v1396 = vsel %vm1374, %v1369, 0.0
    %v1397 = vadd.f32 %v1395, %v1396
    %v1398 = vsel %vm1374, %v1370, 0.0
    %v1399 = vadd.f32 %v1397, %v1398
    %v1400 = vsel %vm1374, %v1371, 0.0
    %v1401 = vadd.f32 %v1399, %v1400
    %v1402 = vsel %vm1374, %v1372, 0.0
    %v1403 = vadd.f32 %v1401, %v1402
    %v1404 = vsel %vm1374, %v1373, 0.0
    %v1405 = vadd.f32 %v1403, %v1404
    %v1406 = vrot.slane %v1405, 4
    %v1407 = vadd.f32 %v1405, %v1406
    %v1408 = vrot.slane %v1407, 2
    %v1409 = vadd.f32 %v1407, %v1408
    %v1410 = vrot.slane %v1409, 1
    %v1411 = vadd.f32 %v1409, %v1410
    %v1412 = vmul.f32 %v1411, 0.017857144
    %v1413 = vmul.f32 %v1358, %v1239
    %v1414 = vmul.f32 %v1359, %v1241
    %v1415 = vmul.f32 %v1360, %v1244
    %v1416 = vmul.f32 %v1361, %v1246
    %v1417 = vmul.f32 %v1362, %v1249
    %v1418 = vmul.f32 %v1363, %v1251
    %v1419 = vmul.f32 %v1364, %v1254
    %v1420 = vmul.f32 %v1365, %v1256
    %v1421 = vmul.f32 %v1366, %v1259
    %v1422 = vmul.f32 %v1367, %v1261
    %v1423 = vmul.f32 %v1368, %v1264
    %v1424 = vmul.f32 %v1369, %v1266
    %v1425 = vmul.f32 %v1370, %v1269
    %v1426 = vmul.f32 %v1371, %v1271
    %v1427 = vmul.f32 %v1372, %v1274
    %v1428 = vmul.f32 %v1373, %v1276
    %v1429 = vsel %vm1374, %v1413, 0.0
    %v1430 = vsel %vm1374, %v1414, 0.0
    %v1431 = vadd.f32 %v1429, %v1430
    %v1432 = vsel %vm1374, %v1415, 0.0
    %v1433 = vadd.f32 %v1431, %v1432
    %v1434 = vsel %vm1374, %v1416, 0.0
    %v1435 = vadd.f32 %v1433, %v1434
    %v1436 = vsel %vm1374, %v1417, 0.0
    %v1437 = vadd.f32 %v1435, %v1436
    %v1438 = vsel %vm1374, %v1418, 0.0
    %v1439 = vadd.f32 %v1437, %v1438
    %v1440 = vsel %vm1374, %v1419, 0.0
    %v1441 = vadd.f32 %v1439, %v1440
    %v1442 = vsel %vm1374, %v1420, 0.0
    %v1443 = vadd.f32 %v1441, %v1442
    %v1444 = vsel %vm1374, %v1421, 0.0
    %v1445 = vadd.f32 %v1443, %v1444
    %v1446 = vsel %vm1374, %v1422, 0.0
    %v1447 = vadd.f32 %v1445, %v1446
    %v1448 = vsel %vm1374, %v1423, 0.0
    %v1449 = vadd.f32 %v1447, %v1448
    %v1450 = vsel %vm1374, %v1424, 0.0
    %v1451 = vadd.f32 %v1449, %v1450
    %v1452 = vsel %vm1374, %v1425, 0.0
    %v1453 = vadd.f32 %v1451, %v1452
    %v1454 = vsel %vm1374, %v1426, 0.0
    %v1455 = vadd.f32 %v1453, %v1454
    %v1456 = vsel %vm1374, %v1427, 0.0
    %v1457 = vadd.f32 %v1455, %v1456
    %v1458 = vsel %vm1374, %v1428, 0.0
    %v1459 = vadd.f32 %v1457, %v1458
    %v1460 = vrot.slane %v1459, 4
    %v1461 = vadd.f32 %v1459, %v1460
    %v1462 = vrot.slane %v1461, 2
    %v1463 = vadd.f32 %v1461, %v1462
    %v1464 = vrot.slane %v1463, 1
    %v1465 = vadd.f32 %v1463, %v1464
    %v1466 = vmul.f32 %v1465, 0.017857144
    %v1467 = vmul.f32 %v1412, %v1412
    %v1468 = vsub.f32 %v1466, %v1467
    %v1469 = vsub.f32 %v1239, %v1412
    %v1470 = vsub.f32 %v1241, %v1412
    %v1471 = vsub.f32 %v1244, %v1412
    %v1472 = vsub.f32 %v1246, %v1412
    %v1473 = vsub.f32 %v1249, %v1412
    %v1474 = vsub.f32 %v1251, %v1412
    %v1475 = vsub.f32 %v1254, %v1412
    %v1476 = vsub.f32 %v1256, %v1412
    %v1477 = vsub.f32 %v1259, %v1412
    %v1478 = vsub.f32 %v1261, %v1412
    %v1479 = vsub.f32 %v1264, %v1412
    %v1480 = vsub.f32 %v1266, %v1412
    %v1481 = vsub.f32 %v1269, %v1412
    %v1482 = vsub.f32 %v1271, %v1412
    %v1483 = vsub.f32 %v1274, %v1412
    %v1484 = vsub.f32 %v1276, %v1412
    %v1485 = vadd.f32 %v1468, 1e-05
    %v1486 = vrsqrt.pop %v1485
    %v1487 = vmul.f32 %v1486, %v1485
    %v1488 = vmul.f32 %v1487, %v1486
    %v1489 = vmul.f32 0.5, %v1488
    %v1490 = vsub.f32 1.5, %v1489
    %v1491 = vmul.f32 %v1486, %v1490
    %vm1492 = vweird.f32 %v1485
    %vm1493 = vweird.f32 %v1486
    %vm1494 = vmor %vm1492, %vm1493
    %v1495 = vsel %vm1494, %v1486, %v1491
    %v1496 = vmul.f32 %v1469, %v1495
    %v1497 = vmul.f32 %v1470, %v1495
    %v1498 = vmul.f32 %v1471, %v1495
    %v1499 = vmul.f32 %v1472, %v1495
    %v1500 = vmul.f32 %v1473, %v1495
    %v1501 = vmul.f32 %v1474, %v1495
    %v1502 = vmul.f32 %v1475, %v1495
    %v1503 = vmul.f32 %v1476, %v1495
    %v1504 = vmul.f32 %v1477, %v1495
    %v1505 = vmul.f32 %v1478, %v1495
    %v1506 = vmul.f32 %v1479, %v1495
    %v1507 = vmul.f32 %v1480, %v1495
    %v1508 = vmul.f32 %v1481, %v1495
    %v1509 = vmul.f32 %v1482, %v1495
    %v1510 = vmul.f32 %v1483, %v1495
    %v1511 = vmul.f32 %v1484, %v1495
    %v1513 = vperm.slane %v1055, 0
    %v1515 = vmul.f32 %v1496, %v1513
    %v1516 = vmul.f32 %v1497, %v1513
    %v1517 = vmul.f32 %v1498, %v1513
    %v1518 = vmul.f32 %v1499, %v1513
    %v1519 = vmul.f32 %v1500, %v1513
    %v1520 = vmul.f32 %v1501, %v1513
    %v1521 = vmul.f32 %v1502, %v1513
    %v1522 = vmul.f32 %v1503, %v1513
    %v1523 = vmul.f32 %v1504, %v1513
    %v1524 = vmul.f32 %v1505, %v1513
    %v1525 = vmul.f32 %v1506, %v1513
    %v1526 = vmul.f32 %v1507, %v1513
    %v1527 = vmul.f32 %v1508, %v1513
    %v1528 = vmul.f32 %v1509, %v1513
    %v1529 = vmul.f32 %v1510, %v1513
    %v1530 = vmul.f32 %v1511, %v1513
    %v1532 = vperm.slane %v1056, 0
    %v1534 = vadd.f32 %v1515, %v1532
    %v1535 = vadd.f32 %v1516, %v1532
    %v1536 = vadd.f32 %v1517, %v1532
    %v1537 = vadd.f32 %v1518, %v1532
    %v1538 = vadd.f32 %v1519, %v1532
    %v1539 = vadd.f32 %v1520, %v1532
    %v1540 = vadd.f32 %v1521, %v1532
    %v1541 = vadd.f32 %v1522, %v1532
    %v1542 = vadd.f32 %v1523, %v1532
    %v1543 = vadd.f32 %v1524, %v1532
    %v1544 = vadd.f32 %v1525, %v1532
    %v1545 = vadd.f32 %v1526, %v1532
    %v1546 = vadd.f32 %v1527, %v1532
    %v1547 = vadd.f32 %v1528, %v1532
    %v1548 = vadd.f32 %v1529, %v1532
    %v1549 = vadd.f32 %v1530, %v1532
    %v1550 = vmax.f32 %v1534, 0.0
    %v1551 = vmax.f32 %v1535, 0.0
    %v1552 = vmax.f32 %v1536, 0.0
    %v1553 = vmax.f32 %v1537, 0.0
    %v1554 = vmax.f32 %v1538, 0.0
    %v1555 = vmax.f32 %v1539, 0.0
    %v1556 = vmax.f32 %v1540, 0.0
    %v1557 = vmax.f32 %v1541, 0.0
    %v1558 = vmax.f32 %v1542, 0.0
    %v1559 = vmax.f32 %v1543, 0.0
    %v1560 = vmax.f32 %v1544, 0.0
    %v1561 = vmax.f32 %v1545, 0.0
    %v1562 = vmax.f32 %v1546, 0.0
    %v1563 = vmax.f32 %v1547, 0.0
    %v1564 = vmax.f32 %v1548, 0.0
    %v1565 = vmax.f32 %v1549, 0.0
    %v1582 = vrot.slane %v1550, 2
    %v1583 = vrot.slane %v1551, 2
    %v1584 = vsel %vm1089, %v1582, %v1583
    %v1585 = vrot.slane %v1552, 2
    %v1586 = vsel %vm1089, %v1583, %v1585
    %v1587 = vrot.slane %v1553, 2
    %v1588 = vsel %vm1089, %v1585, %v1587
    %v1589 = vrot.slane %v1554, 2
    %v1590 = vsel %vm1089, %v1587, %v1589
    %v1591 = vrot.slane %v1555, 2
    %v1592 = vsel %vm1089, %v1589, %v1591
    %v1593 = vrot.slane %v1556, 2
    %v1594 = vsel %vm1089, %v1591, %v1593
    %v1595 = vrot.slane %v1557, 2
    %v1596 = vsel %vm1089, %v1593, %v1595
    %v1597 = vrot.slane %v1558, 2
    %v1598 = vsel %vm1089, %v1595, %v1597
    %v1599 = vrot.slane %v1559, 2
    %v1600 = vsel %vm1089, %v1597, %v1599
    %v1601 = vrot.slane %v1560, 2
    %v1602 = vsel %vm1089, %v1599, %v1601
    %v1603 = vrot.slane %v1561, 2
    %v1604 = vsel %vm1089, %v1601, %v1603
    %v1605 = vrot.slane %v1562, 2
    %v1606 = vsel %vm1089, %v1603, %v1605
    %v1607 = vrot.slane %v1563, 2
    %v1608 = vsel %vm1089, %v1605, %v1607
    %v1609 = vrot.slane %v1564, 2
    %v1610 = vsel %vm1089, %v1607, %v1609
    %v1611 = vrot.slane %v1565, 2
    %v1612 = vsel %vm1089, %v1609, %v1611
    %v1630 = vsel %vm1089, %v1611, %v1582
    %v1631 = vmax.f32 %v1550, %v1584
    %v1632 = vmax.f32 %v1551, %v1586
    %v1633 = vmax.f32 %v1552, %v1588
    %v1634 = vmax.f32 %v1553, %v1590
    %v1635 = vmax.f32 %v1554, %v1592
    %v1636 = vmax.f32 %v1555, %v1594
    %v1637 = vmax.f32 %v1556, %v1596
    %v1638 = vmax.f32 %v1557, %v1598
    %v1639 = vmax.f32 %v1558, %v1600
    %v1640 = vmax.f32 %v1559, %v1602
    %v1641 = vmax.f32 %v1560, %v1604
    %v1642 = vmax.f32 %v1561, %v1606
    %v1643 = vmax.f32 %v1562, %v1608
    %v1644 = vmax.f32 %v1563, %v1610
    %v1645 = vmax.f32 %v1564, %v1612
    %v1646 = vmax.f32 %v1565, %v1630
    %v1647 = vld [vmem:[%s11] sm:$0xf]
    %v1648 = vld [vmem:[%s11 + $0x4] sm:$0xf]
    %v1649 = vld [vmem:[%s11 + $0x8] sm:$0xf]
    %v1650 = vld [vmem:[%s11 + $0xc] sm:$0xf]
    %v1651 = vld [vmem:[%s12] sm:$0x1]
    %v1652 = vld [vmem:[%s13] sm:$0x1]
    %v1653 = vld [vmem:[%s14] sm:$0x1]
    %v1654 = vld [vmem:[%s15] sm:$0xff]
    %v1655 = vld [vmem:[%s15 + $0x8] sm:$0xff]
    %v1656 = vld [vmem:[%s15 + $0x10] sm:$0xff]
    %v1657 = vld [vmem:[%s15 + $0x18] sm:$0xff]
    %v1658 = vld [vmem:[%s15 + $0x20] sm:$0xff]
    %v1659 = vld [vmem:[%s15 + $0x28] sm:$0xff]
    %v1660 = vld [vmem:[%s15 + $0x30] sm:$0xff]
    %v1661 = vld [vmem:[%s15 + $0x38] sm:$0xff]
    %v1662 = vld [vmem:[%s15 + $0x40] sm:$0xff]
    %v1663 = vld [vmem:[%s15 + $0x48] sm:$0xff]
    %v1664 = vld [vmem:[%s15 + $0x50] sm:$0xff]
    %v1665 = vld [vmem:[%s15 + $0x58] sm:$0xff]
    %v1666 = vld [vmem:[%s15 + $0x60] sm:$0xff]
    %v1667 = vld [vmem:[%s15 + $0x68] sm:$0xff]
    %v1668 = vld [vmem:[%s15 + $0x70] sm:$0xff]
    %v1669 = vld [vmem:[%s15 + $0x78] sm:$0xff]
    %v1686 = vrot.slane %v1631, 4
    %v1687 = vrot.slane %v1632, 4
    %v1688 = vsel %vm1225, %v1686, %v1687
    %v1689 = vrot.slane %v1633, 4
    %v1690 = vsel %vm1225, %v1687, %v1689
    %v1691 = vrot.slane %v1634, 4
    %v1692 = vsel %vm1225, %v1689, %v1691
    %v1693 = vrot.slane %v1635, 4
    %v1694 = vsel %vm1225, %v1691, %v1693
    %v1695 = vrot.slane %v1636, 4
    %v1696 = vsel %vm1225, %v1693, %v1695
    %v1697 = vrot.slane %v1637, 4
    %v1698 = vsel %vm1225, %v1695, %v1697
    %v1699 = vrot.slane %v1638, 4
    %v1700 = vsel %vm1225, %v1697, %v1699
    %v1701 = vrot.slane %v1639, 4
    %v1702 = vsel %vm1225, %v1699, %v1701
    %v1703 = vrot.slane %v1640, 4
    %v1704 = vsel %vm1225, %v1701, %v1703
    %v1705 = vrot.slane %v1641, 4
    %v1706 = vsel %vm1225, %v1703, %v1705
    %v1707 = vrot.slane %v1642, 4
    %v1708 = vsel %vm1225, %v1705, %v1707
    %v1709 = vrot.slane %v1643, 4
    %v1710 = vsel %vm1225, %v1707, %v1709
    %v1711 = vrot.slane %v1644, 4
    %v1712 = vsel %vm1225, %v1709, %v1711
    %v1713 = vrot.slane %v1645, 4
    %v1714 = vsel %vm1225, %v1711, %v1713
    %v1715 = vrot.slane %v1646, 4
    %v1716 = vsel %vm1225, %v1713, %v1715
    %v1719 = vsel %vm1225, %v1715, %v1686
    %1721 = vrot.lane.b32.xlu0 %v1688, 16
    %v1722 = vpop.permute.xlu0 %1721
    %1723 = vrot.lane.b32.xlu0 %v1690, 16
    %v1724 = vpop.permute.xlu0 %1723
    %1725 = vrot.lane.b32.xlu0 %v1692, 16
    %v1726 = vpop.permute.xlu0 %1725
    %1727 = vrot.lane.b32.xlu0 %v1694, 16
    %v1728 = vpop.permute.xlu0 %1727
    %1729 = vrot.lane.b32.xlu0 %v1696, 16
    %v1730 = vpop.permute.xlu0 %1729
    %1731 = vrot.lane.b32.xlu0 %v1698, 16
    %v1732 = vpop.permute.xlu0 %1731
    %1733 = vrot.lane.b32.xlu0 %v1700, 16
    %v1734 = vpop.permute.xlu0 %1733
    %1735 = vrot.lane.b32.xlu0 %v1702, 16
    %v1736 = vpop.permute.xlu0 %1735
    %1737 = vrot.lane.b32.xlu0 %v1704, 16
    %v1738 = vpop.permute.xlu0 %1737
    %1739 = vrot.lane.b32.xlu0 %v1706, 16
    %v1740 = vpop.permute.xlu0 %1739
    %1741 = vrot.lane.b32.xlu0 %v1708, 16
    %v1742 = vpop.permute.xlu0 %1741
    %1743 = vrot.lane.b32.xlu0 %v1710, 16
    %v1744 = vpop.permute.xlu0 %1743
    %1745 = vrot.lane.b32.xlu0 %v1712, 16
    %v1746 = vpop.permute.xlu0 %1745
    %1747 = vrot.lane.b32.xlu0 %v1714, 16
    %v1748 = vpop.permute.xlu0 %1747
    %1749 = vrot.lane.b32.xlu0 %v1716, 16
    %v1750 = vpop.permute.xlu0 %1749
    %1751 = vrot.lane.b32.xlu0 %v1719, 16
    %v1752 = vpop.permute.xlu0 %1751
    %v1769 = vsel %vm1374, %v1631, %v1722
    %v1770 = vsel %vm1374, %v1632, %v1724
    %v1771 = vsel %vm1374, %v1633, %v1726
    %v1772 = vsel %vm1374, %v1634, %v1728
    %v1773 = vsel %vm1374, %v1635, %v1730
    %v1774 = vsel %vm1374, %v1636, %v1732
    %v1775 = vsel %vm1374, %v1637, %v1734
    %v1776 = vsel %vm1374, %v1638, %v1736
    %v1777 = vsel %vm1374, %v1639, %v1738
    %v1778 = vsel %vm1374, %v1640, %v1740
    %v1779 = vsel %vm1374, %v1641, %v1742
    %v1780 = vsel %vm1374, %v1642, %v1744
    %v1781 = vsel %vm1374, %v1643, %v1746
    %v1782 = vsel %vm1374, %v1644, %v1748
    %v1783 = vsel %vm1374, %v1645, %v1750
    %v1784 = vsel %vm1374, %v1646, %v1752
    %v1785 = vpack.c.bf16 %v1770, %v1769
    %v1786 = vpack.c.bf16 %v1772, %v1771
    %v1787 = vpack.c.bf16 %v1774, %v1773
    %v1788 = vpack.c.bf16 %v1776, %v1775
    %v1789 = vpack.c.bf16 %v1778, %v1777
    %v1790 = vpack.c.bf16 %v1780, %v1779
    %v1791 = vpack.c.bf16 %v1782, %v1781
    %v1792 = vpack.c.bf16 %v1784, %v1783
    %v1794 = vperm.slane %v1651, 0
    %v1800 = vunpack.c.l.b16 %v1647
    %v1801 = vunpack.c.l.b16 %v1648
    %v1802 = vunpack.c.l.b16 %v1649
    %v1803 = vunpack.c.l.b16 %v1650
    %v1804 = vpack.c.b16 %v1801, %v1800
    %v1805 = vpack.c.b16 %v1803, %v1802
    %vm1808 = vcmask 261120
    %v1810 = vsel %vm1808, %v1785, 0
    %v1813 = vsel %vm1808, %v1786, 0
    %v1816 = vsel %vm1808, %v1787, 0
    %v1819 = vsel %vm1808, %v1788, 0
    %v1822 = vsel %vm1808, %v1789, 0
    %v1825 = vsel %vm1808, %v1790, 0
    %v1828 = vsel %vm1808, %v1791, 0
    %v1831 = vsel %vm1808, %v1792, 0
    %1833 = vmatpush.bf16.msra.mxu0 0
    %1834 = vmatpush.bf16.msra.mxu0 0
    %1835 = vmatpush.bf16.msra.mxu0 0
    %1836 = vmatpush.bf16.msra.mxu0 0
    %1837 = vmatpush.bf16.msra.mxu0 0
    %1838 = vmatpush.bf16.msra.mxu0 0
    %1839 = vmatpush.bf16.msra.mxu0 %v1805
    %1840 = vmatpush.bf16.msra.mxu0 %v1804
    %1841 = vmatmul.bf16.gmra.mxu0 %v1810
    %v1842 = vpop.f32.mrf.mxu0
    %v1843 = vadd.f32 %v1794, %v1842
    %v1844 = vpop.f32.mrf.mxu0
    %v1845 = vadd.f32 %v1794, %v1844
    %1846 = vmatmul.bf16.gmra.mxu0 %v1813
    %v1847 = vpop.f32.mrf.mxu0
    %v1848 = vadd.f32 %v1794, %v1847
    %v1849 = vpop.f32.mrf.mxu0
    %v1850 = vadd.f32 %v1794, %v1849
    %1851 = vmatmul.bf16.gmra.mxu0 %v1816
    %v1852 = vpop.f32.mrf.mxu0
    %v1853 = vadd.f32 %v1794, %v1852
    %v1854 = vpop.f32.mrf.mxu0
    %v1855 = vadd.f32 %v1794, %v1854
    %1856 = vmatmul.bf16.gmra.mxu0 %v1819
    %v1857 = vpop.f32.mrf.mxu0
    %v1858 = vadd.f32 %v1794, %v1857
    %v1859 = vpop.f32.mrf.mxu0
    %v1860 = vadd.f32 %v1794, %v1859
    %1861 = vmatmul.bf16.gmra.mxu0 %v1822
    %v1862 = vpop.f32.mrf.mxu0
    %v1863 = vadd.f32 %v1794, %v1862
    %v1864 = vpop.f32.mrf.mxu0
    %v1865 = vadd.f32 %v1794, %v1864
    %1866 = vmatmul.bf16.gmra.mxu0 %v1825
    %v1867 = vpop.f32.mrf.mxu0
    %v1868 = vadd.f32 %v1794, %v1867
    %v1869 = vpop.f32.mrf.mxu0
    %v1870 = vadd.f32 %v1794, %v1869
    %1871 = vmatmul.bf16.gmra.mxu0 %v1828
    %v1872 = vpop.f32.mrf.mxu0
    %v1873 = vadd.f32 %v1794, %v1872
    %v1874 = vpop.f32.mrf.mxu0
    %v1875 = vadd.f32 %v1794, %v1874
    %1876 = vmatmul.bf16.gmra.mxu0 %v1831
    %v1877 = vpop.f32.mrf.mxu0
    %v1878 = vadd.f32 %v1794, %v1877
    %v1879 = vpop.f32.mrf.mxu0
    %v1880 = vadd.f32 %v1794, %v1879
    %1881 = vdwg.mxu0
    %1883 = vset.pattern.permute.xlu0 0
    %1884 = vperm.xlu0 %1883, %v1654
    %v1885 = vpop.permute.xlu0 %1884
    %1888 = vset.pattern.permute.xlu0 0
    %1889 = vperm.xlu0 %1888, %v1655
    %v1890 = vpop.permute.xlu0 %1889
    %1893 = vset.pattern.permute.xlu0 0
    %1894 = vperm.xlu0 %1893, %v1656
    %v1895 = vpop.permute.xlu0 %1894
    %1898 = vset.pattern.permute.xlu0 0
    %1899 = vperm.xlu0 %1898, %v1657
    %v1900 = vpop.permute.xlu0 %1899
    %1903 = vset.pattern.permute.xlu0 0
    %1904 = vperm.xlu0 %1903, %v1658
    %v1905 = vpop.permute.xlu0 %1904
    %1908 = vset.pattern.permute.xlu0 0
    %1909 = vperm.xlu0 %1908, %v1659
    %v1910 = vpop.permute.xlu0 %1909
    %1913 = vset.pattern.permute.xlu0 0
    %1914 = vperm.xlu0 %1913, %v1660
    %v1915 = vpop.permute.xlu0 %1914
    %1918 = vset.pattern.permute.xlu0 0
    %1919 = vperm.xlu0 %1918, %v1661
    %v1920 = vpop.permute.xlu0 %1919
    %1923 = vset.pattern.permute.xlu0 0
    %1924 = vperm.xlu0 %1923, %v1662
    %v1925 = vpop.permute.xlu0 %1924
    %1928 = vset.pattern.permute.xlu0 0
    %1929 = vperm.xlu0 %1928, %v1663
    %v1930 = vpop.permute.xlu0 %1929
    %1933 = vset.pattern.permute.xlu0 0
    %1934 = vperm.xlu0 %1933, %v1664
    %v1935 = vpop.permute.xlu0 %1934
    %1938 = vset.pattern.permute.xlu0 0
    %1939 = vperm.xlu0 %1938, %v1665
    %v1940 = vpop.permute.xlu0 %1939
    %1943 = vset.pattern.permute.xlu0 0
    %1944 = vperm.xlu0 %1943, %v1666
    %v1945 = vpop.permute.xlu0 %1944
    %1948 = vset.pattern.permute.xlu0 0
    %1949 = vperm.xlu0 %1948, %v1667
    %v1950 = vpop.permute.xlu0 %1949
    %1953 = vset.pattern.permute.xlu0 0
    %1954 = vperm.xlu0 %1953, %v1668
    %v1955 = vpop.permute.xlu0 %1954
    %1958 = vset.pattern.permute.xlu0 0
    %1959 = vperm.xlu0 %1958, %v1669
    %v1960 = vpop.permute.xlu0 %1959
    %v1962 = vmul.f32 %v1843, %v1885
    %v1963 = vmul.f32 %v1845, %v1890
    %v1964 = vmul.f32 %v1848, %v1895
    %v1965 = vmul.f32 %v1850, %v1900
    %v1966 = vmul.f32 %v1853, %v1905
    %v1967 = vmul.f32 %v1855, %v1910
    %v1968 = vmul.f32 %v1858, %v1915
    %v1969 = vmul.f32 %v1860, %v1920
    %v1970 = vmul.f32 %v1863, %v1925
    %v1971 = vmul.f32 %v1865, %v1930
    %v1972 = vmul.f32 %v1868, %v1935
    %v1973 = vmul.f32 %v1870, %v1940
    %v1974 = vmul.f32 %v1873, %v1945
    %v1975 = vmul.f32 %v1875, %v1950
    %v1976 = vmul.f32 %v1878, %v1955
    %v1977 = vmul.f32 %v1880, %v1960
    %v1978 = vsel %vm1808, %v1962, 0.0
    %v1979 = vsel %vm1808, %v1963, 0.0
    %v1980 = vadd.f32 %v1978, %v1979
    %v1981 = vsel %vm1808, %v1964, 0.0
    %v1982 = vadd.f32 %v1980, %v1981
    %v1983 = vsel %vm1808, %v1965, 0.0
    %v1984 = vadd.f32 %v1982, %v1983
    %v1985 = vsel %vm1808, %v1966, 0.0
    %v1986 = vadd.f32 %v1984, %v1985
    %v1987 = vsel %vm1808, %v1967, 0.0
    %v1988 = vadd.f32 %v1986, %v1987
    %v1989 = vsel %vm1808, %v1968, 0.0
    %v1990 = vadd.f32 %v1988, %v1989
    %v1991 = vsel %vm1808, %v1969, 0.0
    %v1992 = vadd.f32 %v1990, %v1991
    %v1993 = vsel %vm1808, %v1970, 0.0
    %v1994 = vadd.f32 %v1992, %v1993
    %v1995 = vsel %vm1808, %v1971, 0.0
    %v1996 = vadd.f32 %v1994, %v1995
    %v1997 = vsel %vm1808, %v1972, 0.0
    %v1998 = vadd.f32 %v1996, %v1997
    %v1999 = vsel %vm1808, %v1973, 0.0
    %v2000 = vadd.f32 %v1998, %v1999
    %v2001 = vsel %vm1808, %v1974, 0.0
    %v2002 = vadd.f32 %v2000, %v2001
    %v2003 = vsel %vm1808, %v1975, 0.0
    %v2004 = vadd.f32 %v2002, %v2003
    %v2005 = vsel %vm1808, %v1976, 0.0
    %v2006 = vadd.f32 %v2004, %v2005
    %v2007 = vsel %vm1808, %v1977, 0.0
    %v2008 = vadd.f32 %v2006, %v2007
    %v2009 = vrot.slane %v2008, 4
    %v2010 = vadd.f32 %v2008, %v2009
    %v2011 = vrot.slane %v2010, 2
    %v2012 = vadd.f32 %v2010, %v2011
    %v2013 = vrot.slane %v2012, 1
    %v2014 = vadd.f32 %v2012, %v2013
    %v2015 = vmul.f32 %v2014, 0.03846154
    %v2016 = vmul.f32 %v1962, %v1843
    %v2017 = vmul.f32 %v1963, %v1845
    %v2018 = vmul.f32 %v1964, %v1848
    %v2019 = vmul.f32 %v1965, %v1850
    %v2020 = vmul.f32 %v1966, %v1853
    %v2021 = vmul.f32 %v1967, %v1855
    %v2022 = vmul.f32 %v1968, %v1858
    %v2023 = vmul.f32 %v1969, %v1860
    %v2024 = vmul.f32 %v1970, %v1863
    %v2025 = vmul.f32 %v1971, %v1865
    %v2026 = vmul.f32 %v1972, %v1868
    %v2027 = vmul.f32 %v1973, %v1870
    %v2028 = vmul.f32 %v1974, %v1873
    %v2029 = vmul.f32 %v1975, %v1875
    %v2030 = vmul.f32 %v1976, %v1878
    %v2031 = vmul.f32 %v1977, %v1880
    %v2032 = vsel %vm1808, %v2016, 0.0
    %v2033 = vsel %vm1808, %v2017, 0.0
    %v2034 = vadd.f32 %v2032, %v2033
    %v2035 = vsel %vm1808, %v2018, 0.0
    %v2036 = vadd.f32 %v2034, %v2035
    %v2037 = vsel %vm1808, %v2019, 0.0
    %v2038 = vadd.f32 %v2036, %v2037
    %v2039 = vsel %vm1808, %v2020, 0.0
    %v2040 = vadd.f32 %v2038, %v2039
    %v2041 = vsel %vm1808, %v2021, 0.0
    %v2042 = vadd.f32 %v2040, %v2041
    %v2043 = vsel %vm1808, %v2022, 0.0
    %v2044 = vadd.f32 %v2042, %v2043
    %v2045 = vsel %vm1808, %v2023, 0.0
    %v2046 = vadd.f32 %v2044, %v2045
    %v2047 = vsel %vm1808, %v2024, 0.0
    %v2048 = vadd.f32 %v2046, %v2047
    %v2049 = vsel %vm1808, %v2025, 0.0
    %v2050 = vadd.f32 %v2048, %v2049
    %v2051 = vsel %vm1808, %v2026, 0.0
    %v2052 = vadd.f32 %v2050, %v2051
    %v2053 = vsel %vm1808, %v2027, 0.0
    %v2054 = vadd.f32 %v2052, %v2053
    %v2055 = vsel %vm1808, %v2028, 0.0
    %v2056 = vadd.f32 %v2054, %v2055
    %v2057 = vsel %vm1808, %v2029, 0.0
    %v2058 = vadd.f32 %v2056, %v2057
    %v2059 = vsel %vm1808, %v2030, 0.0
    %v2060 = vadd.f32 %v2058, %v2059
    %v2061 = vsel %vm1808, %v2031, 0.0
    %v2062 = vadd.f32 %v2060, %v2061
    %v2063 = vrot.slane %v2062, 4
    %v2064 = vadd.f32 %v2062, %v2063
    %v2065 = vrot.slane %v2064, 2
    %v2066 = vadd.f32 %v2064, %v2065
    %v2067 = vrot.slane %v2066, 1
    %v2068 = vadd.f32 %v2066, %v2067
    %v2069 = vmul.f32 %v2068, 0.03846154
    %v2070 = vmul.f32 %v2015, %v2015
    %v2071 = vsub.f32 %v2069, %v2070
    %v2072 = vsub.f32 %v1843, %v2015
    %v2073 = vsub.f32 %v1845, %v2015
    %v2074 = vsub.f32 %v1848, %v2015
    %v2075 = vsub.f32 %v1850, %v2015
    %v2076 = vsub.f32 %v1853, %v2015
    %v2077 = vsub.f32 %v1855, %v2015
    %v2078 = vsub.f32 %v1858, %v2015
    %v2079 = vsub.f32 %v1860, %v2015
    %v2080 = vsub.f32 %v1863, %v2015
    %v2081 = vsub.f32 %v1865, %v2015
    %v2082 = vsub.f32 %v1868, %v2015
    %v2083 = vsub.f32 %v1870, %v2015
    %v2084 = vsub.f32 %v1873, %v2015
    %v2085 = vsub.f32 %v1875, %v2015
    %v2086 = vsub.f32 %v1878, %v2015
    %v2087 = vsub.f32 %v1880, %v2015
    %v2088 = vadd.f32 %v2071, 1e-05
    %v2089 = vrsqrt.pop %v2088
    %v2090 = vmul.f32 %v2089, %v2088
    %v2091 = vmul.f32 %v2090, %v2089
    %v2092 = vmul.f32 0.5, %v2091
    %v2093 = vsub.f32 1.5, %v2092
    %v2094 = vmul.f32 %v2089, %v2093
    %vm2095 = vweird.f32 %v2088
    %vm2096 = vweird.f32 %v2089
    %vm2097 = vmor %vm2095, %vm2096
    %v2098 = vsel %vm2097, %v2089, %v2094
    %v2099 = vmul.f32 %v2072, %v2098
    %v2100 = vmul.f32 %v2073, %v2098
    %v2101 = vmul.f32 %v2074, %v2098
    %v2102 = vmul.f32 %v2075, %v2098
    %v2103 = vmul.f32 %v2076, %v2098
    %v2104 = vmul.f32 %v2077, %v2098
    %v2105 = vmul.f32 %v2078, %v2098
    %v2106 = vmul.f32 %v2079, %v2098
    %v2107 = vmul.f32 %v2080, %v2098
    %v2108 = vmul.f32 %v2081, %v2098
    %v2109 = vmul.f32 %v2082, %v2098
    %v2110 = vmul.f32 %v2083, %v2098
    %v2111 = vmul.f32 %v2084, %v2098
    %v2112 = vmul.f32 %v2085, %v2098
    %v2113 = vmul.f32 %v2086, %v2098
    %v2114 = vmul.f32 %v2087, %v2098
    %v2116 = vperm.slane %v1652, 0
    %v2118 = vmul.f32 %v2099, %v2116
    %v2119 = vmul.f32 %v2100, %v2116
    %v2120 = vmul.f32 %v2101, %v2116
    %v2121 = vmul.f32 %v2102, %v2116
    %v2122 = vmul.f32 %v2103, %v2116
    %v2123 = vmul.f32 %v2104, %v2116
    %v2124 = vmul.f32 %v2105, %v2116
    %v2125 = vmul.f32 %v2106, %v2116
    %v2126 = vmul.f32 %v2107, %v2116
    %v2127 = vmul.f32 %v2108, %v2116
    %v2128 = vmul.f32 %v2109, %v2116
    %v2129 = vmul.f32 %v2110, %v2116
    %v2130 = vmul.f32 %v2111, %v2116
    %v2131 = vmul.f32 %v2112, %v2116
    %v2132 = vmul.f32 %v2113, %v2116
    %v2133 = vmul.f32 %v2114, %v2116
    %v2135 = vperm.slane %v1653, 0
    %v2137 = vadd.f32 %v2118, %v2135
    %v2138 = vadd.f32 %v2119, %v2135
    %v2139 = vadd.f32 %v2120, %v2135
    %v2140 = vadd.f32 %v2121, %v2135
    %v2141 = vadd.f32 %v2122, %v2135
    %v2142 = vadd.f32 %v2123, %v2135
    %v2143 = vadd.f32 %v2124, %v2135
    %v2144 = vadd.f32 %v2125, %v2135
    %v2145 = vadd.f32 %v2126, %v2135
    %v2146 = vadd.f32 %v2127, %v2135
    %v2147 = vadd.f32 %v2128, %v2135
    %v2148 = vadd.f32 %v2129, %v2135
    %v2149 = vadd.f32 %v2130, %v2135
    %v2150 = vadd.f32 %v2131, %v2135
    %v2151 = vadd.f32 %v2132, %v2135
    %v2152 = vadd.f32 %v2133, %v2135
    %v2153 = vmax.f32 %v2137, 0.0
    %v2154 = vmax.f32 %v2138, 0.0
    %v2155 = vmax.f32 %v2139, 0.0
    %v2156 = vmax.f32 %v2140, 0.0
    %v2157 = vmax.f32 %v2141, 0.0
    %v2158 = vmax.f32 %v2142, 0.0
    %v2159 = vmax.f32 %v2143, 0.0
    %v2160 = vmax.f32 %v2144, 0.0
    %v2161 = vmax.f32 %v2145, 0.0
    %v2162 = vmax.f32 %v2146, 0.0
    %v2163 = vmax.f32 %v2147, 0.0
    %v2164 = vmax.f32 %v2148, 0.0
    %v2165 = vmax.f32 %v2149, 0.0
    %v2166 = vmax.f32 %v2150, 0.0
    %v2167 = vmax.f32 %v2151, 0.0
    %v2168 = vmax.f32 %v2152, 0.0
    %v2185 = vrot.slane %v2153, 4
    %v2186 = vrot.slane %v2154, 4
    %v2187 = vsel %vm1225, %v2185, %v2186
    %v2188 = vrot.slane %v2155, 4
    %v2189 = vsel %vm1225, %v2186, %v2188
    %v2190 = vrot.slane %v2156, 4
    %v2191 = vsel %vm1225, %v2188, %v2190
    %v2192 = vrot.slane %v2157, 4
    %v2193 = vsel %vm1225, %v2190, %v2192
    %v2194 = vrot.slane %v2158, 4
    %v2195 = vsel %vm1225, %v2192, %v2194
    %v2196 = vrot.slane %v2159, 4
    %v2197 = vsel %vm1225, %v2194, %v2196
    %v2198 = vrot.slane %v2160, 4
    %v2199 = vsel %vm1225, %v2196, %v2198
    %v2200 = vrot.slane %v2161, 4
    %v2201 = vsel %vm1225, %v2198, %v2200
    %v2202 = vrot.slane %v2162, 4
    %v2203 = vsel %vm1225, %v2200, %v2202
    %v2204 = vrot.slane %v2163, 4
    %v2205 = vsel %vm1225, %v2202, %v2204
    %v2206 = vrot.slane %v2164, 4
    %v2207 = vsel %vm1225, %v2204, %v2206
    %v2208 = vrot.slane %v2165, 4
    %v2209 = vsel %vm1225, %v2206, %v2208
    %v2210 = vrot.slane %v2166, 4
    %v2211 = vsel %vm1225, %v2208, %v2210
    %v2212 = vrot.slane %v2167, 4
    %v2213 = vsel %vm1225, %v2210, %v2212
    %v2214 = vrot.slane %v2168, 4
    %v2215 = vsel %vm1225, %v2212, %v2214
    %v2233 = vsel %vm1225, %v2214, %v2185
    %v2234 = vmax.f32 %v2153, %v2187
    %v2235 = vmax.f32 %v2154, %v2189
    %v2236 = vmax.f32 %v2155, %v2191
    %v2237 = vmax.f32 %v2156, %v2193
    %v2238 = vmax.f32 %v2157, %v2195
    %v2239 = vmax.f32 %v2158, %v2197
    %v2240 = vmax.f32 %v2159, %v2199
    %v2241 = vmax.f32 %v2160, %v2201
    %v2242 = vmax.f32 %v2161, %v2203
    %v2243 = vmax.f32 %v2162, %v2205
    %v2244 = vmax.f32 %v2163, %v2207
    %v2245 = vmax.f32 %v2164, %v2209
    %v2246 = vmax.f32 %v2165, %v2211
    %v2247 = vmax.f32 %v2166, %v2213
    %v2248 = vmax.f32 %v2167, %v2215
    %v2249 = vmax.f32 %v2168, %v2233
    %v2250 = vpack.c.bf16 %v2235, %v2234
    %v2251 = vpack.c.bf16 %v2237, %v2236
    %v2252 = vpack.c.bf16 %v2239, %v2238
    %v2253 = vpack.c.bf16 %v2241, %v2240
    %v2254 = vpack.c.bf16 %v2243, %v2242
    %v2255 = vpack.c.bf16 %v2245, %v2244
    %v2256 = vpack.c.bf16 %v2247, %v2246
    %v2257 = vpack.c.bf16 %v2249, %v2248
    %v2258 = vld [vmem:[%s16] sm:$0x1]
    %2259 = vmatpush.bf16.msra.mxu0 %v2257
    %2260 = vmatpush.bf16.msra.mxu0 %v2256
    %2261 = vmatpush.bf16.msra.mxu0 %v2255
    %2262 = vmatpush.bf16.msra.mxu0 %v2254
    %2263 = vmatpush.bf16.msra.mxu0 %v2253
    %2264 = vmatpush.bf16.msra.mxu0 %v2252
    %2265 = vmatpush.bf16.msra.mxu0 %v2251
    %2266 = vmatpush.bf16.msra.mxu0 %v2250
    %2267 = vmatmul.bf16.gmra.mxu0 %v2258
    %v2268 = vpop.f32.mrf.mxu0
    %v2269 = vadd.f32 0.0, %v2268
    %v2270 = vpop.f32.mrf.mxu0
    %2271 = vdwg.mxu0
    %s2272 = scalar_lea.vmem %s16, 1
    %v2273 = vld [vmem:[%s2272] sm:$0x1]
    %2274 = vmatpush.bf16.msra.mxu0 %v2257
    %2275 = vmatpush.bf16.msra.mxu0 %v2256
    %2276 = vmatpush.bf16.msra.mxu0 %v2255
    %2277 = vmatpush.bf16.msra.mxu0 %v2254
    %2278 = vmatpush.bf16.msra.mxu0 %v2253
    %2279 = vmatpush.bf16.msra.mxu0 %v2252
    %2280 = vmatpush.bf16.msra.mxu0 %v2251
    %2281 = vmatpush.bf16.msra.mxu0 %v2250
    %2282 = vmatmul.bf16.gmra.mxu0 %v2273
    %v2283 = vpop.f32.mrf.mxu0
    %v2284 = vadd.f32 0.0, %v2283
    %v2285 = vpop.f32.mrf.mxu0
    %2286 = vdwg.mxu0
    %s2287 = scalar_lea.vmem %s16, 2
    %v2288 = vld [vmem:[%s2287] sm:$0x1]
    %2289 = vmatpush.bf16.msra.mxu0 %v2257
    %2290 = vmatpush.bf16.msra.mxu0 %v2256
    %2291 = vmatpush.bf16.msra.mxu0 %v2255
    %2292 = vmatpush.bf16.msra.mxu0 %v2254
    %2293 = vmatpush.bf16.msra.mxu0 %v2253
    %2294 = vmatpush.bf16.msra.mxu0 %v2252
    %2295 = vmatpush.bf16.msra.mxu0 %v2251
    %2296 = vmatpush.bf16.msra.mxu0 %v2250
    %2297 = vmatmul.bf16.gmra.mxu0 %v2288
    %v2298 = vpop.f32.mrf.mxu0
    %v2299 = vadd.f32 0.0, %v2298
    %v2300 = vpop.f32.mrf.mxu0
    %2301 = vdwg.mxu0
    %s2302 = scalar_lea.vmem %s16, 3
    %v2303 = vld [vmem:[%s2302] sm:$0x1]
    %2304 = vmatpush.bf16.msra.mxu0 %v2257
    %2305 = vmatpush.bf16.msra.mxu0 %v2256
    %2306 = vmatpush.bf16.msra.mxu0 %v2255
    %2307 = vmatpush.bf16.msra.mxu0 %v2254
    %2308 = vmatpush.bf16.msra.mxu0 %v2253
    %2309 = vmatpush.bf16.msra.mxu0 %v2252
    %2310 = vmatpush.bf16.msra.mxu0 %v2251
    %2311 = vmatpush.bf16.msra.mxu0 %v2250
    %2312 = vmatmul.bf16.gmra.mxu0 %v2303
    %v2313 = vpop.f32.mrf.mxu0
    %v2314 = vadd.f32 0.0, %v2313
    %v2315 = vpop.f32.mrf.mxu0
    %2316 = vdwg.mxu0
    %s2317 = scalar_lea.vmem %s16, 4
    %v2318 = vld [vmem:[%s2317] sm:$0x1]
    %2319 = vmatpush.bf16.msra.mxu0 %v2257
    %2320 = vmatpush.bf16.msra.mxu0 %v2256
    %2321 = vmatpush.bf16.msra.mxu0 %v2255
    %2322 = vmatpush.bf16.msra.mxu0 %v2254
    %2323 = vmatpush.bf16.msra.mxu0 %v2253
    %2324 = vmatpush.bf16.msra.mxu0 %v2252
    %2325 = vmatpush.bf16.msra.mxu0 %v2251
    %2326 = vmatpush.bf16.msra.mxu0 %v2250
    %2327 = vmatmul.bf16.gmra.mxu0 %v2318
    %v2328 = vpop.f32.mrf.mxu0
    %v2329 = vadd.f32 0.0, %v2328
    %v2330 = vpop.f32.mrf.mxu0
    %2331 = vdwg.mxu0
    %s2332 = scalar_lea.vmem %s16, 5
    %v2333 = vld [vmem:[%s2332] sm:$0x1]
    %2334 = vmatpush.bf16.msra.mxu0 %v2257
    %2335 = vmatpush.bf16.msra.mxu0 %v2256
    %2336 = vmatpush.bf16.msra.mxu0 %v2255
    %2337 = vmatpush.bf16.msra.mxu0 %v2254
    %2338 = vmatpush.bf16.msra.mxu0 %v2253
    %2339 = vmatpush.bf16.msra.mxu0 %v2252
    %2340 = vmatpush.bf16.msra.mxu0 %v2251
    %2341 = vmatpush.bf16.msra.mxu0 %v2250
    %2342 = vmatmul.bf16.gmra.mxu0 %v2333
    %v2343 = vpop.f32.mrf.mxu0
    %v2344 = vadd.f32 0.0, %v2343
    %v2345 = vpop.f32.mrf.mxu0
    %2346 = vdwg.mxu0
    %2348 = vrot.lane.b32.xlu0 %v2284, 32
    %v2349 = vpop.permute.xlu0 %2348
    %2352 = vrot.lane.b32.xlu0 %v2299, 64
    %v2353 = vpop.permute.xlu0 %2352
    %2356 = vrot.lane.b32.xlu0 %v2314, 96
    %v2357 = vpop.permute.xlu0 %2356
    %2360 = vrot.lane.b32.xlu0 %v2344, 32
    %v2361 = vpop.permute.xlu0 %2360
    %v2363 = vsel %vm1808, %v2269, %v2349
    %vm2364 = vcmask 523264
    %v2365 = vsel %vm2364, %v2363, %v2353
    %vm2366 = vcmask 785408
    %v2367 = vsel %vm2366, %v2365, %v2357
    %v2368 = vsel %vm1808, %v2329, %v2361
    %s2369 = smul.u32 4, 24
    %s2370 = smul.u32 %s2369, 2
    %s2371 = sshll.u32 %s2370, 4
    %2372 = dma.done [#allocation6], %s2371
    %v2373 = vpack.c.bf16 %v2367, %v2367
    %v2374 = vpack.c.bf16 %v2368, %v2368
    %v2375 = vld [vmem:[#allocation2] sm:$0xff]
    %v2376 = vld [vmem:[#allocation2 + $0x8] sm:$0xff]
    %v2377 = vld [vmem:[#allocation2 + $0x10] sm:$0xff]
    %v2378 = vld [vmem:[#allocation2 + $0x18] sm:$0xff]
    %v2379 = vld [vmem:[#allocation2 + $0x20] sm:$0xff]
    %v2380 = vld [vmem:[#allocation2 + $0x28] sm:$0xff]
    %v2381 = vld [vmem:[#allocation2 + $0x30] sm:$0xff]
    %v2382 = vld [vmem:[#allocation2 + $0x38] sm:$0xff]
    %v2383 = vld [vmem:[#allocation2 + $0x40] sm:$0xff]
    %v2384 = vld [vmem:[#allocation2 + $0x48] sm:$0xff]
    %v2385 = vld [vmem:[#allocation2 + $0x50] sm:$0xff]
    %v2386 = vld [vmem:[#allocation2 + $0x58] sm:$0xff]
    %v2387 = vld [vmem:[#allocation2 + $0x60] sm:$0xff]
    %v2388 = vld [vmem:[#allocation2 + $0x68] sm:$0xff]
    %v2389 = vld [vmem:[#allocation2 + $0x70] sm:$0xff]
    %v2390 = vld [vmem:[#allocation2 + $0x78] sm:$0xff]
    %v2391 = vld [vmem:[#allocation2 + $0x80] sm:$0xff]
    %v2392 = vld [vmem:[#allocation2 + $0x88] sm:$0xff]
    %v2393 = vld [vmem:[#allocation2 + $0x90] sm:$0xff]
    %v2394 = vld [vmem:[#allocation2 + $0x98] sm:$0xff]
    %v2395 = vld [vmem:[#allocation2 + $0xa0] sm:$0xff]
    %v2396 = vld [vmem:[#allocation2 + $0xa8] sm:$0xff]
    %v2397 = vld [vmem:[#allocation2 + $0xb0] sm:$0xff]
    %v2398 = vld [vmem:[#allocation2 + $0xb8] sm:$0xff]
    %v2399 = vld [vmem:[%s17] sm:$0x3]
    %v2401 = vperm.slane %v2399, 0
    %v2402 = vperm.slane %v2399, 1
    %v2429 = vunpack.c.l.b16 %v2375
    %v2430 = vunpack.c.h.b16 %v2375
    %v2431 = vunpack.c.l.b16 %v2376
    %v2432 = vunpack.c.h.b16 %v2376
    %v2433 = vunpack.c.l.b16 %v2377
    %v2434 = vunpack.c.h.b16 %v2377
    %v2435 = vunpack.c.l.b16 %v2378
    %v2436 = vunpack.c.h.b16 %v2378
    %v2437 = vunpack.c.l.b16 %v2379
    %v2438 = vunpack.c.h.b16 %v2379
    %v2439 = vunpack.c.l.b16 %v2380
    %v2440 = vunpack.c.h.b16 %v2380
    %v2441 = vunpack.c.l.b16 %v2381
    %v2442 = vunpack.c.h.b16 %v2381
    %v2443 = vunpack.c.l.b16 %v2382
    %v2444 = vunpack.c.h.b16 %v2382
    %v2445 = vunpack.c.l.b16 %v2383
    %v2446 = vunpack.c.h.b16 %v2383
    %v2447 = vunpack.c.l.b16 %v2384
    %v2448 = vunpack.c.h.b16 %v2384
    %v2449 = vunpack.c.l.b16 %v2385
    %v2450 = vunpack.c.h.b16 %v2385
    %v2451 = vunpack.c.l.b16 %v2386
    %v2452 = vunpack.c.h.b16 %v2386
    %v2453 = vunpack.c.l.b16 %v2387
    %v2454 = vunpack.c.h.b16 %v2387
    %v2455 = vunpack.c.l.b16 %v2388
    %v2456 = vunpack.c.h.b16 %v2388
    %v2457 = vunpack.c.l.b16 %v2389
    %v2458 = vunpack.c.h.b16 %v2389
    %v2459 = vunpack.c.l.b16 %v2390
    %v2460 = vunpack.c.h.b16 %v2390
    %v2461 = vunpack.c.l.b16 %v2391
    %v2462 = vunpack.c.h.b16 %v2391
    %v2463 = vunpack.c.l.b16 %v2392
    %v2464 = vunpack.c.h.b16 %v2392
    %v2465 = vunpack.c.l.b16 %v2393
    %v2466 = vunpack.c.h.b16 %v2393
    %v2467 = vunpack.c.l.b16 %v2394
    %v2468 = vunpack.c.h.b16 %v2394
    %v2469 = vunpack.c.l.b16 %v2395
    %v2470 = vunpack.c.h.b16 %v2395
    %v2471 = vunpack.c.l.b16 %v2396
    %v2472 = vunpack.c.h.b16 %v2396
    %v2473 = vunpack.c.l.b16 %v2397
    %v2474 = vunpack.c.h.b16 %v2397
    %v2475 = vunpack.c.l.b16 %v2398
    %v2476 = vunpack.c.h.b16 %v2398
    %v2477 = vpack.c.b16 %v2431, %v2429
    %v2478 = vpack.c.b16 %v2432, %v2430
    %v2479 = vpack.c.b16 %v2435, %v2433
    %v2480 = vpack.c.b16 %v2436, %v2434
    %v2481 = vpack.c.b16 %v2439, %v2437
    %v2482 = vpack.c.b16 %v2440, %v2438
    %v2483 = vpack.c.b16 %v2443, %v2441
    %v2484 = vpack.c.b16 %v2444, %v2442
    %v2485 = vpack.c.b16 %v2447, %v2445
    %v2486 = vpack.c.b16 %v2448, %v2446
    %v2487 = vpack.c.b16 %v2451, %v2449
    %v2488 = vpack.c.b16 %v2452, %v2450
    %v2489 = vpack.c.b16 %v2455, %v2453
    %v2490 = vpack.c.b16 %v2456, %v2454
    %v2491 = vpack.c.b16 %v2459, %v2457
    %v2492 = vpack.c.b16 %v2460, %v2458
    %v2493 = vpack.c.b16 %v2463, %v2461
    %v2494 = vpack.c.b16 %v2464, %v2462
    %v2495 = vpack.c.b16 %v2467, %v2465
    %v2496 = vpack.c.b16 %v2468, %v2466
    %v2497 = vpack.c.b16 %v2471, %v2469
    %v2498 = vpack.c.b16 %v2472, %v2470
    %v2499 = vpack.c.b16 %v2475, %v2473
    %v2500 = vpack.c.b16 %v2476, %v2474
    %v2526 = vsel %vm2364, %v2374, 0
    %2528 = vmatpush.bf16.msra.mxu0 %v2491
    %2529 = vmatpush.bf16.msra.mxu0 %v2489
    %2530 = vmatpush.bf16.msra.mxu0 %v2487
    %2531 = vmatpush.bf16.msra.mxu0 %v2485
    %2532 = vmatpush.bf16.msra.mxu0 %v2483
    %2533 = vmatpush.bf16.msra.mxu0 %v2481
    %2534 = vmatpush.bf16.msra.mxu0 %v2479
    %2535 = vmatpush.bf16.msra.mxu0 %v2477
    %2536 = vmatmul.bf16.gmra.mxu0 %v2373
    %v2537 = vpop.f32.mrf.mxu0
    %v2538 = vadd.f32 %v2401, %v2537
    %v2539 = vpop.f32.mrf.mxu0
    %2540 = vdwg.mxu0
    %2541 = vmatpush.bf16.msra.mxu0 0
    %2542 = vmatpush.bf16.msra.mxu0 0
    %2543 = vmatpush.bf16.msra.mxu0 0
    %2544 = vmatpush.bf16.msra.mxu0 0
    %2545 = vmatpush.bf16.msra.mxu0 %v2499
    %2546 = vmatpush.bf16.msra.mxu0 %v2497
    %2547 = vmatpush.bf16.msra.mxu0 %v2495
    %2548 = vmatpush.bf16.msra.mxu0 %v2493
    %2549 = vmatmul.bf16.gmra.mxu0 %v2526
    %v2550 = vpop.f32.mrf.mxu0
    %v2551 = vadd.f32 %v2538, %v2550
    %v2552 = vpop.f32.mrf.mxu0
    %2553 = vdwg.mxu0
    %2554 = vmatpush.bf16.msra.mxu0 %v2492
    %2555 = vmatpush.bf16.msra.mxu0 %v2490
    %2556 = vmatpush.bf16.msra.mxu0 %v2488
    %2557 = vmatpush.bf16.msra.mxu0 %v2486
    %2558 = vmatpush.bf16.msra.mxu0 %v2484
    %2559 = vmatpush.bf16.msra.mxu0 %v2482
    %2560 = vmatpush.bf16.msra.mxu0 %v2480
    %2561 = vmatpush.bf16.msra.mxu0 %v2478
    %2562 = vmatmul.bf16.gmra.mxu0 %v2373
    %v2563 = vpop.f32.mrf.mxu0
    %v2564 = vadd.f32 %v2402, %v2563
    %v2565 = vpop.f32.mrf.mxu0
    %2566 = vdwg.mxu0
    %2567 = vmatpush.bf16.msra.mxu0 0
    %2568 = vmatpush.bf16.msra.mxu0 0
    %2569 = vmatpush.bf16.msra.mxu0 0
    %2570 = vmatpush.bf16.msra.mxu0 0
    %2571 = vmatpush.bf16.msra.mxu0 %v2500
    %2572 = vmatpush.bf16.msra.mxu0 %v2498
    %2573 = vmatpush.bf16.msra.mxu0 %v2496
    %2574 = vmatpush.bf16.msra.mxu0 %v2494
    %2575 = vmatmul.bf16.gmra.mxu0 %v2526
    %v2576 = vpop.f32.mrf.mxu0
    %v2577 = vadd.f32 %v2564, %v2576
    %v2578 = vpop.f32.mrf.mxu0
    %2579 = vdwg.mxu0
    %v2580 = vmax.f32 %v2551, 0.0
    %v2581 = vmax.f32 %v2577, 0.0
    %s2582 = smul.u32 4, 32
    %s2583 = smul.u32 %s2582, 4
    %s2584 = sshll.u32 %s2583, 4
    %2585 = dma.done %s138, %s2584
    %v2586 = vpack.c.bf16 %v2580, %v2580
    %v2587 = vpack.c.bf16 %v2581, %v2581
    %v2588 = vld [vmem:[#allocation3] sm:$0xff]
    %v2589 = vld [vmem:[#allocation3 + $0x8] sm:$0xff]
    %v2590 = vld [vmem:[#allocation3 + $0x10] sm:$0xff]
    %v2591 = vld [vmem:[#allocation3 + $0x18] sm:$0xff]
    %v2592 = vld [vmem:[#allocation3 + $0x20] sm:$0xff]
    %v2593 = vld [vmem:[#allocation3 + $0x28] sm:$0xff]
    %v2594 = vld [vmem:[#allocation3 + $0x30] sm:$0xff]
    %v2595 = vld [vmem:[#allocation3 + $0x38] sm:$0xff]
    %v2596 = vld [vmem:[#allocation3 + $0x40] sm:$0xff]
    %v2597 = vld [vmem:[#allocation3 + $0x48] sm:$0xff]
    %v2598 = vld [vmem:[#allocation3 + $0x50] sm:$0xff]
    %v2599 = vld [vmem:[#allocation3 + $0x58] sm:$0xff]
    %v2600 = vld [vmem:[#allocation3 + $0x60] sm:$0xff]
    %v2601 = vld [vmem:[#allocation3 + $0x68] sm:$0xff]
    %v2602 = vld [vmem:[#allocation3 + $0x70] sm:$0xff]
    %v2603 = vld [vmem:[#allocation3 + $0x78] sm:$0xff]
    %v2604 = vld [vmem:[#allocation3 + $0x80] sm:$0xff]
    %v2605 = vld [vmem:[#allocation3 + $0x88] sm:$0xff]
    %v2606 = vld [vmem:[#allocation3 + $0x90] sm:$0xff]
    %v2607 = vld [vmem:[#allocation3 + $0x98] sm:$0xff]
    %v2608 = vld [vmem:[#allocation3 + $0xa0] sm:$0xff]
    %v2609 = vld [vmem:[#allocation3 + $0xa8] sm:$0xff]
    %v2610 = vld [vmem:[#allocation3 + $0xb0] sm:$0xff]
    %v2611 = vld [vmem:[#allocation3 + $0xb8] sm:$0xff]
    %v2612 = vld [vmem:[#allocation3 + $0xc0] sm:$0xff]
    %v2613 = vld [vmem:[#allocation3 + $0xc8] sm:$0xff]
    %v2614 = vld [vmem:[#allocation3 + $0xd0] sm:$0xff]
    %v2615 = vld [vmem:[#allocation3 + $0xd8] sm:$0xff]
    %v2616 = vld [vmem:[#allocation3 + $0xe0] sm:$0xff]
    %v2617 = vld [vmem:[#allocation3 + $0xe8] sm:$0xff]
    %v2618 = vld [vmem:[#allocation3 + $0xf0] sm:$0xff]
    %v2619 = vld [vmem:[#allocation3 + $0xf8] sm:$0xff]
    %v2620 = vld [vmem:[#allocation3 + $0x100] sm:$0xff]
    %v2621 = vld [vmem:[#allocation3 + $0x108] sm:$0xff]
    %v2622 = vld [vmem:[#allocation3 + $0x110] sm:$0xff]
    %v2623 = vld [vmem:[#allocation3 + $0x118] sm:$0xff]
    %v2624 = vld [vmem:[#allocation3 + $0x120] sm:$0xff]
    %v2625 = vld [vmem:[#allocation3 + $0x128] sm:$0xff]
    %v2626 = vld [vmem:[#allocation3 + $0x130] sm:$0xff]
    %v2627 = vld [vmem:[#allocation3 + $0x138] sm:$0xff]
    %v2628 = vld [vmem:[#allocation3 + $0x140] sm:$0xff]
    %v2629 = vld [vmem:[#allocation3 + $0x148] sm:$0xff]
    %v2630 = vld [vmem:[#allocation3 + $0x150] sm:$0xff]
    %v2631 = vld [vmem:[#allocation3 + $0x158] sm:$0xff]
    %v2632 = vld [vmem:[#allocation3 + $0x160] sm:$0xff]
    %v2633 = vld [vmem:[#allocation3 + $0x168] sm:$0xff]
    %v2634 = vld [vmem:[#allocation3 + $0x170] sm:$0xff]
    %v2635 = vld [vmem:[#allocation3 + $0x178] sm:$0xff]
    %v2636 = vld [vmem:[#allocation3 + $0x180] sm:$0xff]
    %v2637 = vld [vmem:[#allocation3 + $0x188] sm:$0xff]
    %v2638 = vld [vmem:[#allocation3 + $0x190] sm:$0xff]
    %v2639 = vld [vmem:[#allocation3 + $0x198] sm:$0xff]
    %v2640 = vld [vmem:[#allocation3 + $0x1a0] sm:$0xff]
    %v2641 = vld [vmem:[#allocation3 + $0x1a8] sm:$0xff]
    %v2642 = vld [vmem:[#allocation3 + $0x1b0] sm:$0xff]
    %v2643 = vld [vmem:[#allocation3 + $0x1b8] sm:$0xff]
    %v2644 = vld [vmem:[#allocation3 + $0x1c0] sm:$0xff]
    %v2645 = vld [vmem:[#allocation3 + $0x1c8] sm:$0xff]
    %v2646 = vld [vmem:[#allocation3 + $0x1d0] sm:$0xff]
    %v2647 = vld [vmem:[#allocation3 + $0x1d8] sm:$0xff]
    %v2648 = vld [vmem:[#allocation3 + $0x1e0] sm:$0xff]
    %v2649 = vld [vmem:[#allocation3 + $0x1e8] sm:$0xff]
    %v2650 = vld [vmem:[#allocation3 + $0x1f0] sm:$0xff]
    %v2651 = vld [vmem:[#allocation3 + $0x1f8] sm:$0xff]
    %v2652 = vld [vmem:[%s18] sm:$0xf]
    %v2654 = vperm.slane %v2652, 0
    %v2655 = vperm.slane %v2652, 1
    %v2656 = vperm.slane %v2652, 2
    %v2657 = vperm.slane %v2652, 3
    %v2726 = vunpack.c.l.b16 %v2588
    %v2727 = vunpack.c.h.b16 %v2588
    %v2728 = vunpack.c.l.b16 %v2589
    %v2729 = vunpack.c.h.b16 %v2589
    %v2730 = vunpack.c.l.b16 %v2590
    %v2731 = vunpack.c.h.b16 %v2590
    %v2732 = vunpack.c.l.b16 %v2591
    %v2733 = vunpack.c.h.b16 %v2591
    %v2734 = vunpack.c.l.b16 %v2592
    %v2735 = vunpack.c.h.b16 %v2592
    %v2736 = vunpack.c.l.b16 %v2593
    %v2737 = vunpack.c.h.b16 %v2593
    %v2738 = vunpack.c.l.b16 %v2594
    %v2739 = vunpack.c.h.b16 %v2594
    %v2740 = vunpack.c.l.b16 %v2595
    %v2741 = vunpack.c.h.b16 %v2595
    %v2742 = vunpack.c.l.b16 %v2596
    %v2743 = vunpack.c.h.b16 %v2596
    %v2744 = vunpack.c.l.b16 %v2597
    %v2745 = vunpack.c.h.b16 %v2597
    %v2746 = vunpack.c.l.b16 %v2598
    %v2747 = vunpack.c.h.b16 %v2598
    %v2748 = vunpack.c.l.b16 %v2599
    %v2749 = vunpack.c.h.b16 %v2599
    %v2750 = vunpack.c.l.b16 %v2600
    %v2751 = vunpack.c.h.b16 %v2600
    %v2752 = vunpack.c.l.b16 %v2601
    %v2753 = vunpack.c.h.b16 %v2601
    %v2754 = vunpack.c.l.b16 %v2602
    %v2755 = vunpack.c.h.b16 %v2602
    %v2756 = vunpack.c.l.b16 %v2603
    %v2757 = vunpack.c.h.b16 %v2603
    %v2758 = vunpack.c.l.b16 %v2604
    %v2759 = vunpack.c.h.b16 %v2604
    %v2760 = vunpack.c.l.b16 %v2605
    %v2761 = vunpack.c.h.b16 %v2605
    %v2762 = vunpack.c.l.b16 %v2606
    %v2763 = vunpack.c.h.b16 %v2606
    %v2764 = vunpack.c.l.b16 %v2607
    %v2765 = vunpack.c.h.b16 %v2607
    %v2766 = vunpack.c.l.b16 %v2608
    %v2767 = vunpack.c.h.b16 %v2608
    %v2768 = vunpack.c.l.b16 %v2609
    %v2769 = vunpack.c.h.b16 %v2609
    %v2770 = vunpack.c.l.b16 %v2610
    %v2771 = vunpack.c.h.b16 %v2610
    %v2772 = vunpack.c.l.b16 %v2611
    %v2773 = vunpack.c.h.b16 %v2611
    %v2774 = vunpack.c.l.b16 %v2612
    %v2775 = vunpack.c.h.b16 %v2612
    %v2776 = vunpack.c.l.b16 %v2613
    %v2777 = vunpack.c.h.b16 %v2613
    %v2778 = vunpack.c.l.b16 %v2614
    %v2779 = vunpack.c.h.b16 %v2614
    %v2780 = vunpack.c.l.b16 %v2615
    %v2781 = vunpack.c.h.b16 %v2615
    %v2782 = vunpack.c.l.b16 %v2616
    %v2783 = vunpack.c.h.b16 %v2616
    %v2784 = vunpack.c.l.b16 %v2617
    %v2785 = vunpack.c.h.b16 %v2617
    %v2786 = vunpack.c.l.b16 %v2618
    %v2787 = vunpack.c.h.b16 %v2618
    %v2788 = vunpack.c.l.b16 %v2619
    %v2789 = vunpack.c.h.b16 %v2619
    %v2790 = vunpack.c.l.b16 %v2620
    %v2791 = vunpack.c.h.b16 %v2620
    %v2792 = vunpack.c.l.b16 %v2621
    %v2793 = vunpack.c.h.b16 %v2621
    %v2794 = vunpack.c.l.b16 %v2622
    %v2795 = vunpack.c.h.b16 %v2622
    %v2796 = vunpack.c.l.b16 %v2623
    %v2797 = vunpack.c.h.b16 %v2623
    %v2798 = vunpack.c.l.b16 %v2624
    %v2799 = vunpack.c.h.b16 %v2624
    %v2800 = vunpack.c.l.b16 %v2625
    %v2801 = vunpack.c.h.b16 %v2625
    %v2802 = vunpack.c.l.b16 %v2626
    %v2803 = vunpack.c.h.b16 %v2626
    %v2804 = vunpack.c.l.b16 %v2627
    %v2805 = vunpack.c.h.b16 %v2627
    %v2806 = vunpack.c.l.b16 %v2628
    %v2807 = vunpack.c.h.b16 %v2628
    %v2808 = vunpack.c.l.b16 %v2629
    %v2809 = vunpack.c.h.b16 %v2629
    %v2810 = vunpack.c.l.b16 %v2630
    %v2811 = vunpack.c.h.b16 %v2630
    %v2812 = vunpack.c.l.b16 %v2631
    %v2813 = vunpack.c.h.b16 %v2631
    %v2814 = vunpack.c.l.b16 %v2632
    %v2815 = vunpack.c.h.b16 %v2632
    %v2816 = vunpack.c.l.b16 %v2633
    %v2817 = vunpack.c.h.b16 %v2633
    %v2818 = vunpack.c.l.b16 %v2634
    %v2819 = vunpack.c.h.b16 %v2634
    %v2820 = vunpack.c.l.b16 %v2635
    %v2821 = vunpack.c.h.b16 %v2635
    %v2822 = vunpack.c.l.b16 %v2636
    %v2823 = vunpack.c.h.b16 %v2636
    %v2824 = vunpack.c.l.b16 %v2637
    %v2825 = vunpack.c.h.b16 %v2637
    %v2826 = vunpack.c.l.b16 %v2638
    %v2827 = vunpack.c.h.b16 %v2638
    %v2828 = vunpack.c.l.b16 %v2639
    %v2829 = vunpack.c.h.b16 %v2639
    %v2830 = vunpack.c.l.b16 %v2640
    %v2831 = vunpack.c.h.b16 %v2640
    %v2832 = vunpack.c.l.b16 %v2641
    %v2833 = vunpack.c.h.b16 %v2641
    %v2834 = vunpack.c.l.b16 %v2642
    %v2835 = vunpack.c.h.b16 %v2642
    %v2836 = vunpack.c.l.b16 %v2643
    %v2837 = vunpack.c.h.b16 %v2643
    %v2838 = vunpack.c.l.b16 %v2644
    %v2839 = vunpack.c.h.b16 %v2644
    %v2840 = vunpack.c.l.b16 %v2645
    %v2841 = vunpack.c.h.b16 %v2645
    %v2842 = vunpack.c.l.b16 %v2646
    %v2843 = vunpack.c.h.b16 %v2646
    %v2844 = vunpack.c.l.b16 %v2647
    %v2845 = vunpack.c.h.b16 %v2647
    %v2846 = vunpack.c.l.b16 %v2648
    %v2847 = vunpack.c.h.b16 %v2648
    %v2848 = vunpack.c.l.b16 %v2649
    %v2849 = vunpack.c.h.b16 %v2649
    %v2850 = vunpack.c.l.b16 %v2650
    %v2851 = vunpack.c.h.b16 %v2650
    %v2852 = vunpack.c.l.b16 %v2651
    %v2853 = vunpack.c.h.b16 %v2651
    %v2854 = vpack.c.b16 %v2730, %v2726
    %v2855 = vpack.c.b16 %v2731, %v2727
    %v2856 = vpack.c.b16 %v2732, %v2728
    %v2857 = vpack.c.b16 %v2733, %v2729
    %v2858 = vpack.c.b16 %v2738, %v2734
    %v2859 = vpack.c.b16 %v2739, %v2735
    %v2860 = vpack.c.b16 %v2740, %v2736
    %v2861 = vpack.c.b16 %v2741, %v2737
    %v2862 = vpack.c.b16 %v2746, %v2742
    %v2863 = vpack.c.b16 %v2747, %v2743
    %v2864 = vpack.c.b16 %v2748, %v2744
    %v2865 = vpack.c.b16 %v2749, %v2745
    %v2866 = vpack.c.b16 %v2754, %v2750
    %v2867 = vpack.c.b16 %v2755, %v2751
    %v2868 = vpack.c.b16 %v2756, %v2752
    %v2869 = vpack.c.b16 %v2757, %v2753
    %v2870 = vpack.c.b16 %v2762, %v2758
    %v2871 = vpack.c.b16 %v2763, %v2759
    %v2872 = vpack.c.b16 %v2764, %v2760
    %v2873 = vpack.c.b16 %v2765, %v2761
    %v2874 = vpack.c.b16 %v2770, %v2766
    %v2875 = vpack.c.b16 %v2771, %v2767
    %v2876 = vpack.c.b16 %v2772, %v2768
    %v2877 = vpack.c.b16 %v2773, %v2769
    %v2878 = vpack.c.b16 %v2778, %v2774
    %v2879 = vpack.c.b16 %v2779, %v2775
    %v2880 = vpack.c.b16 %v2780, %v2776
    %v2881 = vpack.c.b16 %v2781, %v2777
    %v2882 = vpack.c.b16 %v2786, %v2782
    %v2883 = vpack.c.b16 %v2787, %v2783
    %v2884 = vpack.c.b16 %v2788, %v2784
    %v2885 = vpack.c.b16 %v2789, %v2785
    %v2886 = vpack.c.b16 %v2794, %v2790
    %v2887 = vpack.c.b16 %v2795, %v2791
    %v2888 = vpack.c.b16 %v2796, %v2792
    %v2889 = vpack.c.b16 %v2797, %v2793
    %v2890 = vpack.c.b16 %v2802, %v2798
    %v2891 = vpack.c.b16 %v2803, %v2799
    %v2892 = vpack.c.b16 %v2804, %v2800
    %v2893 = vpack.c.b16 %v2805, %v2801
    %v2894 = vpack.c.b16 %v2810, %v2806
    %v2895 = vpack.c.b16 %v2811, %v2807
    %v2896 = vpack.c.b16 %v2812, %v2808
    %v2897 = vpack.c.b16 %v2813, %v2809
    %v2898 = vpack.c.b16 %v2818, %v2814
    %v2899 = vpack.c.b16 %v2819, %v2815
    %v2900 = vpack.c.b16 %v2820, %v2816
    %v2901 = vpack.c.b16 %v2821, %v2817
    %v2902 = vpack.c.b16 %v2826, %v2822
    %v2903 = vpack.c.b16 %v2827, %v2823
    %v2904 = vpack.c.b16 %v2828, %v2824
    %v2905 = vpack.c.b16 %v2829, %v2825
    %v2906 = vpack.c.b16 %v2834, %v2830
    %v2907 = vpack.c.b16 %v2835, %v2831
    %v2908 = vpack.c.b16 %v2836, %v2832
    %v2909 = vpack.c.b16 %v2837, %v2833
    %v2910 = vpack.c.b16 %v2842, %v2838
    %v2911 = vpack.c.b16 %v2843, %v2839
    %v2912 = vpack.c.b16 %v2844, %v2840
    %v2913 = vpack.c.b16 %v2845, %v2841
    %v2914 = vpack.c.b16 %v2850, %v2846
    %v2915 = vpack.c.b16 %v2851, %v2847
    %v2916 = vpack.c.b16 %v2852, %v2848
    %v2917 = vpack.c.b16 %v2853, %v2849
    %2982 = vmatpush.bf16.msra.mxu0 %v2882
    %2983 = vmatpush.bf16.msra.mxu0 %v2878
    %2984 = vmatpush.bf16.msra.mxu0 %v2874
    %2985 = vmatpush.bf16.msra.mxu0 %v2870
    %2986 = vmatpush.bf16.msra.mxu0 %v2866
    %2987 = vmatpush.bf16.msra.mxu0 %v2862
    %2988 = vmatpush.bf16.msra.mxu0 %v2858
    %2989 = vmatpush.bf16.msra.mxu0 %v2854
    %2990 = vmatmul.bf16.gmra.mxu0 %v2586
    %v2991 = vpop.f32.mrf.mxu0
    %v2992 = vadd.f32 %v2654, %v2991
    %v2993 = vpop.f32.mrf.mxu0
    %2994 = vdwg.mxu0
    %2995 = vmatpush.bf16.msra.mxu0 %v2914
    %2996 = vmatpush.bf16.msra.mxu0 %v2910
    %2997 = vmatpush.bf16.msra.mxu0 %v2906
    %2998 = vmatpush.bf16.msra.mxu0 %v2902
    %2999 = vmatpush.bf16.msra.mxu0 %v2898
    %3000 = vmatpush.bf16.msra.mxu0 %v2894
    %3001 = vmatpush.bf16.msra.mxu0 %v2890
    %3002 = vmatpush.bf16.msra.mxu0 %v2886
    %3003 = vmatmul.bf16.gmra.mxu0 %v2587
    %v3004 = vpop.f32.mrf.mxu0
    %v3005 = vadd.f32 %v2992, %v3004
    %v3006 = vpop.f32.mrf.mxu0
    %3007 = vdwg.mxu0
    %3008 = vmatpush.bf16.msra.mxu0 %v2883
    %3009 = vmatpush.bf16.msra.mxu0 %v2879
    %3010 = vmatpush.bf16.msra.mxu0 %v2875
    %3011 = vmatpush.bf16.msra.mxu0 %v2871
    %3012 = vmatpush.bf16.msra.mxu0 %v2867
    %3013 = vmatpush.bf16.msra.mxu0 %v2863
    %3014 = vmatpush.bf16.msra.mxu0 %v2859
    %3015 = vmatpush.bf16.msra.mxu0 %v2855
    %3016 = vmatmul.bf16.gmra.mxu0 %v2586
    %v3017 = vpop.f32.mrf.mxu0
    %v3018 = vadd.f32 %v2655, %v3017
    %v3019 = vpop.f32.mrf.mxu0
    %3020 = vdwg.mxu0
    %3021 = vmatpush.bf16.msra.mxu0 %v2915
    %3022 = vmatpush.bf16.msra.mxu0 %v2911
    %3023 = vmatpush.bf16.msra.mxu0 %v2907
    %3024 = vmatpush.bf16.msra.mxu0 %v2903
    %3025 = vmatpush.bf16.msra.mxu0 %v2899
    %3026 = vmatpush.bf16.msra.mxu0 %v2895
    %3027 = vmatpush.bf16.msra.mxu0 %v2891
    %3028 = vmatpush.bf16.msra.mxu0 %v2887
    %3029 = vmatmul.bf16.gmra.mxu0 %v2587
    %v3030 = vpop.f32.mrf.mxu0
    %v3031 = vadd.f32 %v3018, %v3030
    %v3032 = vpop.f32.mrf.mxu0
    %3033 = vdwg.mxu0
    %3034 = vmatpush.bf16.msra.mxu0 %v2884
    %3035 = vmatpush.bf16.msra.mxu0 %v2880
    %3036 = vmatpush.bf16.msra.mxu0 %v2876
    %3037 = vmatpush.bf16.msra.mxu0 %v2872
    %3038 = vmatpush.bf16.msra.mxu0 %v2868
    %3039 = vmatpush.bf16.msra.mxu0 %v2864
    %3040 = vmatpush.bf16.msra.mxu0 %v2860
    %3041 = vmatpush.bf16.msra.mxu0 %v2856
    %3042 = vmatmul.bf16.gmra.mxu0 %v2586
    %v3043 = vpop.f32.mrf.mxu0
    %v3044 = vadd.f32 %v2656, %v3043
    %v3045 = vpop.f32.mrf.mxu0
    %3046 = vdwg.mxu0
    %3047 = vmatpush.bf16.msra.mxu0 %v2916
    %3048 = vmatpush.bf16.msra.mxu0 %v2912
    %3049 = vmatpush.bf16.msra.mxu0 %v2908
    %3050 = vmatpush.bf16.msra.mxu0 %v2904
    %3051 = vmatpush.bf16.msra.mxu0 %v2900
    %3052 = vmatpush.bf16.msra.mxu0 %v2896
    %3053 = vmatpush.bf16.msra.mxu0 %v2892
    %3054 = vmatpush.bf16.msra.mxu0 %v2888
    %3055 = vmatmul.bf16.gmra.mxu0 %v2587
    %v3056 = vpop.f32.mrf.mxu0
    %v3057 = vadd.f32 %v3044, %v3056
    %v3058 = vpop.f32.mrf.mxu0
    %3059 = vdwg.mxu0
    %3060 = vmatpush.bf16.msra.mxu0 %v2885
    %3061 = vmatpush.bf16.msra.mxu0 %v2881
    %3062 = vmatpush.bf16.msra.mxu0 %v2877
    %3063 = vmatpush.bf16.msra.mxu0 %v2873
    %3064 = vmatpush.bf16.msra.mxu0 %v2869
    %3065 = vmatpush.bf16.msra.mxu0 %v2865
    %3066 = vmatpush.bf16.msra.mxu0 %v2861
    %3067 = vmatpush.bf16.msra.mxu0 %v2857
    %3068 = vmatmul.bf16.gmra.mxu0 %v2586
    %v3069 = vpop.f32.mrf.mxu0
    %v3070 = vadd.f32 %v2657, %v3069
    %v3071 = vpop.f32.mrf.mxu0
    %3072 = vdwg.mxu0
    %3073 = vmatpush.bf16.msra.mxu0 %v2917
    %3074 = vmatpush.bf16.msra.mxu0 %v2913
    %3075 = vmatpush.bf16.msra.mxu0 %v2909
    %3076 = vmatpush.bf16.msra.mxu0 %v2905
    %3077 = vmatpush.bf16.msra.mxu0 %v2901
    %3078 = vmatpush.bf16.msra.mxu0 %v2897
    %3079 = vmatpush.bf16.msra.mxu0 %v2893
    %3080 = vmatpush.bf16.msra.mxu0 %v2889
    %3081 = vmatmul.bf16.gmra.mxu0 %v2587
    %v3082 = vpop.f32.mrf.mxu0
    %v3083 = vadd.f32 %v3070, %v3082
    %v3084 = vpop.f32.mrf.mxu0
    %3085 = vdwg.mxu0
    %v3086 = vmax.f32 %v3005, 0.0
    %v3087 = vmax.f32 %v3031, 0.0
    %v3088 = vmax.f32 %v3057, 0.0
    %v3089 = vmax.f32 %v3083, 0.0
    %s3090 = smul.u32 4, 64
    %s3091 = smul.u32 %s3090, 8
    %s3092 = sshll.u32 %s3091, 4
    %3093 = dma.done %s283, %s3092
    %v3094 = vpack.c.bf16 %v3086, %v3086
    %v3095 = vpack.c.bf16 %v3087, %v3087
    %v3096 = vpack.c.bf16 %v3088, %v3088
    %v3097 = vpack.c.bf16 %v3089, %v3089
    %v3098 = vld [vmem:[#allocation4] sm:$0xff]
    %v3099 = vld [vmem:[#allocation4 + $0x8] sm:$0xff]
    %v3100 = vld [vmem:[#allocation4 + $0x10] sm:$0xff]
    %v3101 = vld [vmem:[#allocation4 + $0x18] sm:$0xff]
    %v3102 = vld [vmem:[#allocation4 + $0x20] sm:$0xff]
    %v3103 = vld [vmem:[#allocation4 + $0x28] sm:$0xff]
    %v3104 = vld [vmem:[#allocation4 + $0x30] sm:$0xff]
    %v3105 = vld [vmem:[#allocation4 + $0x38] sm:$0xff]
    %v3106 = vld [vmem:[#allocation4 + $0x40] sm:$0xff]
    %v3107 = vld [vmem:[#allocation4 + $0x48] sm:$0xff]
    %v3108 = vld [vmem:[#allocation4 + $0x50] sm:$0xff]
    %v3109 = vld [vmem:[#allocation4 + $0x58] sm:$0xff]
    %v3110 = vld [vmem:[#allocation4 + $0x60] sm:$0xff]
    %v3111 = vld [vmem:[#allocation4 + $0x68] sm:$0xff]
    %v3112 = vld [vmem:[#allocation4 + $0x70] sm:$0xff]
    %v3113 = vld [vmem:[#allocation4 + $0x78] sm:$0xff]
    %v3114 = vld [vmem:[#allocation4 + $0x80] sm:$0xff]
    %v3115 = vld [vmem:[#allocation4 + $0x88] sm:$0xff]
    %v3116 = vld [vmem:[#allocation4 + $0x90] sm:$0xff]
    %v3117 = vld [vmem:[#allocation4 + $0x98] sm:$0xff]
    %v3118 = vld [vmem:[#allocation4 + $0xa0] sm:$0xff]
    %v3119 = vld [vmem:[#allocation4 + $0xa8] sm:$0xff]
    %v3120 = vld [vmem:[#allocation4 + $0xb0] sm:$0xff]
    %v3121 = vld [vmem:[#allocation4 + $0xb8] sm:$0xff]
    %v3122 = vld [vmem:[#allocation4 + $0xc0] sm:$0xff]
    %v3123 = vld [vmem:[#allocation4 + $0xc8] sm:$0xff]
    %v3124 = vld [vmem:[#allocation4 + $0xd0] sm:$0xff]
    %v3125 = vld [vmem:[#allocation4 + $0xd8] sm:$0xff]
    %v3126 = vld [vmem:[#allocation4 + $0xe0] sm:$0xff]
    %v3127 = vld [vmem:[#allocation4 + $0xe8] sm:$0xff]
    %v3128 = vld [vmem:[#allocation4 + $0xf0] sm:$0xff]
    %v3129 = vld [vmem:[#allocation4 + $0xf8] sm:$0xff]
    %v3130 = vld [vmem:[#allocation4 + $0x100] sm:$0xff]
    %v3131 = vld [vmem:[#allocation4 + $0x108] sm:$0xff]
    %v3132 = vld [vmem:[#allocation4 + $0x110] sm:$0xff]
    %v3133 = vld [vmem:[#allocation4 + $0x118] sm:$0xff]
    %v3134 = vld [vmem:[#allocation4 + $0x120] sm:$0xff]
    %v3135 = vld [vmem:[#allocation4 + $0x128] sm:$0xff]
    %v3136 = vld [vmem:[#allocation4 + $0x130] sm:$0xff]
    %v3137 = vld [vmem:[#allocation4 + $0x138] sm:$0xff]
    %v3138 = vld [vmem:[#allocation4 + $0x140] sm:$0xff]
    %v3139 = vld [vmem:[#allocation4 + $0x148] sm:$0xff]
    %v3140 = vld [vmem:[#allocation4 + $0x150] sm:$0xff]
    %v3141 = vld [vmem:[#allocation4 + $0x158] sm:$0xff]
    %v3142 = vld [vmem:[#allocation4 + $0x160] sm:$0xff]
    %v3143 = vld [vmem:[#allocation4 + $0x168] sm:$0xff]
    %v3144 = vld [vmem:[#allocation4 + $0x170] sm:$0xff]
    %v3145 = vld [vmem:[#allocation4 + $0x178] sm:$0xff]
    %v3146 = vld [vmem:[#allocation4 + $0x180] sm:$0xff]
    %v3147 = vld [vmem:[#allocation4 + $0x188] sm:$0xff]
    %v3148 = vld [vmem:[#allocation4 + $0x190] sm:$0xff]
    %v3149 = vld [vmem:[#allocation4 + $0x198] sm:$0xff]
    %v3150 = vld [vmem:[#allocation4 + $0x1a0] sm:$0xff]
    %v3151 = vld [vmem:[#allocation4 + $0x1a8] sm:$0xff]
    %v3152 = vld [vmem:[#allocation4 + $0x1b0] sm:$0xff]
    %v3153 = vld [vmem:[#allocation4 + $0x1b8] sm:$0xff]
    %v3154 = vld [vmem:[#allocation4 + $0x1c0] sm:$0xff]
    %v3155 = vld [vmem:[#allocation4 + $0x1c8] sm:$0xff]
    %v3156 = vld [vmem:[#allocation4 + $0x1d0] sm:$0xff]
    %v3157 = vld [vmem:[#allocation4 + $0x1d8] sm:$0xff]
    %v3158 = vld [vmem:[#allocation4 + $0x1e0] sm:$0xff]
    %v3159 = vld [vmem:[#allocation4 + $0x1e8] sm:$0xff]
    %v3160 = vld [vmem:[#allocation4 + $0x1f0] sm:$0xff]
    %v3161 = vld [vmem:[#allocation4 + $0x1f8] sm:$0xff]
    %v3162 = vld [vmem:[#allocation4 + $0x200] sm:$0xff]
    %v3163 = vld [vmem:[#allocation4 + $0x208] sm:$0xff]
    %v3164 = vld [vmem:[#allocation4 + $0x210] sm:$0xff]
    %v3165 = vld [vmem:[#allocation4 + $0x218] sm:$0xff]
    %v3166 = vld [vmem:[#allocation4 + $0x220] sm:$0xff]
    %v3167 = vld [vmem:[#allocation4 + $0x228] sm:$0xff]
    %v3168 = vld [vmem:[#allocation4 + $0x230] sm:$0xff]
    %v3169 = vld [vmem:[#allocation4 + $0x238] sm:$0xff]
    %v3170 = vld [vmem:[#allocation4 + $0x240] sm:$0xff]
    %v3171 = vld [vmem:[#allocation4 + $0x248] sm:$0xff]
    %v3172 = vld [vmem:[#allocation4 + $0x250] sm:$0xff]
    %v3173 = vld [vmem:[#allocation4 + $0x258] sm:$0xff]
    %v3174 = vld [vmem:[#allocation4 + $0x260] sm:$0xff]
    %v3175 = vld [vmem:[#allocation4 + $0x268] sm:$0xff]
    %v3176 = vld [vmem:[#allocation4 + $0x270] sm:$0xff]
    %v3177 = vld [vmem:[#allocation4 + $0x278] sm:$0xff]
    %v3178 = vld [vmem:[#allocation4 + $0x280] sm:$0xff]
    %v3179 = vld [vmem:[#allocation4 + $0x288] sm:$0xff]
    %v3180 = vld [vmem:[#allocation4 + $0x290] sm:$0xff]
    %v3181 = vld [vmem:[#allocation4 + $0x298] sm:$0xff]
    %v3182 = vld [vmem:[#allocation4 + $0x2a0] sm:$0xff]
    %v3183 = vld [vmem:[#allocation4 + $0x2a8] sm:$0xff]
    %v3184 = vld [vmem:[#allocation4 + $0x2b0] sm:$0xff]
    %v3185 = vld [vmem:[#allocation4 + $0x2b8] sm:$0xff]
    %v3186 = vld [vmem:[#allocation4 + $0x2c0] sm:$0xff]
    %v3187 = vld [vmem:[#allocation4 + $0x2c8] sm:$0xff]
    %v3188 = vld [vmem:[#allocation4 + $0x2d0] sm:$0xff]
    %v3189 = vld [vmem:[#allocation4 + $0x2d8] sm:$0xff]
    %v3190 = vld [vmem:[#allocation4 + $0x2e0] sm:$0xff]
    %v3191 = vld [vmem:[#allocation4 + $0x2e8] sm:$0xff]
    %v3192 = vld [vmem:[#allocation4 + $0x2f0] sm:$0xff]
    %v3193 = vld [vmem:[#allocation4 + $0x2f8] sm:$0xff]
    %v3194 = vld [vmem:[#allocation4 + $0x300] sm:$0xff]
    %v3195 = vld [vmem:[#allocation4 + $0x308] sm:$0xff]
    %v3196 = vld [vmem:[#allocation4 + $0x310] sm:$0xff]
    %v3197 = vld [vmem:[#allocation4 + $0x318] sm:$0xff]
    %v3198 = vld [vmem:[#allocation4 + $0x320] sm:$0xff]
    %v3199 = vld [vmem:[#allocation4 + $0x328] sm:$0xff]
    %v3200 = vld [vmem:[#allocation4 + $0x330] sm:$0xff]
    %v3201 = vld [vmem:[#allocation4 + $0x338] sm:$0xff]
    %v3202 = vld [vmem:[#allocation4 + $0x340] sm:$0xff]
    %v3203 = vld [vmem:[#allocation4 + $0x348] sm:$0xff]
    %v3204 = vld [vmem:[#allocation4 + $0x350] sm:$0xff]
    %v3205 = vld [vmem:[#allocation4 + $0x358] sm:$0xff]
    %v3206 = vld [vmem:[#allocation4 + $0x360] sm:$0xff]
    %v3207 = vld [vmem:[#allocation4 + $0x368] sm:$0xff]
    %v3208 = vld [vmem:[#allocation4 + $0x370] sm:$0xff]
    %v3209 = vld [vmem:[#allocation4 + $0x378] sm:$0xff]
    %v3210 = vld [vmem:[#allocation4 + $0x380] sm:$0xff]
    %v3211 = vld [vmem:[#allocation4 + $0x388] sm:$0xff]
    %v3212 = vld [vmem:[#allocation4 + $0x390] sm:$0xff]
    %v3213 = vld [vmem:[#allocation4 + $0x398] sm:$0xff]
    %v3214 = vld [vmem:[#allocation4 + $0x3a0] sm:$0xff]
    %v3215 = vld [vmem:[#allocation4 + $0x3a8] sm:$0xff]
    %v3216 = vld [vmem:[#allocation4 + $0x3b0] sm:$0xff]
    %v3217 = vld [vmem:[#allocation4 + $0x3b8] sm:$0xff]
    %v3218 = vld [vmem:[#allocation4 + $0x3c0] sm:$0xff]
    %v3219 = vld [vmem:[#allocation4 + $0x3c8] sm:$0xff]
    %v3220 = vld [vmem:[#allocation4 + $0x3d0] sm:$0xff]
    %v3221 = vld [vmem:[#allocation4 + $0x3d8] sm:$0xff]
    %v3222 = vld [vmem:[#allocation4 + $0x3e0] sm:$0xff]
    %v3223 = vld [vmem:[#allocation4 + $0x3e8] sm:$0xff]
    %v3224 = vld [vmem:[#allocation4 + $0x3f0] sm:$0xff]
    %v3225 = vld [vmem:[#allocation4 + $0x3f8] sm:$0xff]
    %v3226 = vld [vmem:[#allocation4 + $0x400] sm:$0xff]
    %v3227 = vld [vmem:[#allocation4 + $0x408] sm:$0xff]
    %v3228 = vld [vmem:[#allocation4 + $0x410] sm:$0xff]
    %v3229 = vld [vmem:[#allocation4 + $0x418] sm:$0xff]
    %v3230 = vld [vmem:[#allocation4 + $0x420] sm:$0xff]
    %v3231 = vld [vmem:[#allocation4 + $0x428] sm:$0xff]
    %v3232 = vld [vmem:[#allocation4 + $0x430] sm:$0xff]
    %v3233 = vld [vmem:[#allocation4 + $0x438] sm:$0xff]
    %v3234 = vld [vmem:[#allocation4 + $0x440] sm:$0xff]
    %v3235 = vld [vmem:[#allocation4 + $0x448] sm:$0xff]
    %v3236 = vld [vmem:[#allocation4 + $0x450] sm:$0xff]
    %v3237 = vld [vmem:[#allocation4 + $0x458] sm:$0xff]
    %v3238 = vld [vmem:[#allocation4 + $0x460] sm:$0xff]
    %v3239 = vld [vmem:[#allocation4 + $0x468] sm:$0xff]
    %v3240 = vld [vmem:[#allocation4 + $0x470] sm:$0xff]
    %v3241 = vld [vmem:[#allocation4 + $0x478] sm:$0xff]
    %v3242 = vld [vmem:[#allocation4 + $0x480] sm:$0xff]
    %v3243 = vld [vmem:[#allocation4 + $0x488] sm:$0xff]
    %v3244 = vld [vmem:[#allocation4 + $0x490] sm:$0xff]
    %v3245 = vld [vmem:[#allocation4 + $0x498] sm:$0xff]
    %v3246 = vld [vmem:[#allocation4 + $0x4a0] sm:$0xff]
    %v3247 = vld [vmem:[#allocation4 + $0x4a8] sm:$0xff]
    %v3248 = vld [vmem:[#allocation4 + $0x4b0] sm:$0xff]
    %v3249 = vld [vmem:[#allocation4 + $0x4b8] sm:$0xff]
    %v3250 = vld [vmem:[#allocation4 + $0x4c0] sm:$0xff]
    %v3251 = vld [vmem:[#allocation4 + $0x4c8] sm:$0xff]
    %v3252 = vld [vmem:[#allocation4 + $0x4d0] sm:$0xff]
    %v3253 = vld [vmem:[#allocation4 + $0x4d8] sm:$0xff]
    %v3254 = vld [vmem:[#allocation4 + $0x4e0] sm:$0xff]
    %v3255 = vld [vmem:[#allocation4 + $0x4e8] sm:$0xff]
    %v3256 = vld [vmem:[#allocation4 + $0x4f0] sm:$0xff]
    %v3257 = vld [vmem:[#allocation4 + $0x4f8] sm:$0xff]
    %v3258 = vld [vmem:[#allocation4 + $0x500] sm:$0xff]
    %v3259 = vld [vmem:[#allocation4 + $0x508] sm:$0xff]
    %v3260 = vld [vmem:[#allocation4 + $0x510] sm:$0xff]
    %v3261 = vld [vmem:[#allocation4 + $0x518] sm:$0xff]
    %v3262 = vld [vmem:[#allocation4 + $0x520] sm:$0xff]
    %v3263 = vld [vmem:[#allocation4 + $0x528] sm:$0xff]
    %v3264 = vld [vmem:[#allocation4 + $0x530] sm:$0xff]
    %v3265 = vld [vmem:[#allocation4 + $0x538] sm:$0xff]
    %v3266 = vld [vmem:[#allocation4 + $0x540] sm:$0xff]
    %v3267 = vld [vmem:[#allocation4 + $0x548] sm:$0xff]
    %v3268 = vld [vmem:[#allocation4 + $0x550] sm:$0xff]
    %v3269 = vld [vmem:[#allocation4 + $0x558] sm:$0xff]
    %v3270 = vld [vmem:[#allocation4 + $0x560] sm:$0xff]
    %v3271 = vld [vmem:[#allocation4 + $0x568] sm:$0xff]
    %v3272 = vld [vmem:[#allocation4 + $0x570] sm:$0xff]
    %v3273 = vld [vmem:[#allocation4 + $0x578] sm:$0xff]
    %v3274 = vld [vmem:[#allocation4 + $0x580] sm:$0xff]
    %v3275 = vld [vmem:[#allocation4 + $0x588] sm:$0xff]
    %v3276 = vld [vmem:[#allocation4 + $0x590] sm:$0xff]
    %v3277 = vld [vmem:[#allocation4 + $0x598] sm:$0xff]
    %v3278 = vld [vmem:[#allocation4 + $0x5a0] sm:$0xff]
    %v3279 = vld [vmem:[#allocation4 + $0x5a8] sm:$0xff]
    %v3280 = vld [vmem:[#allocation4 + $0x5b0] sm:$0xff]
    %v3281 = vld [vmem:[#allocation4 + $0x5b8] sm:$0xff]
    %v3282 = vld [vmem:[#allocation4 + $0x5c0] sm:$0xff]
    %v3283 = vld [vmem:[#allocation4 + $0x5c8] sm:$0xff]
    %v3284 = vld [vmem:[#allocation4 + $0x5d0] sm:$0xff]
    %v3285 = vld [vmem:[#allocation4 + $0x5d8] sm:$0xff]
    %v3286 = vld [vmem:[#allocation4 + $0x5e0] sm:$0xff]
    %v3287 = vld [vmem:[#allocation4 + $0x5e8] sm:$0xff]
    %v3288 = vld [vmem:[#allocation4 + $0x5f0] sm:$0xff]
    %v3289 = vld [vmem:[#allocation4 + $0x5f8] sm:$0xff]
    %v3290 = vld [vmem:[#allocation4 + $0x600] sm:$0xff]
    %v3291 = vld [vmem:[#allocation4 + $0x608] sm:$0xff]
    %v3292 = vld [vmem:[#allocation4 + $0x610] sm:$0xff]
    %v3293 = vld [vmem:[#allocation4 + $0x618] sm:$0xff]
    %v3294 = vld [vmem:[#allocation4 + $0x620] sm:$0xff]
    %v3295 = vld [vmem:[#allocation4 + $0x628] sm:$0xff]
    %v3296 = vld [vmem:[#allocation4 + $0x630] sm:$0xff]
    %v3297 = vld [vmem:[#allocation4 + $0x638] sm:$0xff]
    %v3298 = vld [vmem:[#allocation4 + $0x640] sm:$0xff]
    %v3299 = vld [vmem:[#allocation4 + $0x648] sm:$0xff]
    %v3300 = vld [vmem:[#allocation4 + $0x650] sm:$0xff]
    %v3301 = vld [vmem:[#allocation4 + $0x658] sm:$0xff]
    %v3302 = vld [vmem:[#allocation4 + $0x660] sm:$0xff]
    %v3303 = vld [vmem:[#allocation4 + $0x668] sm:$0xff]
    %v3304 = vld [vmem:[#allocation4 + $0x670] sm:$0xff]
    %v3305 = vld [vmem:[#allocation4 + $0x678] sm:$0xff]
    %v3306 = vld [vmem:[#allocation4 + $0x680] sm:$0xff]
    %v3307 = vld [vmem:[#allocation4 + $0x688] sm:$0xff]
    %v3308 = vld [vmem:[#allocation4 + $0x690] sm:$0xff]
    %v3309 = vld [vmem:[#allocation4 + $0x698] sm:$0xff]
    %v3310 = vld [vmem:[#allocation4 + $0x6a0] sm:$0xff]
    %v3311 = vld [vmem:[#allocation4 + $0x6a8] sm:$0xff]
    %v3312 = vld [vmem:[#allocation4 + $0x6b0] sm:$0xff]
    %v3313 = vld [vmem:[#allocation4 + $0x6b8] sm:$0xff]
    %v3314 = vld [vmem:[#allocation4 + $0x6c0] sm:$0xff]
    %v3315 = vld [vmem:[#allocation4 + $0x6c8] sm:$0xff]
    %v3316 = vld [vmem:[#allocation4 + $0x6d0] sm:$0xff]
    %v3317 = vld [vmem:[#allocation4 + $0x6d8] sm:$0xff]
    %v3318 = vld [vmem:[#allocation4 + $0x6e0] sm:$0xff]
    %v3319 = vld [vmem:[#allocation4 + $0x6e8] sm:$0xff]
    %v3320 = vld [vmem:[#allocation4 + $0x6f0] sm:$0xff]
    %v3321 = vld [vmem:[#allocation4 + $0x6f8] sm:$0xff]
    %v3322 = vld [vmem:[#allocation4 + $0x700] sm:$0xff]
    %v3323 = vld [vmem:[#allocation4 + $0x708] sm:$0xff]
    %v3324 = vld [vmem:[#allocation4 + $0x710] sm:$0xff]
    %v3325 = vld [vmem:[#allocation4 + $0x718] sm:$0xff]
    %v3326 = vld [vmem:[#allocation4 + $0x720] sm:$0xff]
    %v3327 = vld [vmem:[#allocation4 + $0x728] sm:$0xff]
    %v3328 = vld [vmem:[#allocation4 + $0x730] sm:$0xff]
    %v3329 = vld [vmem:[#allocation4 + $0x738] sm:$0xff]
    %v3330 = vld [vmem:[#allocation4 + $0x740] sm:$0xff]
    %v3331 = vld [vmem:[#allocation4 + $0x748] sm:$0xff]
    %v3332 = vld [vmem:[#allocation4 + $0x750] sm:$0xff]
    %v3333 = vld [vmem:[#allocation4 + $0x758] sm:$0xff]
    %v3334 = vld [vmem:[#allocation4 + $0x760] sm:$0xff]
    %v3335 = vld [vmem:[#allocation4 + $0x768] sm:$0xff]
    %v3336 = vld [vmem:[#allocation4 + $0x770] sm:$0xff]
    %v3337 = vld [vmem:[#allocation4 + $0x778] sm:$0xff]
    %v3338 = vld [vmem:[#allocation4 + $0x780] sm:$0xff]
    %v3339 = vld [vmem:[#allocation4 + $0x788] sm:$0xff]
    %v3340 = vld [vmem:[#allocation4 + $0x790] sm:$0xff]
    %v3341 = vld [vmem:[#allocation4 + $0x798] sm:$0xff]
    %v3342 = vld [vmem:[#allocation4 + $0x7a0] sm:$0xff]
    %v3343 = vld [vmem:[#allocation4 + $0x7a8] sm:$0xff]
    %v3344 = vld [vmem:[#allocation4 + $0x7b0] sm:$0xff]
    %v3345 = vld [vmem:[#allocation4 + $0x7b8] sm:$0xff]
    %v3346 = vld [vmem:[#allocation4 + $0x7c0] sm:$0xff]
    %v3347 = vld [vmem:[#allocation4 + $0x7c8] sm:$0xff]
    %v3348 = vld [vmem:[#allocation4 + $0x7d0] sm:$0xff]
    %v3349 = vld [vmem:[#allocation4 + $0x7d8] sm:$0xff]
    %v3350 = vld [vmem:[#allocation4 + $0x7e0] sm:$0xff]
    %v3351 = vld [vmem:[#allocation4 + $0x7e8] sm:$0xff]
    %v3352 = vld [vmem:[#allocation4 + $0x7f0] sm:$0xff]
    %v3353 = vld [vmem:[#allocation4 + $0x7f8] sm:$0xff]
    %v3354 = vld [vmem:[%s19] sm:$0xff]
    %v3356 = vperm.slane %v3354, 0
    %v3357 = vperm.slane %v3354, 1
    %v3358 = vperm.slane %v3354, 2
    %v3359 = vperm.slane %v3354, 3
    %v3360 = vperm.slane %v3354, 4
    %v3361 = vperm.slane %v3354, 5
    %v3362 = vperm.slane %v3354, 6
    %v3363 = vperm.slane %v3354, 7
    %v3628 = vunpack.c.l.b16 %v3098
    %v3629 = vunpack.c.h.b16 %v3098
    %v3630 = vunpack.c.l.b16 %v3099
    %v3631 = vunpack.c.h.b16 %v3099
    %v3632 = vunpack.c.l.b16 %v3100
    %v3633 = vunpack.c.h.b16 %v3100
    %v3634 = vunpack.c.l.b16 %v3101
    %v3635 = vunpack.c.h.b16 %v3101
    %v3636 = vunpack.c.l.b16 %v3102
    %v3637 = vunpack.c.h.b16 %v3102
    %v3638 = vunpack.c.l.b16 %v3103
    %v3639 = vunpack.c.h.b16 %v3103
    %v3640 = vunpack.c.l.b16 %v3104
    %v3641 = vunpack.c.h.b16 %v3104
    %v3642 = vunpack.c.l.b16 %v3105
    %v3643 = vunpack.c.h.b16 %v3105
    %v3644 = vunpack.c.l.b16 %v3106
    %v3645 = vunpack.c.h.b16 %v3106
    %v3646 = vunpack.c.l.b16 %v3107
    %v3647 = vunpack.c.h.b16 %v3107
    %v3648 = vunpack.c.l.b16 %v3108
    %v3649 = vunpack.c.h.b16 %v3108
    %v3650 = vunpack.c.l.b16 %v3109
    %v3651 = vunpack.c.h.b16 %v3109
    %v3652 = vunpack.c.l.b16 %v3110
    %v3653 = vunpack.c.h.b16 %v3110
    %v3654 = vunpack.c.l.b16 %v3111
    %v3655 = vunpack.c.h.b16 %v3111
    %v3656 = vunpack.c.l.b16 %v3112
    %v3657 = vunpack.c.h.b16 %v3112
    %v3658 = vunpack.c.l.b16 %v3113
    %v3659 = vunpack.c.h.b16 %v3113
    %v3660 = vunpack.c.l.b16 %v3114
    %v3661 = vunpack.c.h.b16 %v3114
    %v3662 = vunpack.c.l.b16 %v3115
    %v3663 = vunpack.c.h.b16 %v3115
    %v3664 = vunpack.c.l.b16 %v3116
    %v3665 = vunpack.c.h.b16 %v3116
    %v3666 = vunpack.c.l.b16 %v3117
    %v3667 = vunpack.c.h.b16 %v3117
    %v3668 = vunpack.c.l.b16 %v3118
    %v3669 = vunpack.c.h.b16 %v3118
    %v3670 = vunpack.c.l.b16 %v3119
    %v3671 = vunpack.c.h.b16 %v3119
    %v3672 = vunpack.c.l.b16 %v3120
    %v3673 = vunpack.c.h.b16 %v3120
    %v3674 = vunpack.c.l.b16 %v3121
    %v3675 = vunpack.c.h.b16 %v3121
    %v3676 = vunpack.c.l.b16 %v3122
    %v3677 = vunpack.c.h.b16 %v3122
    %v3678 = vunpack.c.l.b16 %v3123
    %v3679 = vunpack.c.h.b16 %v3123
    %v3680 = vunpack.c.l.b16 %v3124
    %v3681 = vunpack.c.h.b16 %v3124
    %v3682 = vunpack.c.l.b16 %v3125
    %v3683 = vunpack.c.h.b16 %v3125
    %v3684 = vunpack.c.l.b16 %v3126
    %v3685 = vunpack.c.h.b16 %v3126
    %v3686 = vunpack.c.l.b16 %v3127
    %v3687 = vunpack.c.h.b16 %v3127
    %v3688 = vunpack.c.l.b16 %v3128
    %v3689 = vunpack.c.h.b16 %v3128
    %v3690 = vunpack.c.l.b16 %v3129
    %v3691 = vunpack.c.h.b16 %v3129
    %v3692 = vunpack.c.l.b16 %v3130
    %v3693 = vunpack.c.h.b16 %v3130
    %v3694 = vunpack.c.l.b16 %v3131
    %v3695 = vunpack.c.h.b16 %v3131
    %v3696 = vunpack.c.l.b16 %v3132
    %v3697 = vunpack.c.h.b16 %v3132
    %v3698 = vunpack.c.l.b16 %v3133
    %v3699 = vunpack.c.h.b16 %v3133
    %v3700 = vunpack.c.l.b16 %v3134
    %v3701 = vunpack.c.h.b16 %v3134
    %v3702 = vunpack.c.l.b16 %v3135
    %v3703 = vunpack.c.h.b16 %v3135
    %v3704 = vunpack.c.l.b16 %v3136
    %v3705 = vunpack.c.h.b16 %v3136
    %v3706 = vunpack.c.l.b16 %v3137
    %v3707 = vunpack.c.h.b16 %v3137
    %v3708 = vunpack.c.l.b16 %v3138
    %v3709 = vunpack.c.h.b16 %v3138
    %v3710 = vunpack.c.l.b16 %v3139
    %v3711 = vunpack.c.h.b16 %v3139
    %v3712 = vunpack.c.l.b16 %v3140
    %v3713 = vunpack.c.h.b16 %v3140
    %v3714 = vunpack.c.l.b16 %v3141
    %v3715 = vunpack.c.h.b16 %v3141
    %v3716 = vunpack.c.l.b16 %v3142
    %v3717 = vunpack.c.h.b16 %v3142
    %v3718 = vunpack.c.l.b16 %v3143
    %v3719 = vunpack.c.h.b16 %v3143
    %v3720 = vunpack.c.l.b16 %v3144
    %v3721 = vunpack.c.h.b16 %v3144
    %v3722 = vunpack.c.l.b16 %v3145
    %v3723 = vunpack.c.h.b16 %v3145
    %v3724 = vunpack.c.l.b16 %v3146
    %v3725 = vunpack.c.h.b16 %v3146
    %v3726 = vunpack.c.l.b16 %v3147
    %v3727 = vunpack.c.h.b16 %v3147
    %v3728 = vunpack.c.l.b16 %v3148
    %v3729 = vunpack.c.h.b16 %v3148
    %v3730 = vunpack.c.l.b16 %v3149
    %v3731 = vunpack.c.h.b16 %v3149
    %v3732 = vunpack.c.l.b16 %v3150
    %v3733 = vunpack.c.h.b16 %v3150
    %v3734 = vunpack.c.l.b16 %v3151
    %v3735 = vunpack.c.h.b16 %v3151
    %v3736 = vunpack.c.l.b16 %v3152
    %v3737 = vunpack.c.h.b16 %v3152
    %v3738 = vunpack.c.l.b16 %v3153
    %v3739 = vunpack.c.h.b16 %v3153
    %v3740 = vunpack.c.l.b16 %v3154
    %v3741 = vunpack.c.h.b16 %v3154
    %v3742 = vunpack.c.l.b16 %v3155
    %v3743 = vunpack.c.h.b16 %v3155
    %v3744 = vunpack.c.l.b16 %v3156
    %v3745 = vunpack.c.h.b16 %v3156
    %v3746 = vunpack.c.l.b16 %v3157
    %v3747 = vunpack.c.h.b16 %v3157
    %v3748 = vunpack.c.l.b16 %v3158
    %v3749 = vunpack.c.h.b16 %v3158
    %v3750 = vunpack.c.l.b16 %v3159
    %v3751 = vunpack.c.h.b16 %v3159
    %v3752 = vunpack.c.l.b16 %v3160
    %v3753 = vunpack.c.h.b16 %v3160
    %v3754 = vunpack.c.l.b16 %v3161
    %v3755 = vunpack.c.h.b16 %v3161
    %v3756 = vunpack.c.l.b16 %v3162
    %v3757 = vunpack.c.h.b16 %v3162
    %v3758 = vunpack.c.l.b16 %v3163
    %v3759 = vunpack.c.h.b16 %v3163
    %v3760 = vunpack.c.l.b16 %v3164
    %v3761 = vunpack.c.h.b16 %v3164
    %v3762 = vunpack.c.l.b16 %v3165
    %v3763 = vunpack.c.h.b16 %v3165
    %v3764 = vunpack.c.l.b16 %v3166
    %v3765 = vunpack.c.h.b16 %v3166
    %v3766 = vunpack.c.l.b16 %v3167
    %v3767 = vunpack.c.h.b16 %v3167
    %v3768 = vunpack.c.l.b16 %v3168
    %v3769 = vunpack.c.h.b16 %v3168
    %v3770 = vunpack.c.l.b16 %v3169
    %v3771 = vunpack.c.h.b16 %v3169
    %v3772 = vunpack.c.l.b16 %v3170
    %v3773 = vunpack.c.h.b16 %v3170
    %v3774 = vunpack.c.l.b16 %v3171
    %v3775 = vunpack.c.h.b16 %v3171
    %v3776 = vunpack.c.l.b16 %v3172
    %v3777 = vunpack.c.h.b16 %v3172
    %v3778 = vunpack.c.l.b16 %v3173
    %v3779 = vunpack.c.h.b16 %v3173
    %v3780 = vunpack.c.l.b16 %v3174
    %v3781 = vunpack.c.h.b16 %v3174
    %v3782 = vunpack.c.l.b16 %v3175
    %v3783 = vunpack.c.h.b16 %v3175
    %v3784 = vunpack.c.l.b16 %v3176
    %v3785 = vunpack.c.h.b16 %v3176
    %v3786 = vunpack.c.l.b16 %v3177
    %v3787 = vunpack.c.h.b16 %v3177
    %v3788 = vunpack.c.l.b16 %v3178
    %v3789 = vunpack.c.h.b16 %v3178
    %v3790 = vunpack.c.l.b16 %v3179
    %v3791 = vunpack.c.h.b16 %v3179
    %v3792 = vunpack.c.l.b16 %v3180
    %v3793 = vunpack.c.h.b16 %v3180
    %v3794 = vunpack.c.l.b16 %v3181
    %v3795 = vunpack.c.h.b16 %v3181
    %v3796 = vunpack.c.l.b16 %v3182
    %v3797 = vunpack.c.h.b16 %v3182
    %v3798 = vunpack.c.l.b16 %v3183
    %v3799 = vunpack.c.h.b16 %v3183
    %v3800 = vunpack.c.l.b16 %v3184
    %v3801 = vunpack.c.h.b16 %v3184
    %v3802 = vunpack.c.l.b16 %v3185
    %v3803 = vunpack.c.h.b16 %v3185
    %v3804 = vunpack.c.l.b16 %v3186
    %v3805 = vunpack.c.h.b16 %v3186
    %v3806 = vunpack.c.l.b16 %v3187
    %v3807 = vunpack.c.h.b16 %v3187
    %v3808 = vunpack.c.l.b16 %v3188
    %v3809 = vunpack.c.h.b16 %v3188
    %v3810 = vunpack.c.l.b16 %v3189
    %v3811 = vunpack.c.h.b16 %v3189
    %v3812 = vunpack.c.l.b16 %v3190
    %v3813 = vunpack.c.h.b16 %v3190
    %v3814 = vunpack.c.l.b16 %v3191
    %v3815 = vunpack.c.h.b16 %v3191
    %v3816 = vunpack.c.l.b16 %v3192
    %v3817 = vunpack.c.h.b16 %v3192
    %v3818 = vunpack.c.l.b16 %v3193
    %v3819 = vunpack.c.h.b16 %v3193
    %v3820 = vunpack.c.l.b16 %v3194
    %v3821 = vunpack.c.h.b16 %v3194
    %v3822 = vunpack.c.l.b16 %v3195
    %v3823 = vunpack.c.h.b16 %v3195
    %v3824 = vunpack.c.l.b16 %v3196
    %v3825 = vunpack.c.h.b16 %v3196
    %v3826 = vunpack.c.l.b16 %v3197
    %v3827 = vunpack.c.h.b16 %v3197
    %v3828 = vunpack.c.l.b16 %v3198
    %v3829 = vunpack.c.h.b16 %v3198
    %v3830 = vunpack.c.l.b16 %v3199
    %v3831 = vunpack.c.h.b16 %v3199
    %v3832 = vunpack.c.l.b16 %v3200
    %v3833 = vunpack.c.h.b16 %v3200
    %v3834 = vunpack.c.l.b16 %v3201
    %v3835 = vunpack.c.h.b16 %v3201
    %v3836 = vunpack.c.l.b16 %v3202
    %v3837 = vunpack.c.h.b16 %v3202
    %v3838 = vunpack.c.l.b16 %v3203
    %v3839 = vunpack.c.h.b16 %v3203
    %v3840 = vunpack.c.l.b16 %v3204
    %v3841 = vunpack.c.h.b16 %v3204
    %v3842 = vunpack.c.l.b16 %v3205
    %v3843 = vunpack.c.h.b16 %v3205
    %v3844 = vunpack.c.l.b16 %v3206
    %v3845 = vunpack.c.h.b16 %v3206
    %v3846 = vunpack.c.l.b16 %v3207
    %v3847 = vunpack.c.h.b16 %v3207
    %v3848 = vunpack.c.l.b16 %v3208
    %v3849 = vunpack.c.h.b16 %v3208
    %v3850 = vunpack.c.l.b16 %v3209
    %v3851 = vunpack.c.h.b16 %v3209
    %v3852 = vunpack.c.l.b16 %v3210
    %v3853 = vunpack.c.h.b16 %v3210
    %v3854 = vunpack.c.l.b16 %v3211
    %v3855 = vunpack.c.h.b16 %v3211
    %v3856 = vunpack.c.l.b16 %v3212
    %v3857 = vunpack.c.h.b16 %v3212
    %v3858 = vunpack.c.l.b16 %v3213
    %v3859 = vunpack.c.h.b16 %v3213
    %v3860 = vunpack.c.l.b16 %v3214
    %v3861 = vunpack.c.h.b16 %v3214
    %v3862 = vunpack.c.l.b16 %v3215
    %v3863 = vunpack.c.h.b16 %v3215
    %v3864 = vunpack.c.l.b16 %v3216
    %v3865 = vunpack.c.h.b16 %v3216
    %v3866 = vunpack.c.l.b16 %v3217
    %v3867 = vunpack.c.h.b16 %v3217
    %v3868 = vunpack.c.l.b16 %v3218
    %v3869 = vunpack.c.h.b16 %v3218
    %v3870 = vunpack.c.l.b16 %v3219
    %v3871 = vunpack.c.h.b16 %v3219
    %v3872 = vunpack.c.l.b16 %v3220
    %v3873 = vunpack.c.h.b16 %v3220
    %v3874 = vunpack.c.l.b16 %v3221
    %v3875 = vunpack.c.h.b16 %v3221
    %v3876 = vunpack.c.l.b16 %v3222
    %v3877 = vunpack.c.h.b16 %v3222
    %v3878 = vunpack.c.l.b16 %v3223
    %v3879 = vunpack.c.h.b16 %v3223
    %v3880 = vunpack.c.l.b16 %v3224
    %v3881 = vunpack.c.h.b16 %v3224
    %v3882 = vunpack.c.l.b16 %v3225
    %v3883 = vunpack.c.h.b16 %v3225
    %v3884 = vunpack.c.l.b16 %v3226
    %v3885 = vunpack.c.h.b16 %v3226
    %v3886 = vunpack.c.l.b16 %v3227
    %v3887 = vunpack.c.h.b16 %v3227
    %v3888 = vunpack.c.l.b16 %v3228
    %v3889 = vunpack.c.h.b16 %v3228
    %v3890 = vunpack.c.l.b16 %v3229
    %v3891 = vunpack.c.h.b16 %v3229
    %v3892 = vunpack.c.l.b16 %v3230
    %v3893 = vunpack.c.h.b16 %v3230
    %v3894 = vunpack.c.l.b16 %v3231
    %v3895 = vunpack.c.h.b16 %v3231
    %v3896 = vunpack.c.l.b16 %v3232
    %v3897 = vunpack.c.h.b16 %v3232
    %v3898 = vunpack.c.l.b16 %v3233
    %v3899 = vunpack.c.h.b16 %v3233
    %v3900 = vunpack.c.l.b16 %v3234
    %v3901 = vunpack.c.h.b16 %v3234
    %v3902 = vunpack.c.l.b16 %v3235
    %v3903 = vunpack.c.h.b16 %v3235
    %v3904 = vunpack.c.l.b16 %v3236
    %v3905 = vunpack.c.h.b16 %v3236
    %v3906 = vunpack.c.l.b16 %v3237
    %v3907 = vunpack.c.h.b16 %v3237
    %v3908 = vunpack.c.l.b16 %v3238
    %v3909 = vunpack.c.h.b16 %v3238
    %v3910 = vunpack.c.l.b16 %v3239
    %v3911 = vunpack.c.h.b16 %v3239
    %v3912 = vunpack.c.l.b16 %v3240
    %v3913 = vunpack.c.h.b16 %v3240
    %v3914 = vunpack.c.l.b16 %v3241
    %v3915 = vunpack.c.h.b16 %v3241
    %v3916 = vunpack.c.l.b16 %v3242
    %v3917 = vunpack.c.h.b16 %v3242
    %v3918 = vunpack.c.l.b16 %v3243
    %v3919 = vunpack.c.h.b16 %v3243
    %v3920 = vunpack.c.l.b16 %v3244
    %v3921 = vunpack.c.h.b16 %v3244
    %v3922 = vunpack.c.l.b16 %v3245
    %v3923 = vunpack.c.h.b16 %v3245
    %v3924 = vunpack.c.l.b16 %v3246
    %v3925 = vunpack.c.h.b16 %v3246
    %v3926 = vunpack.c.l.b16 %v3247
    %v3927 = vunpack.c.h.b16 %v3247
    %v3928 = vunpack.c.l.b16 %v3248
    %v3929 = vunpack.c.h.b16 %v3248
    %v3930 = vunpack.c.l.b16 %v3249
    %v3931 = vunpack.c.h.b16 %v3249
    %v3932 = vunpack.c.l.b16 %v3250
    %v3933 = vunpack.c.h.b16 %v3250
    %v3934 = vunpack.c.l.b16 %v3251
    %v3935 = vunpack.c.h.b16 %v3251
    %v3936 = vunpack.c.l.b16 %v3252
    %v3937 = vunpack.c.h.b16 %v3252
    %v3938 = vunpack.c.l.b16 %v3253
    %v3939 = vunpack.c.h.b16 %v3253
    %v3940 = vunpack.c.l.b16 %v3254
    %v3941 = vunpack.c.h.b16 %v3254
    %v3942 = vunpack.c.l.b16 %v3255
    %v3943 = vunpack.c.h.b16 %v3255
    %v3944 = vunpack.c.l.b16 %v3256
    %v3945 = vunpack.c.h.b16 %v3256
    %v3946 = vunpack.c.l.b16 %v3257
    %v3947 = vunpack.c.h.b16 %v3257
    %v3948 = vunpack.c.l.b16 %v3258
    %v3949 = vunpack.c.h.b16 %v3258
    %v3950 = vunpack.c.l.b16 %v3259
    %v3951 = vunpack.c.h.b16 %v3259
    %v3952 = vunpack.c.l.b16 %v3260
    %v3953 = vunpack.c.h.b16 %v3260
    %v3954 = vunpack.c.l.b16 %v3261
    %v3955 = vunpack.c.h.b16 %v3261
    %v3956 = vunpack.c.l.b16 %v3262
    %v3957 = vunpack.c.h.b16 %v3262
    %v3958 = vunpack.c.l.b16 %v3263
    %v3959 = vunpack.c.h.b16 %v3263
    %v3960 = vunpack.c.l.b16 %v3264
    %v3961 = vunpack.c.h.b16 %v3264
    %v3962 = vunpack.c.l.b16 %v3265
    %v3963 = vunpack.c.h.b16 %v3265
    %v3964 = vunpack.c.l.b16 %v3266
    %v3965 = vunpack.c.h.b16 %v3266
    %v3966 = vunpack.c.l.b16 %v3267
    %v3967 = vunpack.c.h.b16 %v3267
    %v3968 = vunpack.c.l.b16 %v3268
    %v3969 = vunpack.c.h.b16 %v3268
    %v3970 = vunpack.c.l.b16 %v3269
    %v3971 = vunpack.c.h.b16 %v3269
    %v3972 = vunpack.c.l.b16 %v3270
    %v3973 = vunpack.c.h.b16 %v3270
    %v3974 = vunpack.c.l.b16 %v3271
    %v3975 = vunpack.c.h.b16 %v3271
    %v3976 = vunpack.c.l.b16 %v3272
    %v3977 = vunpack.c.h.b16 %v3272
    %v3978 = vunpack.c.l.b16 %v3273
    %v3979 = vunpack.c.h.b16 %v3273
    %v3980 = vunpack.c.l.b16 %v3274
    %v3981 = vunpack.c.h.b16 %v3274
    %v3982 = vunpack.c.l.b16 %v3275
    %v3983 = vunpack.c.h.b16 %v3275
    %v3984 = vunpack.c.l.b16 %v3276
    %v3985 = vunpack.c.h.b16 %v3276
    %v3986 = vunpack.c.l.b16 %v3277
    %v3987 = vunpack.c.h.b16 %v3277
    %v3988 = vunpack.c.l.b16 %v3278
    %v3989 = vunpack.c.h.b16 %v3278
    %v3990 = vunpack.c.l.b16 %v3279
    %v3991 = vunpack.c.h.b16 %v3279
    %v3992 = vunpack.c.l.b16 %v3280
    %v3993 = vunpack.c.h.b16 %v3280
    %v3994 = vunpack.c.l.b16 %v3281
    %v3995 = vunpack.c.h.b16 %v3281
    %v3996 = vunpack.c.l.b16 %v3282
    %v3997 = vunpack.c.h.b16 %v3282
    %v3998 = vunpack.c.l.b16 %v3283
    %v3999 = vunpack.c.h.b16 %v3283
    %v4000 = vunpack.c.l.b16 %v3284
    %v4001 = vunpack.c.h.b16 %v3284
    %v4002 = vunpack.c.l.b16 %v3285
    %v4003 = vunpack.c.h.b16 %v3285
    %v4004 = vunpack.c.l.b16 %v3286
    %v4005 = vunpack.c.h.b16 %v3286
    %v4006 = vunpack.c.l.b16 %v3287
    %v4007 = vunpack.c.h.b16 %v3287
    %v4008 = vunpack.c.l.b16 %v3288
    %v4009 = vunpack.c.h.b16 %v3288
    %v4010 = vunpack.c.l.b16 %v3289
    %v4011 = vunpack.c.h.b16 %v3289
    %v4012 = vunpack.c.l.b16 %v3290
    %v4013 = vunpack.c.h.b16 %v3290
    %v4014 = vunpack.c.l.b16 %v3291
    %v4015 = vunpack.c.h.b16 %v3291
    %v4016 = vunpack.c.l.b16 %v3292
    %v4017 = vunpack.c.h.b16 %v3292
    %v4018 = vunpack.c.l.b16 %v3293
    %v4019 = vunpack.c.h.b16 %v3293
    %v4020 = vunpack.c.l.b16 %v3294
    %v4021 = vunpack.c.h.b16 %v3294
    %v4022 = vunpack.c.l.b16 %v3295
    %v4023 = vunpack.c.h.b16 %v3295
    %v4024 = vunpack.c.l.b16 %v3296
    %v4025 = vunpack.c.h.b16 %v3296
    %v4026 = vunpack.c.l.b16 %v3297
    %v4027 = vunpack.c.h.b16 %v3297
    %v4028 = vunpack.c.l.b16 %v3298
    %v4029 = vunpack.c.h.b16 %v3298
    %v4030 = vunpack.c.l.b16 %v3299
    %v4031 = vunpack.c.h.b16 %v3299
    %v4032 = vunpack.c.l.b16 %v3300
    %v4033 = vunpack.c.h.b16 %v3300
    %v4034 = vunpack.c.l.b16 %v3301
    %v4035 = vunpack.c.h.b16 %v3301
    %v4036 = vunpack.c.l.b16 %v3302
    %v4037 = vunpack.c.h.b16 %v3302
    %v4038 = vunpack.c.l.b16 %v3303
    %v4039 = vunpack.c.h.b16 %v3303
    %v4040 = vunpack.c.l.b16 %v3304
    %v4041 = vunpack.c.h.b16 %v3304
    %v4042 = vunpack.c.l.b16 %v3305
    %v4043 = vunpack.c.h.b16 %v3305
    %v4044 = vunpack.c.l.b16 %v3306
    %v4045 = vunpack.c.h.b16 %v3306
    %v4046 = vunpack.c.l.b16 %v3307
    %v4047 = vunpack.c.h.b16 %v3307
    %v4048 = vunpack.c.l.b16 %v3308
    %v4049 = vunpack.c.h.b16 %v3308
    %v4050 = vunpack.c.l.b16 %v3309
    %v4051 = vunpack.c.h.b16 %v3309
    %v4052 = vunpack.c.l.b16 %v3310
    %v4053 = vunpack.c.h.b16 %v3310
    %v4054 = vunpack.c.l.b16 %v3311
    %v4055 = vunpack.c.h.b16 %v3311
    %v4056 = vunpack.c.l.b16 %v3312
    %v4057 = vunpack.c.h.b16 %v3312
    %v4058 = vunpack.c.l.b16 %v3313
    %v4059 = vunpack.c.h.b16 %v3313
    %v4060 = vunpack.c.l.b16 %v3314
    %v4061 = vunpack.c.h.b16 %v3314
    %v4062 = vunpack.c.l.b16 %v3315
    %v4063 = vunpack.c.h.b16 %v3315
    %v4064 = vunpack.c.l.b16 %v3316
    %v4065 = vunpack.c.h.b16 %v3316
    %v4066 = vunpack.c.l.b16 %v3317
    %v4067 = vunpack.c.h.b16 %v3317
    %v4068 = vunpack.c.l.b16 %v3318
    %v4069 = vunpack.c.h.b16 %v3318
    %v4070 = vunpack.c.l.b16 %v3319
    %v4071 = vunpack.c.h.b16 %v3319
    %v4072 = vunpack.c.l.b16 %v3320
    %v4073 = vunpack.c.h.b16 %v3320
    %v4074 = vunpack.c.l.b16 %v3321
    %v4075 = vunpack.c.h.b16 %v3321
    %v4076 = vunpack.c.l.b16 %v3322
    %v4077 = vunpack.c.h.b16 %v3322
    %v4078 = vunpack.c.l.b16 %v3323
    %v4079 = vunpack.c.h.b16 %v3323
    %v4080 = vunpack.c.l.b16 %v3324
    %v4081 = vunpack.c.h.b16 %v3324
    %v4082 = vunpack.c.l.b16 %v3325
    %v4083 = vunpack.c.h.b16 %v3325
    %v4084 = vunpack.c.l.b16 %v3326
    %v4085 = vunpack.c.h.b16 %v3326
    %v4086 = vunpack.c.l.b16 %v3327
    %v4087 = vunpack.c.h.b16 %v3327
    %v4088 = vunpack.c.l.b16 %v3328
    %v4089 = vunpack.c.h.b16 %v3328
    %v4090 = vunpack.c.l.b16 %v3329
    %v4091 = vunpack.c.h.b16 %v3329
    %v4092 = vunpack.c.l.b16 %v3330
    %v4093 = vunpack.c.h.b16 %v3330
    %v4094 = vunpack.c.l.b16 %v3331
    %v4095 = vunpack.c.h.b16 %v3331
    %v4096 = vunpack.c.l.b16 %v3332
    %v4097 = vunpack.c.h.b16 %v3332
    %v4098 = vunpack.c.l.b16 %v3333
    %v4099 = vunpack.c.h.b16 %v3333
    %v4100 = vunpack.c.l.b16 %v3334
    %v4101 = vunpack.c.h.b16 %v3334
    %v4102 = vunpack.c.l.b16 %v3335
    %v4103 = vunpack.c.h.b16 %v3335
    %v4104 = vunpack.c.l.b16 %v3336
    %v4105 = vunpack.c.h.b16 %v3336
    %v4106 = vunpack.c.l.b16 %v3337
    %v4107 = vunpack.c.h.b16 %v3337
    %v4108 = vunpack.c.l.b16 %v3338
    %v4109 = vunpack.c.h.b16 %v3338
    %v4110 = vunpack.c.l.b16 %v3339
    %v4111 = vunpack.c.h.b16 %v3339
    %v4112 = vunpack.c.l.b16 %v3340
    %v4113 = vunpack.c.h.b16 %v3340
    %v4114 = vunpack.c.l.b16 %v3341
    %v4115 = vunpack.c.h.b16 %v3341
    %v4116 = vunpack.c.l.b16 %v3342
    %v4117 = vunpack.c.h.b16 %v3342
    %v4118 = vunpack.c.l.b16 %v3343
    %v4119 = vunpack.c.h.b16 %v3343
    %v4120 = vunpack.c.l.b16 %v3344
    %v4121 = vunpack.c.h.b16 %v3344
    %v4122 = vunpack.c.l.b16 %v3345
    %v4123 = vunpack.c.h.b16 %v3345
    %v4124 = vunpack.c.l.b16 %v3346
    %v4125 = vunpack.c.h.b16 %v3346
    %v4126 = vunpack.c.l.b16 %v3347
    %v4127 = vunpack.c.h.b16 %v3347
    %v4128 = vunpack.c.l.b16 %v3348
    %v4129 = vunpack.c.h.b16 %v3348
    %v4130 = vunpack.c.l.b16 %v3349
    %v4131 = vunpack.c.h.b16 %v3349
    %v4132 = vunpack.c.l.b16 %v3350
    %v4133 = vunpack.c.h.b16 %v3350
    %v4134 = vunpack.c.l.b16 %v3351
    %v4135 = vunpack.c.h.b16 %v3351
    %v4136 = vunpack.c.l.b16 %v3352
    %v4137 = vunpack.c.h.b16 %v3352
    %v4138 = vunpack.c.l.b16 %v3353
    %v4139 = vunpack.c.h.b16 %v3353
    %v4140 = vpack.c.b16 %v3636, %v3628
    %v4141 = vpack.c.b16 %v3637, %v3629
    %v4142 = vpack.c.b16 %v3638, %v3630
    %v4143 = vpack.c.b16 %v3639, %v3631
    %v4144 = vpack.c.b16 %v3640, %v3632
    %v4145 = vpack.c.b16 %v3641, %v3633
    %v4146 = vpack.c.b16 %v3642, %v3634
    %v4147 = vpack.c.b16 %v3643, %v3635
    %v4148 = vpack.c.b16 %v3652, %v3644
    %v4149 = vpack.c.b16 %v3653, %v3645
    %v4150 = vpack.c.b16 %v3654, %v3646
    %v4151 = vpack.c.b16 %v3655, %v3647
    %v4152 = vpack.c.b16 %v3656, %v3648
    %v4153 = vpack.c.b16 %v3657, %v3649
    %v4154 = vpack.c.b16 %v3658, %v3650
    %v4155 = vpack.c.b16 %v3659, %v3651
    %v4156 = vpack.c.b16 %v3668, %v3660
    %v4157 = vpack.c.b16 %v3669, %v3661
    %v4158 = vpack.c.b16 %v3670, %v3662
    %v4159 = vpack.c.b16 %v3671, %v3663
    %v4160 = vpack.c.b16 %v3672, %v3664
    %v4161 = vpack.c.b16 %v3673, %v3665
    %v4162 = vpack.c.b16 %v3674, %v3666
    %v4163 = vpack.c.b16 %v3675, %v3667
    %v4164 = vpack.c.b16 %v3684, %v3676
    %v4165 = vpack.c.b16 %v3685, %v3677
    %v4166 = vpack.c.b16 %v3686, %v3678
    %v4167 = vpack.c.b16 %v3687, %v3679
    %v4168 = vpack.c.b16 %v3688, %v3680
    %v4169 = vpack.c.b16 %v3689, %v3681
    %v4170 = vpack.c.b16 %v3690, %v3682
    %v4171 = vpack.c.b16 %v3691, %v3683
    %v4172 = vpack.c.b16 %v3700, %v3692
    %v4173 = vpack.c.b16 %v3701, %v3693
    %v4174 = vpack.c.b16 %v3702, %v3694
    %v4175 = vpack.c.b16 %v3703, %v3695
    %v4176 = vpack.c.b16 %v3704, %v3696
    %v4177 = vpack.c.b16 %v3705, %v3697
    %v4178 = vpack.c.b16 %v3706, %v3698
    %v4179 = vpack.c.b16 %v3707, %v3699
    %v4180 = vpack.c.b16 %v3716, %v3708
    %v4181 = vpack.c.b16 %v3717, %v3709
    %v4182 = vpack.c.b16 %v3718, %v3710
    %v4183 = vpack.c.b16 %v3719, %v3711
    %v4184 = vpack.c.b16 %v3720, %v3712
    %v4185 = vpack.c.b16 %v3721, %v3713
    %v4186 = vpack.c.b16 %v3722, %v3714
    %v4187 = vpack.c.b16 %v3723, %v3715
    %v4188 = vpack.c.b16 %v3732, %v3724
    %v4189 = vpack.c.b16 %v3733, %v3725
    %v4190 = vpack.c.b16 %v3734, %v3726
    %v4191 = vpack.c.b16 %v3735, %v3727
    %v4192 = vpack.c.b16 %v3736, %v3728
    %v4193 = vpack.c.b16 %v3737, %v3729
    %v4194 = vpack.c.b16 %v3738, %v3730
    %v4195 = vpack.c.b16 %v3739, %v3731
    %v4196 = vpack.c.b16 %v3748, %v3740
    %v4197 = vpack.c.b16 %v3749, %v3741
    %v4198 = vpack.c.b16 %v3750, %v3742
    %v4199 = vpack.c.b16 %v3751, %v3743
    %v4200 = vpack.c.b16 %v3752, %v3744
    %v4201 = vpack.c.b16 %v3753, %v3745
    %v4202 = vpack.c.b16 %v3754, %v3746
    %v4203 = vpack.c.b16 %v3755, %v3747
    %v4204 = vpack.c.b16 %v3764, %v3756
    %v4205 = vpack.c.b16 %v3765, %v3757
    %v4206 = vpack.c.b16 %v3766, %v3758
    %v4207 = vpack.c.b16 %v3767, %v3759
    %v4208 = vpack.c.b16 %v3768, %v3760
    %v4209 = vpack.c.b16 %v3769, %v3761
    %v4210 = vpack.c.b16 %v3770, %v3762
    %v4211 = vpack.c.b16 %v3771, %v3763
    %v4212 = vpack.c.b16 %v3780, %v3772
    %v4213 = vpack.c.b16 %v3781, %v3773
    %v4214 = vpack.c.b16 %v3782, %v3774
    %v4215 = vpack.c.b16 %v3783, %v3775
    %v4216 = vpack.c.b16 %v3784, %v3776
    %v4217 = vpack.c.b16 %v3785, %v3777
    %v4218 = vpack.c.b16 %v3786, %v3778
    %v4219 = vpack.c.b16 %v3787, %v3779
    %v4220 = vpack.c.b16 %v3796, %v3788
    %v4221 = vpack.c.b16 %v3797, %v3789
    %v4222 = vpack.c.b16 %v3798, %v3790
    %v4223 = vpack.c.b16 %v3799, %v3791
    %v4224 = vpack.c.b16 %v3800, %v3792
    %v4225 = vpack.c.b16 %v3801, %v3793
    %v4226 = vpack.c.b16 %v3802, %v3794
    %v4227 = vpack.c.b16 %v3803, %v3795
    %v4228 = vpack.c.b16 %v3812, %v3804
    %v4229 = vpack.c.b16 %v3813, %v3805
    %v4230 = vpack.c.b16 %v3814, %v3806
    %v4231 = vpack.c.b16 %v3815, %v3807
    %v4232 = vpack.c.b16 %v3816, %v3808
    %v4233 = vpack.c.b16 %v3817, %v3809
    %v4234 = vpack.c.b16 %v3818, %v3810
    %v4235 = vpack.c.b16 %v3819, %v3811
    %v4236 = vpack.c.b16 %v3828, %v3820
    %v4237 = vpack.c.b16 %v3829, %v3821
    %v4238 = vpack.c.b16 %v3830, %v3822
    %v4239 = vpack.c.b16 %v3831, %v3823
    %v4240 = vpack.c.b16 %v3832, %v3824
    %v4241 = vpack.c.b16 %v3833, %v3825
    %v4242 = vpack.c.b16 %v3834, %v3826
    %v4243 = vpack.c.b16 %v3835, %v3827
    %v4244 = vpack.c.b16 %v3844, %v3836
    %v4245 = vpack.c.b16 %v3845, %v3837
    %v4246 = vpack.c.b16 %v3846, %v3838
    %v4247 = vpack.c.b16 %v3847, %v3839
    %v4248 = vpack.c.b16 %v3848, %v3840
    %v4249 = vpack.c.b16 %v3849, %v3841
    %v4250 = vpack.c.b16 %v3850, %v3842
    %v4251 = vpack.c.b16 %v3851, %v3843
    %v4252 = vpack.c.b16 %v3860, %v3852
    %v4253 = vpack.c.b16 %v3861, %v3853
    %v4254 = vpack.c.b16 %v3862, %v3854
    %v4255 = vpack.c.b16 %v3863, %v3855
    %v4256 = vpack.c.b16 %v3864, %v3856
    %v4257 = vpack.c.b16 %v3865, %v3857
    %v4258 = vpack.c.b16 %v3866, %v3858
    %v4259 = vpack.c.b16 %v3867, %v3859
    %v4260 = vpack.c.b16 %v3876, %v3868
    %v4261 = vpack.c.b16 %v3877, %v3869
    %v4262 = vpack.c.b16 %v3878, %v3870
    %v4263 = vpack.c.b16 %v3879, %v3871
    %v4264 = vpack.c.b16 %v3880, %v3872
    %v4265 = vpack.c.b16 %v3881, %v3873
    %v4266 = vpack.c.b16 %v3882, %v3874
    %v4267 = vpack.c.b16 %v3883, %v3875
    %v4268 = vpack.c.b16 %v3892, %v3884
    %v4269 = vpack.c.b16 %v3893, %v3885
    %v4270 = vpack.c.b16 %v3894, %v3886
    %v4271 = vpack.c.b16 %v3895, %v3887
    %v4272 = vpack.c.b16 %v3896, %v3888
    %v4273 = vpack.c.b16 %v3897, %v3889
    %v4274 = vpack.c.b16 %v3898, %v3890
    %v4275 = vpack.c.b16 %v3899, %v3891
    %v4276 = vpack.c.b16 %v3908, %v3900
    %v4277 = vpack.c.b16 %v3909, %v3901
    %v4278 = vpack.c.b16 %v3910, %v3902
    %v4279 = vpack.c.b16 %v3911, %v3903
    %v4280 = vpack.c.b16 %v3912, %v3904
    %v4281 = vpack.c.b16 %v3913, %v3905
    %v4282 = vpack.c.b16 %v3914, %v3906
    %v4283 = vpack.c.b16 %v3915, %v3907
    %v4284 = vpack.c.b16 %v3924, %v3916
    %v4285 = vpack.c.b16 %v3925, %v3917
    %v4286 = vpack.c.b16 %v3926, %v3918
    %v4287 = vpack.c.b16 %v3927, %v3919
    %v4288 = vpack.c.b16 %v3928, %v3920
    %v4289 = vpack.c.b16 %v3929, %v3921
    %v4290 = vpack.c.b16 %v3930, %v3922
    %v4291 = vpack.c.b16 %v3931, %v3923
    %v4292 = vpack.c.b16 %v3940, %v3932
    %v4293 = vpack.c.b16 %v3941, %v3933
    %v4294 = vpack.c.b16 %v3942, %v3934
    %v4295 = vpack.c.b16 %v3943, %v3935
    %v4296 = vpack.c.b16 %v3944, %v3936
    %v4297 = vpack.c.b16 %v3945, %v3937
    %v4298 = vpack.c.b16 %v3946, %v3938
    %v4299 = vpack.c.b16 %v3947, %v3939
    %v4300 = vpack.c.b16 %v3956, %v3948
    %v4301 = vpack.c.b16 %v3957, %v3949
    %v4302 = vpack.c.b16 %v3958, %v3950
    %v4303 = vpack.c.b16 %v3959, %v3951
    %v4304 = vpack.c.b16 %v3960, %v3952
    %v4305 = vpack.c.b16 %v3961, %v3953
    %v4306 = vpack.c.b16 %v3962, %v3954
    %v4307 = vpack.c.b16 %v3963, %v3955
    %v4308 = vpack.c.b16 %v3972, %v3964
    %v4309 = vpack.c.b16 %v3973, %v3965
    %v4310 = vpack.c.b16 %v3974, %v3966
    %v4311 = vpack.c.b16 %v3975, %v3967
    %v4312 = vpack.c.b16 %v3976, %v3968
    %v4313 = vpack.c.b16 %v3977, %v3969
    %v4314 = vpack.c.b16 %v3978, %v3970
    %v4315 = vpack.c.b16 %v3979, %v3971
    %v4316 = vpack.c.b16 %v3988, %v3980
    %v4317 = vpack.c.b16 %v3989, %v3981
    %v4318 = vpack.c.b16 %v3990, %v3982
    %v4319 = vpack.c.b16 %v3991, %v3983
    %v4320 = vpack.c.b16 %v3992, %v3984
    %v4321 = vpack.c.b16 %v3993, %v3985
    %v4322 = vpack.c.b16 %v3994, %v3986
    %v4323 = vpack.c.b16 %v3995, %v3987
    %v4324 = vpack.c.b16 %v4004, %v3996
    %v4325 = vpack.c.b16 %v4005, %v3997
    %v4326 = vpack.c.b16 %v4006, %v3998
    %v4327 = vpack.c.b16 %v4007, %v3999
    %v4328 = vpack.c.b16 %v4008, %v4000
    %v4329 = vpack.c.b16 %v4009, %v4001
    %v4330 = vpack.c.b16 %v4010, %v4002
    %v4331 = vpack.c.b16 %v4011, %v4003
    %v4332 = vpack.c.b16 %v4020, %v4012
    %v4333 = vpack.c.b16 %v4021, %v4013
    %v4334 = vpack.c.b16 %v4022, %v4014
    %v4335 = vpack.c.b16 %v4023, %v4015
    %v4336 = vpack.c.b16 %v4024, %v4016
    %v4337 = vpack.c.b16 %v4025, %v4017
    %v4338 = vpack.c.b16 %v4026, %v4018
    %v4339 = vpack.c.b16 %v4027, %v4019
    %v4340 = vpack.c.b16 %v4036, %v4028
    %v4341 = vpack.c.b16 %v4037, %v4029
    %v4342 = vpack.c.b16 %v4038, %v4030
    %v4343 = vpack.c.b16 %v4039, %v4031
    %v4344 = vpack.c.b16 %v4040, %v4032
    %v4345 = vpack.c.b16 %v4041, %v4033
    %v4346 = vpack.c.b16 %v4042, %v4034
    %v4347 = vpack.c.b16 %v4043, %v4035
    %v4348 = vpack.c.b16 %v4052, %v4044
    %v4349 = vpack.c.b16 %v4053, %v4045
    %v4350 = vpack.c.b16 %v4054, %v4046
    %v4351 = vpack.c.b16 %v4055, %v4047
    %v4352 = vpack.c.b16 %v4056, %v4048
    %v4353 = vpack.c.b16 %v4057, %v4049
    %v4354 = vpack.c.b16 %v4058, %v4050
    %v4355 = vpack.c.b16 %v4059, %v4051
    %v4356 = vpack.c.b16 %v4068, %v4060
    %v4357 = vpack.c.b16 %v4069, %v4061
    %v4358 = vpack.c.b16 %v4070, %v4062
    %v4359 = vpack.c.b16 %v4071, %v4063
    %v4360 = vpack.c.b16 %v4072, %v4064
    %v4361 = vpack.c.b16 %v4073, %v4065
    %v4362 = vpack.c.b16 %v4074, %v4066
    %v4363 = vpack.c.b16 %v4075, %v4067
    %v4364 = vpack.c.b16 %v4084, %v4076
    %v4365 = vpack.c.b16 %v4085, %v4077
    %v4366 = vpack.c.b16 %v4086, %v4078
    %v4367 = vpack.c.b16 %v4087, %v4079
    %v4368 = vpack.c.b16 %v4088, %v4080
    %v4369 = vpack.c.b16 %v4089, %v4081
    %v4370 = vpack.c.b16 %v4090, %v4082
    %v4371 = vpack.c.b16 %v4091, %v4083
    %v4372 = vpack.c.b16 %v4100, %v4092
    %v4373 = vpack.c.b16 %v4101, %v4093
    %v4374 = vpack.c.b16 %v4102, %v4094
    %v4375 = vpack.c.b16 %v4103, %v4095
    %v4376 = vpack.c.b16 %v4104, %v4096
    %v4377 = vpack.c.b16 %v4105, %v4097
    %v4378 = vpack.c.b16 %v4106, %v4098
    %v4379 = vpack.c.b16 %v4107, %v4099
    %v4380 = vpack.c.b16 %v4116, %v4108
    %v4381 = vpack.c.b16 %v4117, %v4109
    %v4382 = vpack.c.b16 %v4118, %v4110
    %v4383 = vpack.c.b16 %v4119, %v4111
    %v4384 = vpack.c.b16 %v4120, %v4112
    %v4385 = vpack.c.b16 %v4121, %v4113
    %v4386 = vpack.c.b16 %v4122, %v4114
    %v4387 = vpack.c.b16 %v4123, %v4115
    %v4388 = vpack.c.b16 %v4132, %v4124
    %v4389 = vpack.c.b16 %v4133, %v4125
    %v4390 = vpack.c.b16 %v4134, %v4126
    %v4391 = vpack.c.b16 %v4135, %v4127
    %v4392 = vpack.c.b16 %v4136, %v4128
    %v4393 = vpack.c.b16 %v4137, %v4129
    %v4394 = vpack.c.b16 %v4138, %v4130
    %v4395 = vpack.c.b16 %v4139, %v4131
    %4652 = vmatpush.bf16.msra.mxu0 %v4196
    %4653 = vmatpush.bf16.msra.mxu0 %v4188
    %4654 = vmatpush.bf16.msra.mxu0 %v4180
    %4655 = vmatpush.bf16.msra.mxu0 %v4172
    %4656 = vmatpush.bf16.msra.mxu0 %v4164
    %4657 = vmatpush.bf16.msra.mxu0 %v4156
    %4658 = vmatpush.bf16.msra.mxu0 %v4148
    %4659 = vmatpush.bf16.msra.mxu0 %v4140
    %4660 = vmatmul.bf16.gmra.mxu0 %v3094
    %v4661 = vpop.f32.mrf.mxu0
    %v4662 = vadd.f32 %v3356, %v4661
    %v4663 = vpop.f32.mrf.mxu0
    %4664 = vdwg.mxu0
    %4665 = vmatpush.bf16.msra.mxu0 %v4260
    %4666 = vmatpush.bf16.msra.mxu0 %v4252
    %4667 = vmatpush.bf16.msra.mxu0 %v4244
    %4668 = vmatpush.bf16.msra.mxu0 %v4236
    %4669 = vmatpush.bf16.msra.mxu0 %v4228
    %4670 = vmatpush.bf16.msra.mxu0 %v4220
    %4671 = vmatpush.bf16.msra.mxu0 %v4212
    %4672 = vmatpush.bf16.msra.mxu0 %v4204
    %4673 = vmatmul.bf16.gmra.mxu0 %v3095
    %v4674 = vpop.f32.mrf.mxu0
    %v4675 = vadd.f32 %v4662, %v4674
    %v4676 = vpop.f32.mrf.mxu0
    %4677 = vdwg.mxu0
    %4678 = vmatpush.bf16.msra.mxu0 %v4324
    %4679 = vmatpush.bf16.msra.mxu0 %v4316
    %4680 = vmatpush.bf16.msra.mxu0 %v4308
    %4681 = vmatpush.bf16.msra.mxu0 %v4300
    %4682 = vmatpush.bf16.msra.mxu0 %v4292
    %4683 = vmatpush.bf16.msra.mxu0 %v4284
    %4684 = vmatpush.bf16.msra.mxu0 %v4276
    %4685 = vmatpush.bf16.msra.mxu0 %v4268
    %4686 = vmatmul.bf16.gmra.mxu0 %v3096
    %v4687 = vpop.f32.mrf.mxu0
    %v4688 = vadd.f32 %v4675, %v4687
    %v4689 = vpop.f32.mrf.mxu0
    %4690 = vdwg.mxu0
    %4691 = vmatpush.bf16.msra.mxu0 %v4388
    %4692 = vmatpush.bf16.msra.mxu0 %v4380
    %4693 = vmatpush.bf16.msra.mxu0 %v4372
    %4694 = vmatpush.bf16.msra.mxu0 %v4364
    %4695 = vmatpush.bf16.msra.mxu0 %v4356
    %4696 = vmatpush.bf16.msra.mxu0 %v4348
    %4697 = vmatpush.bf16.msra.mxu0 %v4340
    %4698 = vmatpush.bf16.msra.mxu0 %v4332
    %4699 = vmatmul.bf16.gmra.mxu0 %v3097
    %v4700 = vpop.f32.mrf.mxu0
    %v4701 = vadd.f32 %v4688, %v4700
    %v4702 = vpop.f32.mrf.mxu0
    %4703 = vdwg.mxu0
    %4704 = vmatpush.bf16.msra.mxu0 %v4197
    %4705 = vmatpush.bf16.msra.mxu0 %v4189
    %4706 = vmatpush.bf16.msra.mxu0 %v4181
    %4707 = vmatpush.bf16.msra.mxu0 %v4173
    %4708 = vmatpush.bf16.msra.mxu0 %v4165
    %4709 = vmatpush.bf16.msra.mxu0 %v4157
    %4710 = vmatpush.bf16.msra.mxu0 %v4149
    %4711 = vmatpush.bf16.msra.mxu0 %v4141
    %4712 = vmatmul.bf16.gmra.mxu0 %v3094
    %v4713 = vpop.f32.mrf.mxu0
    %v4714 = vadd.f32 %v3357, %v4713
    %v4715 = vpop.f32.mrf.mxu0
    %4716 = vdwg.mxu0
    %4717 = vmatpush.bf16.msra.mxu0 %v4261
    %4718 = vmatpush.bf16.msra.mxu0 %v4253
    %4719 = vmatpush.bf16.msra.mxu0 %v4245
    %4720 = vmatpush.bf16.msra.mxu0 %v4237
    %4721 = vmatpush.bf16.msra.mxu0 %v4229
    %4722 = vmatpush.bf16.msra.mxu0 %v4221
    %4723 = vmatpush.bf16.msra.mxu0 %v4213
    %4724 = vmatpush.bf16.msra.mxu0 %v4205
    %4725 = vmatmul.bf16.gmra.mxu0 %v3095
    %v4726 = vpop.f32.mrf.mxu0
    %v4727 = vadd.f32 %v4714, %v4726
    %v4728 = vpop.f32.mrf.mxu0
    %4729 = vdwg.mxu0
    %4730 = vmatpush.bf16.msra.mxu0 %v4325
    %4731 = vmatpush.bf16.msra.mxu0 %v4317
    %4732 = vmatpush.bf16.msra.mxu0 %v4309
    %4733 = vmatpush.bf16.msra.mxu0 %v4301
    %4734 = vmatpush.bf16.msra.mxu0 %v4293
    %4735 = vmatpush.bf16.msra.mxu0 %v4285
    %4736 = vmatpush.bf16.msra.mxu0 %v4277
    %4737 = vmatpush.bf16.msra.mxu0 %v4269
    %4738 = vmatmul.bf16.gmra.mxu0 %v3096
    %v4739 = vpop.f32.mrf.mxu0
    %v4740 = vadd.f32 %v4727, %v4739
    %v4741 = vpop.f32.mrf.mxu0
    %4742 = vdwg.mxu0
    %4743 = vmatpush.bf16.msra.mxu0 %v4389
    %4744 = vmatpush.bf16.msra.mxu0 %v4381
    %4745 = vmatpush.bf16.msra.mxu0 %v4373
    %4746 = vmatpush.bf16.msra.mxu0 %v4365
    %4747 = vmatpush.bf16.msra.mxu0 %v4357
    %4748 = vmatpush.bf16.msra.mxu0 %v4349
    %4749 = vmatpush.bf16.msra.mxu0 %v4341
    %4750 = vmatpush.bf16.msra.mxu0 %v4333
    %4751 = vmatmul.bf16.gmra.mxu0 %v3097
    %v4752 = vpop.f32.mrf.mxu0
    %v4753 = vadd.f32 %v4740, %v4752
    %v4754 = vpop.f32.mrf.mxu0
    %4755 = vdwg.mxu0
    %4756 = vmatpush.bf16.msra.mxu0 %v4198
    %4757 = vmatpush.bf16.msra.mxu0 %v4190
    %4758 = vmatpush.bf16.msra.mxu0 %v4182
    %4759 = vmatpush.bf16.msra.mxu0 %v4174
    %4760 = vmatpush.bf16.msra.mxu0 %v4166
    %4761 = vmatpush.bf16.msra.mxu0 %v4158
    %4762 = vmatpush.bf16.msra.mxu0 %v4150
    %4763 = vmatpush.bf16.msra.mxu0 %v4142
    %4764 = vmatmul.bf16.gmra.mxu0 %v3094
    %v4765 = vpop.f32.mrf.mxu0
    %v4766 = vadd.f32 %v3358, %v4765
    %v4767 = vpop.f32.mrf.mxu0
    %4768 = vdwg.mxu0
    %4769 = vmatpush.bf16.msra.mxu0 %v4262
    %4770 = vmatpush.bf16.msra.mxu0 %v4254
    %4771 = vmatpush.bf16.msra.mxu0 %v4246
    %4772 = vmatpush.bf16.msra.mxu0 %v4238
    %4773 = vmatpush.bf16.msra.mxu0 %v4230
    %4774 = vmatpush.bf16.msra.mxu0 %v4222
    %4775 = vmatpush.bf16.msra.mxu0 %v4214
    %4776 = vmatpush.bf16.msra.mxu0 %v4206
    %4777 = vmatmul.bf16.gmra.mxu0 %v3095
    %v4778 = vpop.f32.mrf.mxu0
    %v4779 = vadd.f32 %v4766, %v4778
    %v4780 = vpop.f32.mrf.mxu0
    %4781 = vdwg.mxu0
    %4782 = vmatpush.bf16.msra.mxu0 %v4326
    %4783 = vmatpush.bf16.msra.mxu0 %v4318
    %4784 = vmatpush.bf16.msra.mxu0 %v4310
    %4785 = vmatpush.bf16.msra.mxu0 %v4302
    %4786 = vmatpush.bf16.msra.mxu0 %v4294
    %4787 = vmatpush.bf16.msra.mxu0 %v4286
    %4788 = vmatpush.bf16.msra.mxu0 %v4278
    %4789 = vmatpush.bf16.msra.mxu0 %v4270
    %4790 = vmatmul.bf16.gmra.mxu0 %v3096
    %v4791 = vpop.f32.mrf.mxu0
    %v4792 = vadd.f32 %v4779, %v4791
    %v4793 = vpop.f32.mrf.mxu0
    %4794 = vdwg.mxu0
    %4795 = vmatpush.bf16.msra.mxu0 %v4390
    %4796 = vmatpush.bf16.msra.mxu0 %v4382
    %4797 = vmatpush.bf16.msra.mxu0 %v4374
    %4798 = vmatpush.bf16.msra.mxu0 %v4366
    %4799 = vmatpush.bf16.msra.mxu0 %v4358
    %4800 = vmatpush.bf16.msra.mxu0 %v4350
    %4801 = vmatpush.bf16.msra.mxu0 %v4342
    %4802 = vmatpush.bf16.msra.mxu0 %v4334
    %4803 = vmatmul.bf16.gmra.mxu0 %v3097
    %v4804 = vpop.f32.mrf.mxu0
    %v4805 = vadd.f32 %v4792, %v4804
    %v4806 = vpop.f32.mrf.mxu0
    %4807 = vdwg.mxu0
    %4808 = vmatpush.bf16.msra.mxu0 %v4199
    %4809 = vmatpush.bf16.msra.mxu0 %v4191
    %4810 = vmatpush.bf16.msra.mxu0 %v4183
    %4811 = vmatpush.bf16.msra.mxu0 %v4175
    %4812 = vmatpush.bf16.msra.mxu0 %v4167
    %4813 = vmatpush.bf16.msra.mxu0 %v4159
    %4814 = vmatpush.bf16.msra.mxu0 %v4151
    %4815 = vmatpush.bf16.msra.mxu0 %v4143
    %4816 = vmatmul.bf16.gmra.mxu0 %v3094
    %v4817 = vpop.f32.mrf.mxu0
    %v4818 = vadd.f32 %v3359, %v4817
    %v4819 = vpop.f32.mrf.mxu0
    %4820 = vdwg.mxu0
    %4821 = vmatpush.bf16.msra.mxu0 %v4263
    %4822 = vmatpush.bf16.msra.mxu0 %v4255
    %4823 = vmatpush.bf16.msra.mxu0 %v4247
    %4824 = vmatpush.bf16.msra.mxu0 %v4239
    %4825 = vmatpush.bf16.msra.mxu0 %v4231
    %4826 = vmatpush.bf16.msra.mxu0 %v4223
    %4827 = vmatpush.bf16.msra.mxu0 %v4215
    %4828 = vmatpush.bf16.msra.mxu0 %v4207
    %4829 = vmatmul.bf16.gmra.mxu0 %v3095
    %v4830 = vpop.f32.mrf.mxu0
    %v4831 = vadd.f32 %v4818, %v4830
    %v4832 = vpop.f32.mrf.mxu0
    %4833 = vdwg.mxu0
    %4834 = vmatpush.bf16.msra.mxu0 %v4327
    %4835 = vmatpush.bf16.msra.mxu0 %v4319
    %4836 = vmatpush.bf16.msra.mxu0 %v4311
    %4837 = vmatpush.bf16.msra.mxu0 %v4303
    %4838 = vmatpush.bf16.msra.mxu0 %v4295
    %4839 = vmatpush.bf16.msra.mxu0 %v4287
    %4840 = vmatpush.bf16.msra.mxu0 %v4279
    %4841 = vmatpush.bf16.msra.mxu0 %v4271
    %4842 = vmatmul.bf16.gmra.mxu0 %v3096
    %v4843 = vpop.f32.mrf.mxu0
    %v4844 = vadd.f32 %v4831, %v4843
    %v4845 = vpop.f32.mrf.mxu0
    %4846 = vdwg.mxu0
    %4847 = vmatpush.bf16.msra.mxu0 %v4391
    %4848 = vmatpush.bf16.msra.mxu0 %v4383
    %4849 = vmatpush.bf16.msra.mxu0 %v4375
    %4850 = vmatpush.bf16.msra.mxu0 %v4367
    %4851 = vmatpush.bf16.msra.mxu0 %v4359
    %4852 = vmatpush.bf16.msra.mxu0 %v4351
    %4853 = vmatpush.bf16.msra.mxu0 %v4343
    %4854 = vmatpush.bf16.msra.mxu0 %v4335
    %4855 = vmatmul.bf16.gmra.mxu0 %v3097
    %v4856 = vpop.f32.mrf.mxu0
    %v4857 = vadd.f32 %v4844, %v4856
    %v4858 = vpop.f32.mrf.mxu0
    %4859 = vdwg.mxu0
    %4860 = vmatpush.bf16.msra.mxu0 %v4200
    %4861 = vmatpush.bf16.msra.mxu0 %v4192
    %4862 = vmatpush.bf16.msra.mxu0 %v4184
    %4863 = vmatpush.bf16.msra.mxu0 %v4176
    %4864 = vmatpush.bf16.msra.mxu0 %v4168
    %4865 = vmatpush.bf16.msra.mxu0 %v4160
    %4866 = vmatpush.bf16.msra.mxu0 %v4152
    %4867 = vmatpush.bf16.msra.mxu0 %v4144
    %4868 = vmatmul.bf16.gmra.mxu0 %v3094
    %v4869 = vpop.f32.mrf.mxu0
    %v4870 = vadd.f32 %v3360, %v4869
    %v4871 = vpop.f32.mrf.mxu0
    %4872 = vdwg.mxu0
    %4873 = vmatpush.bf16.msra.mxu0 %v4264
    %4874 = vmatpush.bf16.msra.mxu0 %v4256
    %4875 = vmatpush.bf16.msra.mxu0 %v4248
    %4876 = vmatpush.bf16.msra.mxu0 %v4240
    %4877 = vmatpush.bf16.msra.mxu0 %v4232
    %4878 = vmatpush.bf16.msra.mxu0 %v4224
    %4879 = vmatpush.bf16.msra.mxu0 %v4216
    %4880 = vmatpush.bf16.msra.mxu0 %v4208
    %4881 = vmatmul.bf16.gmra.mxu0 %v3095
    %v4882 = vpop.f32.mrf.mxu0
    %v4883 = vadd.f32 %v4870, %v4882
    %v4884 = vpop.f32.mrf.mxu0
    %4885 = vdwg.mxu0
    %4886 = vmatpush.bf16.msra.mxu0 %v4328
    %4887 = vmatpush.bf16.msra.mxu0 %v4320
    %4888 = vmatpush.bf16.msra.mxu0 %v4312
    %4889 = vmatpush.bf16.msra.mxu0 %v4304
    %4890 = vmatpush.bf16.msra.mxu0 %v4296
    %4891 = vmatpush.bf16.msra.mxu0 %v4288
    %4892 = vmatpush.bf16.msra.mxu0 %v4280
    %4893 = vmatpush.bf16.msra.mxu0 %v4272
    %4894 = vmatmul.bf16.gmra.mxu0 %v3096
    %v4895 = vpop.f32.mrf.mxu0
    %v4896 = vadd.f32 %v4883, %v4895
    %v4897 = vpop.f32.mrf.mxu0
    %4898 = vdwg.mxu0
    %4899 = vmatpush.bf16.msra.mxu0 %v4392
    %4900 = vmatpush.bf16.msra.mxu0 %v4384
    %4901 = vmatpush.bf16.msra.mxu0 %v4376
    %4902 = vmatpush.bf16.msra.mxu0 %v4368
    %4903 = vmatpush.bf16.msra.mxu0 %v4360
    %4904 = vmatpush.bf16.msra.mxu0 %v4352
    %4905 = vmatpush.bf16.msra.mxu0 %v4344
    %4906 = vmatpush.bf16.msra.mxu0 %v4336
    %4907 = vmatmul.bf16.gmra.mxu0 %v3097
    %v4908 = vpop.f32.mrf.mxu0
    %v4909 = vadd.f32 %v4896, %v4908
    %v4910 = vpop.f32.mrf.mxu0
    %4911 = vdwg.mxu0
    %4912 = vmatpush.bf16.msra.mxu0 %v4201
    %4913 = vmatpush.bf16.msra.mxu0 %v4193
    %4914 = vmatpush.bf16.msra.mxu0 %v4185
    %4915 = vmatpush.bf16.msra.mxu0 %v4177
    %4916 = vmatpush.bf16.msra.mxu0 %v4169
    %4917 = vmatpush.bf16.msra.mxu0 %v4161
    %4918 = vmatpush.bf16.msra.mxu0 %v4153
    %4919 = vmatpush.bf16.msra.mxu0 %v4145
    %4920 = vmatmul.bf16.gmra.mxu0 %v3094
    %v4921 = vpop.f32.mrf.mxu0
    %v4922 = vadd.f32 %v3361, %v4921
    %v4923 = vpop.f32.mrf.mxu0
    %4924 = vdwg.mxu0
    %4925 = vmatpush.bf16.msra.mxu0 %v4265
    %4926 = vmatpush.bf16.msra.mxu0 %v4257
    %4927 = vmatpush.bf16.msra.mxu0 %v4249
    %4928 = vmatpush.bf16.msra.mxu0 %v4241
    %4929 = vmatpush.bf16.msra.mxu0 %v4233
    %4930 = vmatpush.bf16.msra.mxu0 %v4225
    %4931 = vmatpush.bf16.msra.mxu0 %v4217
    %4932 = vmatpush.bf16.msra.mxu0 %v4209
    %4933 = vmatmul.bf16.gmra.mxu0 %v3095
    %v4934 = vpop.f32.mrf.mxu0
    %v4935 = vadd.f32 %v4922, %v4934
    %v4936 = vpop.f32.mrf.mxu0
    %4937 = vdwg.mxu0
    %4938 = vmatpush.bf16.msra.mxu0 %v4329
    %4939 = vmatpush.bf16.msra.mxu0 %v4321
    %4940 = vmatpush.bf16.msra.mxu0 %v4313
    %4941 = vmatpush.bf16.msra.mxu0 %v4305
    %4942 = vmatpush.bf16.msra.mxu0 %v4297
    %4943 = vmatpush.bf16.msra.mxu0 %v4289
    %4944 = vmatpush.bf16.msra.mxu0 %v4281
    %4945 = vmatpush.bf16.msra.mxu0 %v4273
    %4946 = vmatmul.bf16.gmra.mxu0 %v3096
    %v4947 = vpop.f32.mrf.mxu0
    %v4948 = vadd.f32 %v4935, %v4947
    %v4949 = vpop.f32.mrf.mxu0
    %4950 = vdwg.mxu0
    %4951 = vmatpush.bf16.msra.mxu0 %v4393
    %4952 = vmatpush.bf16.msra.mxu0 %v4385
    %4953 = vmatpush.bf16.msra.mxu0 %v4377
    %4954 = vmatpush.bf16.msra.mxu0 %v4369
    %4955 = vmatpush.bf16.msra.mxu0 %v4361
    %4956 = vmatpush.bf16.msra.mxu0 %v4353
    %4957 = vmatpush.bf16.msra.mxu0 %v4345
    %4958 = vmatpush.bf16.msra.mxu0 %v4337
    %4959 = vmatmul.bf16.gmra.mxu0 %v3097
    %v4960 = vpop.f32.mrf.mxu0
    %v4961 = vadd.f32 %v4948, %v4960
    %v4962 = vpop.f32.mrf.mxu0
    %4963 = vdwg.mxu0
    %4964 = vmatpush.bf16.msra.mxu0 %v4202
    %4965 = vmatpush.bf16.msra.mxu0 %v4194
    %4966 = vmatpush.bf16.msra.mxu0 %v4186
    %4967 = vmatpush.bf16.msra.mxu0 %v4178
    %4968 = vmatpush.bf16.msra.mxu0 %v4170
    %4969 = vmatpush.bf16.msra.mxu0 %v4162
    %4970 = vmatpush.bf16.msra.mxu0 %v4154
    %4971 = vmatpush.bf16.msra.mxu0 %v4146
    %4972 = vmatmul.bf16.gmra.mxu0 %v3094
    %v4973 = vpop.f32.mrf.mxu0
    %v4974 = vadd.f32 %v3362, %v4973
    %v4975 = vpop.f32.mrf.mxu0
    %4976 = vdwg.mxu0
    %4977 = vmatpush.bf16.msra.mxu0 %v4266
    %4978 = vmatpush.bf16.msra.mxu0 %v4258
    %4979 = vmatpush.bf16.msra.mxu0 %v4250
    %4980 = vmatpush.bf16.msra.mxu0 %v4242
    %4981 = vmatpush.bf16.msra.mxu0 %v4234
    %4982 = vmatpush.bf16.msra.mxu0 %v4226
    %4983 = vmatpush.bf16.msra.mxu0 %v4218
    %4984 = vmatpush.bf16.msra.mxu0 %v4210
    %4985 = vmatmul.bf16.gmra.mxu0 %v3095
    %v4986 = vpop.f32.mrf.mxu0
    %v4987 = vadd.f32 %v4974, %v4986
    %v4988 = vpop.f32.mrf.mxu0
    %4989 = vdwg.mxu0
    %4990 = vmatpush.bf16.msra.mxu0 %v4330
    %4991 = vmatpush.bf16.msra.mxu0 %v4322
    %4992 = vmatpush.bf16.msra.mxu0 %v4314
    %4993 = vmatpush.bf16.msra.mxu0 %v4306
    %4994 = vmatpush.bf16.msra.mxu0 %v4298
    %4995 = vmatpush.bf16.msra.mxu0 %v4290
    %4996 = vmatpush.bf16.msra.mxu0 %v4282
    %4997 = vmatpush.bf16.msra.mxu0 %v4274
    %4998 = vmatmul.bf16.gmra.mxu0 %v3096
    %v4999 = vpop.f32.mrf.mxu0
    %v5000 = vadd.f32 %v4987, %v4999
    %v5001 = vpop.f32.mrf.mxu0
    %5002 = vdwg.mxu0
    %5003 = vmatpush.bf16.msra.mxu0 %v4394
    %5004 = vmatpush.bf16.msra.mxu0 %v4386
    %5005 = vmatpush.bf16.msra.mxu0 %v4378
    %5006 = vmatpush.bf16.msra.mxu0 %v4370
    %5007 = vmatpush.bf16.msra.mxu0 %v4362
    %5008 = vmatpush.bf16.msra.mxu0 %v4354
    %5009 = vmatpush.bf16.msra.mxu0 %v4346
    %5010 = vmatpush.bf16.msra.mxu0 %v4338
    %5011 = vmatmul.bf16.gmra.mxu0 %v3097
    %v5012 = vpop.f32.mrf.mxu0
    %v5013 = vadd.f32 %v5000, %v5012
    %v5014 = vpop.f32.mrf.mxu0
    %5015 = vdwg.mxu0
    %5016 = vmatpush.bf16.msra.mxu0 %v4203
    %5017 = vmatpush.bf16.msra.mxu0 %v4195
    %5018 = vmatpush.bf16.msra.mxu0 %v4187
    %5019 = vmatpush.bf16.msra.mxu0 %v4179
    %5020 = vmatpush.bf16.msra.mxu0 %v4171
    %5021 = vmatpush.bf16.msra.mxu0 %v4163
    %5022 = vmatpush.bf16.msra.mxu0 %v4155
    %5023 = vmatpush.bf16.msra.mxu0 %v4147
    %5024 = vmatmul.bf16.gmra.mxu0 %v3094
    %v5025 = vpop.f32.mrf.mxu0
    %v5026 = vadd.f32 %v3363, %v5025
    %v5027 = vpop.f32.mrf.mxu0
    %5028 = vdwg.mxu0
    %5029 = vmatpush.bf16.msra.mxu0 %v4267
    %5030 = vmatpush.bf16.msra.mxu0 %v4259
    %5031 = vmatpush.bf16.msra.mxu0 %v4251
    %5032 = vmatpush.bf16.msra.mxu0 %v4243
    %5033 = vmatpush.bf16.msra.mxu0 %v4235
    %5034 = vmatpush.bf16.msra.mxu0 %v4227
    %5035 = vmatpush.bf16.msra.mxu0 %v4219
    %5036 = vmatpush.bf16.msra.mxu0 %v4211
    %5037 = vmatmul.bf16.gmra.mxu0 %v3095
    %v5038 = vpop.f32.mrf.mxu0
    %v5039 = vadd.f32 %v5026, %v5038
    %v5040 = vpop.f32.mrf.mxu0
    %5041 = vdwg.mxu0
    %5042 = vmatpush.bf16.msra.mxu0 %v4331
    %5043 = vmatpush.bf16.msra.mxu0 %v4323
    %5044 = vmatpush.bf16.msra.mxu0 %v4315
    %5045 = vmatpush.bf16.msra.mxu0 %v4307
    %5046 = vmatpush.bf16.msra.mxu0 %v4299
    %5047 = vmatpush.bf16.msra.mxu0 %v4291
    %5048 = vmatpush.bf16.msra.mxu0 %v4283
    %5049 = vmatpush.bf16.msra.mxu0 %v4275
    %5050 = vmatmul.bf16.gmra.mxu0 %v3096
    %v5051 = vpop.f32.mrf.mxu0
    %v5052 = vadd.f32 %v5039, %v5051
    %v5053 = vpop.f32.mrf.mxu0
    %5054 = vdwg.mxu0
    %5055 = vmatpush.bf16.msra.mxu0 %v4395
    %5056 = vmatpush.bf16.msra.mxu0 %v4387
    %5057 = vmatpush.bf16.msra.mxu0 %v4379
    %5058 = vmatpush.bf16.msra.mxu0 %v4371
    %5059 = vmatpush.bf16.msra.mxu0 %v4363
    %5060 = vmatpush.bf16.msra.mxu0 %v4355
    %5061 = vmatpush.bf16.msra.mxu0 %v4347
    %5062 = vmatpush.bf16.msra.mxu0 %v4339
    %5063 = vmatmul.bf16.gmra.mxu0 %v3097
    %v5064 = vpop.f32.mrf.mxu0
    %v5065 = vadd.f32 %v5052, %v5064
    %v5066 = vpop.f32.mrf.mxu0
    %5067 = vdwg.mxu0
    %v5068 = vmax.f32 %v4701, 0.0
    %v5069 = vmax.f32 %v4753, 0.0
    %v5070 = vmax.f32 %v4805, 0.0
    %v5071 = vmax.f32 %v4857, 0.0
    %v5072 = vmax.f32 %v4909, 0.0
    %v5073 = vmax.f32 %v4961, 0.0
    %v5074 = vmax.f32 %v5013, 0.0
    %v5075 = vmax.f32 %v5065, 0.0
    %s5076 = smul.u32 4, 128
    %s5077 = smul.u32 %s5076, 1
    %s5078 = sshll.u32 %s5077, 4
    %5079 = dma.done %s297, %s5078
    %v5080 = vpack.c.bf16 %v5068, %v5068
    %v5081 = vpack.c.bf16 %v5069, %v5069
    %v5082 = vpack.c.bf16 %v5070, %v5070
    %v5083 = vpack.c.bf16 %v5071, %v5071
    %v5084 = vpack.c.bf16 %v5072, %v5072
    %v5085 = vpack.c.bf16 %v5073, %v5073
    %v5086 = vpack.c.bf16 %v5074, %v5074
    %v5087 = vpack.c.bf16 %v5075, %v5075
    %v5088 = vld [vmem:[#allocation5] sm:$0xf]
    %v5089 = vld [vmem:[#allocation5 + $0x4] sm:$0xf]
    %v5090 = vld [vmem:[#allocation5 + $0x8] sm:$0xf]
    %v5091 = vld [vmem:[#allocation5 + $0xc] sm:$0xf]
    %v5092 = vld [vmem:[#allocation5 + $0x10] sm:$0xf]
    %v5093 = vld [vmem:[#allocation5 + $0x14] sm:$0xf]
    %v5094 = vld [vmem:[#allocation5 + $0x18] sm:$0xf]
    %v5095 = vld [vmem:[#allocation5 + $0x1c] sm:$0xf]
    %v5096 = vld [vmem:[#allocation5 + $0x20] sm:$0xf]
    %v5097 = vld [vmem:[#allocation5 + $0x24] sm:$0xf]
    %v5098 = vld [vmem:[#allocation5 + $0x28] sm:$0xf]
    %v5099 = vld [vmem:[#allocation5 + $0x2c] sm:$0xf]
    %v5100 = vld [vmem:[#allocation5 + $0x30] sm:$0xf]
    %v5101 = vld [vmem:[#allocation5 + $0x34] sm:$0xf]
    %v5102 = vld [vmem:[#allocation5 + $0x38] sm:$0xf]
    %v5103 = vld [vmem:[#allocation5 + $0x3c] sm:$0xf]
    %v5104 = vld [vmem:[#allocation5 + $0x40] sm:$0xf]
    %v5105 = vld [vmem:[#allocation5 + $0x44] sm:$0xf]
    %v5106 = vld [vmem:[#allocation5 + $0x48] sm:$0xf]
    %v5107 = vld [vmem:[#allocation5 + $0x4c] sm:$0xf]
    %v5108 = vld [vmem:[#allocation5 + $0x50] sm:$0xf]
    %v5109 = vld [vmem:[#allocation5 + $0x54] sm:$0xf]
    %v5110 = vld [vmem:[#allocation5 + $0x58] sm:$0xf]
    %v5111 = vld [vmem:[#allocation5 + $0x5c] sm:$0xf]
    %v5112 = vld [vmem:[#allocation5 + $0x60] sm:$0xf]
    %v5113 = vld [vmem:[#allocation5 + $0x64] sm:$0xf]
    %v5114 = vld [vmem:[#allocation5 + $0x68] sm:$0xf]
    %v5115 = vld [vmem:[#allocation5 + $0x6c] sm:$0xf]
    %v5116 = vld [vmem:[#allocation5 + $0x70] sm:$0xf]
    %v5117 = vld [vmem:[#allocation5 + $0x74] sm:$0xf]
    %v5118 = vld [vmem:[#allocation5 + $0x78] sm:$0xf]
    %v5119 = vld [vmem:[#allocation5 + $0x7c] sm:$0xf]
    %v5120 = vld [vmem:[#allocation5 + $0x80] sm:$0xf]
    %v5121 = vld [vmem:[#allocation5 + $0x84] sm:$0xf]
    %v5122 = vld [vmem:[#allocation5 + $0x88] sm:$0xf]
    %v5123 = vld [vmem:[#allocation5 + $0x8c] sm:$0xf]
    %v5124 = vld [vmem:[#allocation5 + $0x90] sm:$0xf]
    %v5125 = vld [vmem:[#allocation5 + $0x94] sm:$0xf]
    %v5126 = vld [vmem:[#allocation5 + $0x98] sm:$0xf]
    %v5127 = vld [vmem:[#allocation5 + $0x9c] sm:$0xf]
    %v5128 = vld [vmem:[#allocation5 + $0xa0] sm:$0xf]
    %v5129 = vld [vmem:[#allocation5 + $0xa4] sm:$0xf]
    %v5130 = vld [vmem:[#allocation5 + $0xa8] sm:$0xf]
    %v5131 = vld [vmem:[#allocation5 + $0xac] sm:$0xf]
    %v5132 = vld [vmem:[#allocation5 + $0xb0] sm:$0xf]
    %v5133 = vld [vmem:[#allocation5 + $0xb4] sm:$0xf]
    %v5134 = vld [vmem:[#allocation5 + $0xb8] sm:$0xf]
    %v5135 = vld [vmem:[#allocation5 + $0xbc] sm:$0xf]
    %v5136 = vld [vmem:[#allocation5 + $0xc0] sm:$0xf]
    %v5137 = vld [vmem:[#allocation5 + $0xc4] sm:$0xf]
    %v5138 = vld [vmem:[#allocation5 + $0xc8] sm:$0xf]
    %v5139 = vld [vmem:[#allocation5 + $0xcc] sm:$0xf]
    %v5140 = vld [vmem:[#allocation5 + $0xd0] sm:$0xf]
    %v5141 = vld [vmem:[#allocation5 + $0xd4] sm:$0xf]
    %v5142 = vld [vmem:[#allocation5 + $0xd8] sm:$0xf]
    %v5143 = vld [vmem:[#allocation5 + $0xdc] sm:$0xf]
    %v5144 = vld [vmem:[#allocation5 + $0xe0] sm:$0xf]
    %v5145 = vld [vmem:[#allocation5 + $0xe4] sm:$0xf]
    %v5146 = vld [vmem:[#allocation5 + $0xe8] sm:$0xf]
    %v5147 = vld [vmem:[#allocation5 + $0xec] sm:$0xf]
    %v5148 = vld [vmem:[#allocation5 + $0xf0] sm:$0xf]
    %v5149 = vld [vmem:[#allocation5 + $0xf4] sm:$0xf]
    %v5150 = vld [vmem:[#allocation5 + $0xf8] sm:$0xf]
    %v5151 = vld [vmem:[#allocation5 + $0xfc] sm:$0xf]
    %v5152 = vld [vmem:[#allocation5 + $0x100] sm:$0xf]
    %v5153 = vld [vmem:[#allocation5 + $0x104] sm:$0xf]
    %v5154 = vld [vmem:[#allocation5 + $0x108] sm:$0xf]
    %v5155 = vld [vmem:[#allocation5 + $0x10c] sm:$0xf]
    %v5156 = vld [vmem:[#allocation5 + $0x110] sm:$0xf]
    %v5157 = vld [vmem:[#allocation5 + $0x114] sm:$0xf]
    %v5158 = vld [vmem:[#allocation5 + $0x118] sm:$0xf]
    %v5159 = vld [vmem:[#allocation5 + $0x11c] sm:$0xf]
    %v5160 = vld [vmem:[#allocation5 + $0x120] sm:$0xf]
    %v5161 = vld [vmem:[#allocation5 + $0x124] sm:$0xf]
    %v5162 = vld [vmem:[#allocation5 + $0x128] sm:$0xf]
    %v5163 = vld [vmem:[#allocation5 + $0x12c] sm:$0xf]
    %v5164 = vld [vmem:[#allocation5 + $0x130] sm:$0xf]
    %v5165 = vld [vmem:[#allocation5 + $0x134] sm:$0xf]
    %v5166 = vld [vmem:[#allocation5 + $0x138] sm:$0xf]
    %v5167 = vld [vmem:[#allocation5 + $0x13c] sm:$0xf]
    %v5168 = vld [vmem:[#allocation5 + $0x140] sm:$0xf]
    %v5169 = vld [vmem:[#allocation5 + $0x144] sm:$0xf]
    %v5170 = vld [vmem:[#allocation5 + $0x148] sm:$0xf]
    %v5171 = vld [vmem:[#allocation5 + $0x14c] sm:$0xf]
    %v5172 = vld [vmem:[#allocation5 + $0x150] sm:$0xf]
    %v5173 = vld [vmem:[#allocation5 + $0x154] sm:$0xf]
    %v5174 = vld [vmem:[#allocation5 + $0x158] sm:$0xf]
    %v5175 = vld [vmem:[#allocation5 + $0x15c] sm:$0xf]
    %v5176 = vld [vmem:[#allocation5 + $0x160] sm:$0xf]
    %v5177 = vld [vmem:[#allocation5 + $0x164] sm:$0xf]
    %v5178 = vld [vmem:[#allocation5 + $0x168] sm:$0xf]
    %v5179 = vld [vmem:[#allocation5 + $0x16c] sm:$0xf]
    %v5180 = vld [vmem:[#allocation5 + $0x170] sm:$0xf]
    %v5181 = vld [vmem:[#allocation5 + $0x174] sm:$0xf]
    %v5182 = vld [vmem:[#allocation5 + $0x178] sm:$0xf]
    %v5183 = vld [vmem:[#allocation5 + $0x17c] sm:$0xf]
    %v5184 = vld [vmem:[#allocation5 + $0x180] sm:$0xf]
    %v5185 = vld [vmem:[#allocation5 + $0x184] sm:$0xf]
    %v5186 = vld [vmem:[#allocation5 + $0x188] sm:$0xf]
    %v5187 = vld [vmem:[#allocation5 + $0x18c] sm:$0xf]
    %v5188 = vld [vmem:[#allocation5 + $0x190] sm:$0xf]
    %v5189 = vld [vmem:[#allocation5 + $0x194] sm:$0xf]
    %v5190 = vld [vmem:[#allocation5 + $0x198] sm:$0xf]
    %v5191 = vld [vmem:[#allocation5 + $0x19c] sm:$0xf]
    %v5192 = vld [vmem:[#allocation5 + $0x1a0] sm:$0xf]
    %v5193 = vld [vmem:[#allocation5 + $0x1a4] sm:$0xf]
    %v5194 = vld [vmem:[#allocation5 + $0x1a8] sm:$0xf]
    %v5195 = vld [vmem:[#allocation5 + $0x1ac] sm:$0xf]
    %v5196 = vld [vmem:[#allocation5 + $0x1b0] sm:$0xf]
    %v5197 = vld [vmem:[#allocation5 + $0x1b4] sm:$0xf]
    %v5198 = vld [vmem:[#allocation5 + $0x1b8] sm:$0xf]
    %v5199 = vld [vmem:[#allocation5 + $0x1bc] sm:$0xf]
    %v5200 = vld [vmem:[#allocation5 + $0x1c0] sm:$0xf]
    %v5201 = vld [vmem:[#allocation5 + $0x1c4] sm:$0xf]
    %v5202 = vld [vmem:[#allocation5 + $0x1c8] sm:$0xf]
    %v5203 = vld [vmem:[#allocation5 + $0x1cc] sm:$0xf]
    %v5204 = vld [vmem:[#allocation5 + $0x1d0] sm:$0xf]
    %v5205 = vld [vmem:[#allocation5 + $0x1d4] sm:$0xf]
    %v5206 = vld [vmem:[#allocation5 + $0x1d8] sm:$0xf]
    %v5207 = vld [vmem:[#allocation5 + $0x1dc] sm:$0xf]
    %v5208 = vld [vmem:[#allocation5 + $0x1e0] sm:$0xf]
    %v5209 = vld [vmem:[#allocation5 + $0x1e4] sm:$0xf]
    %v5210 = vld [vmem:[#allocation5 + $0x1e8] sm:$0xf]
    %v5211 = vld [vmem:[#allocation5 + $0x1ec] sm:$0xf]
    %v5212 = vld [vmem:[#allocation5 + $0x1f0] sm:$0xf]
    %v5213 = vld [vmem:[#allocation5 + $0x1f4] sm:$0xf]
    %v5214 = vld [vmem:[#allocation5 + $0x1f8] sm:$0xf]
    %v5215 = vld [vmem:[#allocation5 + $0x1fc] sm:$0xf]
    %v5216 = vld [vmem:[%s20] sm:$0x1]
    %v5218 = vperm.slane %v5216, 0
    %v5348 = vunpack.c.l.b16 %v5088
    %v5349 = vunpack.c.l.b16 %v5089
    %v5350 = vunpack.c.l.b16 %v5090
    %v5351 = vunpack.c.l.b16 %v5091
    %v5352 = vunpack.c.l.b16 %v5092
    %v5353 = vunpack.c.l.b16 %v5093
    %v5354 = vunpack.c.l.b16 %v5094
    %v5355 = vunpack.c.l.b16 %v5095
    %v5356 = vunpack.c.l.b16 %v5096
    %v5357 = vunpack.c.l.b16 %v5097
    %v5358 = vunpack.c.l.b16 %v5098
    %v5359 = vunpack.c.l.b16 %v5099
    %v5360 = vunpack.c.l.b16 %v5100
    %v5361 = vunpack.c.l.b16 %v5101
    %v5362 = vunpack.c.l.b16 %v5102
    %v5363 = vunpack.c.l.b16 %v5103
    %v5364 = vunpack.c.l.b16 %v5104
    %v5365 = vunpack.c.l.b16 %v5105
    %v5366 = vunpack.c.l.b16 %v5106
    %v5367 = vunpack.c.l.b16 %v5107
    %v5368 = vunpack.c.l.b16 %v5108
    %v5369 = vunpack.c.l.b16 %v5109
    %v5370 = vunpack.c.l.b16 %v5110
    %v5371 = vunpack.c.l.b16 %v5111
    %v5372 = vunpack.c.l.b16 %v5112
    %v5373 = vunpack.c.l.b16 %v5113
    %v5374 = vunpack.c.l.b16 %v5114
    %v5375 = vunpack.c.l.b16 %v5115
    %v5376 = vunpack.c.l.b16 %v5116
    %v5377 = vunpack.c.l.b16 %v5117
    %v5378 = vunpack.c.l.b16 %v5118
    %v5379 = vunpack.c.l.b16 %v5119
    %v5380 = vunpack.c.l.b16 %v5120
    %v5381 = vunpack.c.l.b16 %v5121
    %v5382 = vunpack.c.l.b16 %v5122
    %v5383 = vunpack.c.l.b16 %v5123
    %v5384 = vunpack.c.l.b16 %v5124
    %v5385 = vunpack.c.l.b16 %v5125
    %v5386 = vunpack.c.l.b16 %v5126
    %v5387 = vunpack.c.l.b16 %v5127
    %v5388 = vunpack.c.l.b16 %v5128
    %v5389 = vunpack.c.l.b16 %v5129
    %v5390 = vunpack.c.l.b16 %v5130
    %v5391 = vunpack.c.l.b16 %v5131
    %v5392 = vunpack.c.l.b16 %v5132
    %v5393 = vunpack.c.l.b16 %v5133
    %v5394 = vunpack.c.l.b16 %v5134
    %v5395 = vunpack.c.l.b16 %v5135
    %v5396 = vunpack.c.l.b16 %v5136
    %v5397 = vunpack.c.l.b16 %v5137
    %v5398 = vunpack.c.l.b16 %v5138
    %v5399 = vunpack.c.l.b16 %v5139
    %v5400 = vunpack.c.l.b16 %v5140
    %v5401 = vunpack.c.l.b16 %v5141
    %v5402 = vunpack.c.l.b16 %v5142
    %v5403 = vunpack.c.l.b16 %v5143
    %v5404 = vunpack.c.l.b16 %v5144
    %v5405 = vunpack.c.l.b16 %v5145
    %v5406 = vunpack.c.l.b16 %v5146
    %v5407 = vunpack.c.l.b16 %v5147
    %v5408 = vunpack.c.l.b16 %v5148
    %v5409 = vunpack.c.l.b16 %v5149
    %v5410 = vunpack.c.l.b16 %v5150
    %v5411 = vunpack.c.l.b16 %v5151
    %v5412 = vunpack.c.l.b16 %v5152
    %v5413 = vunpack.c.l.b16 %v5153
    %v5414 = vunpack.c.l.b16 %v5154
    %v5415 = vunpack.c.l.b16 %v5155
    %v5416 = vunpack.c.l.b16 %v5156
    %v5417 = vunpack.c.l.b16 %v5157
    %v5418 = vunpack.c.l.b16 %v5158
    %v5419 = vunpack.c.l.b16 %v5159
    %v5420 = vunpack.c.l.b16 %v5160
    %v5421 = vunpack.c.l.b16 %v5161
    %v5422 = vunpack.c.l.b16 %v5162
    %v5423 = vunpack.c.l.b16 %v5163
    %v5424 = vunpack.c.l.b16 %v5164
    %v5425 = vunpack.c.l.b16 %v5165
    %v5426 = vunpack.c.l.b16 %v5166
    %v5427 = vunpack.c.l.b16 %v5167
    %v5428 = vunpack.c.l.b16 %v5168
    %v5429 = vunpack.c.l.b16 %v5169
    %v5430 = vunpack.c.l.b16 %v5170
    %v5431 = vunpack.c.l.b16 %v5171
    %v5432 = vunpack.c.l.b16 %v5172
    %v5433 = vunpack.c.l.b16 %v5173
    %v5434 = vunpack.c.l.b16 %v5174
    %v5435 = vunpack.c.l.b16 %v5175
    %v5436 = vunpack.c.l.b16 %v5176
    %v5437 = vunpack.c.l.b16 %v5177
    %v5438 = vunpack.c.l.b16 %v5178
    %v5439 = vunpack.c.l.b16 %v5179
    %v5440 = vunpack.c.l.b16 %v5180
    %v5441 = vunpack.c.l.b16 %v5181
    %v5442 = vunpack.c.l.b16 %v5182
    %v5443 = vunpack.c.l.b16 %v5183
    %v5444 = vunpack.c.l.b16 %v5184
    %v5445 = vunpack.c.l.b16 %v5185
    %v5446 = vunpack.c.l.b16 %v5186
    %v5447 = vunpack.c.l.b16 %v5187
    %v5448 = vunpack.c.l.b16 %v5188
    %v5449 = vunpack.c.l.b16 %v5189
    %v5450 = vunpack.c.l.b16 %v5190
    %v5451 = vunpack.c.l.b16 %v5191
    %v5452 = vunpack.c.l.b16 %v5192
    %v5453 = vunpack.c.l.b16 %v5193
    %v5454 = vunpack.c.l.b16 %v5194
    %v5455 = vunpack.c.l.b16 %v5195
    %v5456 = vunpack.c.l.b16 %v5196
    %v5457 = vunpack.c.l.b16 %v5197
    %v5458 = vunpack.c.l.b16 %v5198
    %v5459 = vunpack.c.l.b16 %v5199
    %v5460 = vunpack.c.l.b16 %v5200
    %v5461 = vunpack.c.l.b16 %v5201
    %v5462 = vunpack.c.l.b16 %v5202
    %v5463 = vunpack.c.l.b16 %v5203
    %v5464 = vunpack.c.l.b16 %v5204
    %v5465 = vunpack.c.l.b16 %v5205
    %v5466 = vunpack.c.l.b16 %v5206
    %v5467 = vunpack.c.l.b16 %v5207
    %v5468 = vunpack.c.l.b16 %v5208
    %v5469 = vunpack.c.l.b16 %v5209
    %v5470 = vunpack.c.l.b16 %v5210
    %v5471 = vunpack.c.l.b16 %v5211
    %v5472 = vunpack.c.l.b16 %v5212
    %v5473 = vunpack.c.l.b16 %v5213
    %v5474 = vunpack.c.l.b16 %v5214
    %v5475 = vunpack.c.l.b16 %v5215
    %v5476 = vpack.c.b16 %v5349, %v5348
    %v5477 = vpack.c.b16 %v5351, %v5350
    %v5478 = vpack.c.b16 %v5353, %v5352
    %v5479 = vpack.c.b16 %v5355, %v5354
    %v5480 = vpack.c.b16 %v5357, %v5356
    %v5481 = vpack.c.b16 %v5359, %v5358
    %v5482 = vpack.c.b16 %v5361, %v5360
    %v5483 = vpack.c.b16 %v5363, %v5362
    %v5484 = vpack.c.b16 %v5365, %v5364
    %v5485 = vpack.c.b16 %v5367, %v5366
    %v5486 = vpack.c.b16 %v5369, %v5368
    %v5487 = vpack.c.b16 %v5371, %v5370
    %v5488 = vpack.c.b16 %v5373, %v5372
    %v5489 = vpack.c.b16 %v5375, %v5374
    %v5490 = vpack.c.b16 %v5377, %v5376
    %v5491 = vpack.c.b16 %v5379, %v5378
    %v5492 = vpack.c.b16 %v5381, %v5380
    %v5493 = vpack.c.b16 %v5383, %v5382
    %v5494 = vpack.c.b16 %v5385, %v5384
    %v5495 = vpack.c.b16 %v5387, %v5386
    %v5496 = vpack.c.b16 %v5389, %v5388
    %v5497 = vpack.c.b16 %v5391, %v5390
    %v5498 = vpack.c.b16 %v5393, %v5392
    %v5499 = vpack.c.b16 %v5395, %v5394
    %v5500 = vpack.c.b16 %v5397, %v5396
    %v5501 = vpack.c.b16 %v5399, %v5398
    %v5502 = vpack.c.b16 %v5401, %v5400
    %v5503 = vpack.c.b16 %v5403, %v5402
    %v5504 = vpack.c.b16 %v5405, %v5404
    %v5505 = vpack.c.b16 %v5407, %v5406
    %v5506 = vpack.c.b16 %v5409, %v5408
    %v5507 = vpack.c.b16 %v5411, %v5410
    %v5508 = vpack.c.b16 %v5413, %v5412
    %v5509 = vpack.c.b16 %v5415, %v5414
    %v5510 = vpack.c.b16 %v5417, %v5416
    %v5511 = vpack.c.b16 %v5419, %v5418
    %v5512 = vpack.c.b16 %v5421, %v5420
    %v5513 = vpack.c.b16 %v5423, %v5422
    %v5514 = vpack.c.b16 %v5425, %v5424
    %v5515 = vpack.c.b16 %v5427, %v5426
    %v5516 = vpack.c.b16 %v5429, %v5428
    %v5517 = vpack.c.b16 %v5431, %v5430
    %v5518 = vpack.c.b16 %v5433, %v5432
    %v5519 = vpack.c.b16 %v5435, %v5434
    %v5520 = vpack.c.b16 %v5437, %v5436
    %v5521 = vpack.c.b16 %v5439, %v5438
    %v5522 = vpack.c.b16 %v5441, %v5440
    %v5523 = vpack.c.b16 %v5443, %v5442
    %v5524 = vpack.c.b16 %v5445, %v5444
    %v5525 = vpack.c.b16 %v5447, %v5446
    %v5526 = vpack.c.b16 %v5449, %v5448
    %v5527 = vpack.c.b16 %v5451, %v5450
    %v5528 = vpack.c.b16 %v5453, %v5452
    %v5529 = vpack.c.b16 %v5455, %v5454
    %v5530 = vpack.c.b16 %v5457, %v5456
    %v5531 = vpack.c.b16 %v5459, %v5458
    %v5532 = vpack.c.b16 %v5461, %v5460
    %v5533 = vpack.c.b16 %v5463, %v5462
    %v5534 = vpack.c.b16 %v5465, %v5464
    %v5535 = vpack.c.b16 %v5467, %v5466
    %v5536 = vpack.c.b16 %v5469, %v5468
    %v5537 = vpack.c.b16 %v5471, %v5470
    %v5538 = vpack.c.b16 %v5473, %v5472
    %v5539 = vpack.c.b16 %v5475, %v5474
    %5604 = vmatpush.bf16.msra.mxu0 %v5483
    %5605 = vmatpush.bf16.msra.mxu0 %v5482
    %5606 = vmatpush.bf16.msra.mxu0 %v5481
    %5607 = vmatpush.bf16.msra.mxu0 %v5480
    %5608 = vmatpush.bf16.msra.mxu0 %v5479
    %5609 = vmatpush.bf16.msra.mxu0 %v5478
    %5610 = vmatpush.bf16.msra.mxu0 %v5477
    %5611 = vmatpush.bf16.msra.mxu0 %v5476
    %5612 = vmatmul.bf16.gmra.mxu0 %v5080
    %v5613 = vpop.f32.mrf.mxu0
    %v5614 = vadd.f32 %v5218, %v5613
    %v5615 = vpop.f32.mrf.mxu0
    %5616 = vdwg.mxu0
    %5617 = vmatpush.bf16.msra.mxu0 %v5491
    %5618 = vmatpush.bf16.msra.mxu0 %v5490
    %5619 = vmatpush.bf16.msra.mxu0 %v5489
    %5620 = vmatpush.bf16.msra.mxu0 %v5488
    %5621 = vmatpush.bf16.msra.mxu0 %v5487
    %5622 = vmatpush.bf16.msra.mxu0 %v5486
    %5623 = vmatpush.bf16.msra.mxu0 %v5485
    %5624 = vmatpush.bf16.msra.mxu0 %v5484
    %5625 = vmatmul.bf16.gmra.mxu0 %v5081
    %v5626 = vpop.f32.mrf.mxu0
    %v5627 = vadd.f32 %v5614, %v5626
    %v5628 = vpop.f32.mrf.mxu0
    %5629 = vdwg.mxu0
    %5630 = vmatpush.bf16.msra.mxu0 %v5499
    %5631 = vmatpush.bf16.msra.mxu0 %v5498
    %5632 = vmatpush.bf16.msra.mxu0 %v5497
    %5633 = vmatpush.bf16.msra.mxu0 %v5496
    %5634 = vmatpush.bf16.msra.mxu0 %v5495
    %5635 = vmatpush.bf16.msra.mxu0 %v5494
    %5636 = vmatpush.bf16.msra.mxu0 %v5493
    %5637 = vmatpush.bf16.msra.mxu0 %v5492
    %5638 = vmatmul.bf16.gmra.mxu0 %v5082
    %v5639 = vpop.f32.mrf.mxu0
    %v5640 = vadd.f32 %v5627, %v5639
    %v5641 = vpop.f32.mrf.mxu0
    %5642 = vdwg.mxu0
    %5643 = vmatpush.bf16.msra.mxu0 %v5507
    %5644 = vmatpush.bf16.msra.mxu0 %v5506
    %5645 = vmatpush.bf16.msra.mxu0 %v5505
    %5646 = vmatpush.bf16.msra.mxu0 %v5504
    %5647 = vmatpush.bf16.msra.mxu0 %v5503
    %5648 = vmatpush.bf16.msra.mxu0 %v5502
    %5649 = vmatpush.bf16.msra.mxu0 %v5501
    %5650 = vmatpush.bf16.msra.mxu0 %v5500
    %5651 = vmatmul.bf16.gmra.mxu0 %v5083
    %v5652 = vpop.f32.mrf.mxu0
    %v5653 = vadd.f32 %v5640, %v5652
    %v5654 = vpop.f32.mrf.mxu0
    %5655 = vdwg.mxu0
    %5656 = vmatpush.bf16.msra.mxu0 %v5515
    %5657 = vmatpush.bf16.msra.mxu0 %v5514
    %5658 = vmatpush.bf16.msra.mxu0 %v5513
    %5659 = vmatpush.bf16.msra.mxu0 %v5512
    %5660 = vmatpush.bf16.msra.mxu0 %v5511
    %5661 = vmatpush.bf16.msra.mxu0 %v5510
    %5662 = vmatpush.bf16.msra.mxu0 %v5509
    %5663 = vmatpush.bf16.msra.mxu0 %v5508
    %5664 = vmatmul.bf16.gmra.mxu0 %v5084
    %v5665 = vpop.f32.mrf.mxu0
    %v5666 = vadd.f32 %v5653, %v5665
    %v5667 = vpop.f32.mrf.mxu0
    %5668 = vdwg.mxu0
    %5669 = vmatpush.bf16.msra.mxu0 %v5523
    %5670 = vmatpush.bf16.msra.mxu0 %v5522
    %5671 = vmatpush.bf16.msra.mxu0 %v5521
    %5672 = vmatpush.bf16.msra.mxu0 %v5520
    %5673 = vmatpush.bf16.msra.mxu0 %v5519
    %5674 = vmatpush.bf16.msra.mxu0 %v5518
    %5675 = vmatpush.bf16.msra.mxu0 %v5517
    %5676 = vmatpush.bf16.msra.mxu0 %v5516
    %5677 = vmatmul.bf16.gmra.mxu0 %v5085
    %v5678 = vpop.f32.mrf.mxu0
    %v5679 = vadd.f32 %v5666, %v5678
    %v5680 = vpop.f32.mrf.mxu0
    %5681 = vdwg.mxu0
    %5682 = vmatpush.bf16.msra.mxu0 %v5531
    %5683 = vmatpush.bf16.msra.mxu0 %v5530
    %5684 = vmatpush.bf16.msra.mxu0 %v5529
    %5685 = vmatpush.bf16.msra.mxu0 %v5528
    %5686 = vmatpush.bf16.msra.mxu0 %v5527
    %5687 = vmatpush.bf16.msra.mxu0 %v5526
    %5688 = vmatpush.bf16.msra.mxu0 %v5525
    %5689 = vmatpush.bf16.msra.mxu0 %v5524
    %5690 = vmatmul.bf16.gmra.mxu0 %v5086
    %v5691 = vpop.f32.mrf.mxu0
    %v5692 = vadd.f32 %v5679, %v5691
    %v5693 = vpop.f32.mrf.mxu0
    %5694 = vdwg.mxu0
    %5695 = vmatpush.bf16.msra.mxu0 %v5539
    %5696 = vmatpush.bf16.msra.mxu0 %v5538
    %5697 = vmatpush.bf16.msra.mxu0 %v5537
    %5698 = vmatpush.bf16.msra.mxu0 %v5536
    %5699 = vmatpush.bf16.msra.mxu0 %v5535
    %5700 = vmatpush.bf16.msra.mxu0 %v5534
    %5701 = vmatpush.bf16.msra.mxu0 %v5533
    %5702 = vmatpush.bf16.msra.mxu0 %v5532
    %5703 = vmatmul.bf16.gmra.mxu0 %v5087
    %v5704 = vpop.f32.mrf.mxu0
    %v5705 = vadd.f32 %v5692, %v5704
    %v5706 = vpop.f32.mrf.mxu0
    %5707 = vdwg.mxu0
    %vm5708 = vcmask 517120
    %5709 = vst.msk [vmem:[#allocation7] sm:$0x3] %vm5708, %v5705
    // Predicated region
    $region147: #{tpu_custom_call.1} parent=1 // pred_check
      _
    $region148: #{tpu_custom_call.1} parent=1 // pred_check_branch
      %5711 = sbr.rel (0) target = $region150
    $region149: #{tpu_custom_call.1} parent=1 // pred_region
      %5713 = vsyncadd [#allocation8], 0
      %s5715 = sshll.u32 [#allocation7], 4
      %s5716 = int_to_ptr.vmem [resolvable:$true] %s5715
      %s5717 = sshll.u32 %s25, 4
      %s5718 = int_to_ptr.hbm [resolvable:$true] %s5717
      %5720 = dma.vmem_to_hbm [thread:$0]  %s5716, 32, %s5718, [#allocation8]
    $region150: #{tpu_custom_call.1} parent=1 // pred_fallthru
      _
    // Predicated region
    $region151: #{tpu_custom_call.1} parent=1 // pred_check
      _
    $region152: #{tpu_custom_call.1} parent=1 // pred_check_branch
      %5722 = sbr.rel (0) target = $region154
    $region153: #{tpu_custom_call.1} parent=1 // pred_region
      %5724 = dma.done [#allocation8], 32
    $region154: #{tpu_custom_call.1} parent=1 // pred_fallthru
      _
    %5725 = vsyncpa [#allocation8], 1
  %5726 = vsyncmov [#allocation6]
  %s5727 = vpop.sfrf %5726
  %p5728 = scmp.eq.s32.totalorder %s5727, 0
  %p5729 = pneg %p5728
  %5731 = shalt.err (%p5729)
  %s5732 = scalar_lea.sflag [#allocation6], 1
  %5733 = vsyncmov %s5732
  %s5734 = vpop.sfrf %5733
  %p5735 = scmp.eq.s32.totalorder %s5734, 0
  %p5736 = pneg %p5735
  %5738 = shalt.err (%p5736)
  %s5739 = scalar_lea.sflag [#allocation6], 2
  %5740 = vsyncmov %s5739
  %s5741 = vpop.sfrf %5740
  %p5742 = scmp.eq.s32.totalorder %s5741, 0
  %p5743 = pneg %p5742
  %5745 = shalt.err (%p5743)
  %s5746 = scalar_lea.sflag [#allocation6], 3
  %5747 = vsyncmov %s5746
  %s5748 = vpop.sfrf %5747
  %p5749 = scmp.eq.s32.totalorder %s5748, 0
  %p5750 = pneg %p5749
  %5752 = shalt.err (%p5750)

</llo_original>
